<compile_context>
chip_gen: v7x
topology: tpu7x:2x2x1
jax: 0.10.0
libtpu: 0.0.40
codegen_flags: <defaults>
</compile_context>

<pallas_src>
import functools

import numpy as np
import jax
import jax.numpy as jnp
from jax.experimental import pallas as pl
from jax.experimental.pallas import tpu as pltpu

RP = 128          # lane width: packed bond / output dimension
MAX_UNROLL = 32   # static per-site unroll threshold; deeper chains use fori_loop


def _round_up(a, b):
    return -(-a // b) * b


def _cdiv(a, b):
    return -(-a // b)


# -----------------------------------------------------------------------------
# Pallas kernel: one row tile, all L sites, all channel groups.
# -----------------------------------------------------------------------------
def _restt_kernel(x_ref, g0_ref, tmid_ref, tlast_ref, o_ref, *,
                  in_bond, num_sites, num_groups):
    # x_ref    : (L, TM, Dp)         bf16  per-site inputs; column D holds constant 1
    # g0_ref   : (NG, Dp, RP)        bf16  site-0 slab (channel-packed W1[0] + const seed)
    # tmid_ref : (L-2, NG, D*RP, RP) bf16  K-stacked middle slabs: K-block d holds
    #                                      rows c*R..+R-1 = W1[i][:,d,:,c], row CR = W2[i][d,:,c]
    # tlast_ref: (NG, (D+1)*RP, RP)  bf16  last slab: K-block 0 = W3 (carry), blocks d+1 as above
    # o_ref    : (NG, TM, RP)        f32   lanes 0..CG*O-1 valid per group
    D, L, NG = in_bond, num_sites, num_groups

    def site_update(y, x_f32, slab_bf16):
        # K-stacked fusion: one MXU call yields upd = y_new + y_lin (TM, RP) directly.
        # Each x[:, d] lane-broadcast is consumed exactly once (folded into the LHS).
        lhs = jnp.concatenate([x_f32[:, d:d + 1] * y for d in range(D)], axis=1)
        return y + jnp.dot(lhs.astype(jnp.bfloat16), slab_bf16,
                           preferred_element_type=jnp.float32)

    for g in range(NG):                       # channel groups: tiny & static
        # --- site 0: y = x0_aug @ G0 (constant-1 lane seeded via x column D) ---
        y = jnp.dot(x_ref[0], g0_ref[g], preferred_element_type=jnp.float32)  # (TM, RP) f32

        # --- middle sites 1 .. L-2: residual carry is the identity, one matmul/site ---
        if L - 2 <= MAX_UNROLL:
            for s in range(1, L - 1):
                y = site_update(y, x_ref[s].astype(jnp.float32), tmid_ref[s - 1, g])
        else:
            def body(s, y):
                return site_update(y, x_ref[s].astype(jnp.float32),
                                   tmid_ref[s - 1, g])
            y = jax.lax.fori_loop(1, L - 1, body, y)

        # --- last site: out = y@W3 + sum_d x_d*(y@T_d + W2_d), one fused MXU call ---
        x = x_ref[L - 1].astype(jnp.float32)
        lhs = jnp.concatenate([y] + [x[:, d:d + 1] * y for d in range(D)], axis=1)
        o_ref[g] = jnp.dot(lhs.astype(jnp.bfloat16), tlast_ref[g],
                           preferred_element_type=jnp.float32)


# -----------------------------------------------------------------------------
# Host-side glue: params, patch extraction, channel-packed K-stacked slab packing.
# -----------------------------------------------------------------------------
def init_restt_params(key, L, D, R, O, C, std):
    keys = jax.random.split(key, 2 * L + 1)
    W1 = [std * jax.random.normal(keys[0], (D, R, C), jnp.float32)]
    for i in range(1, L - 1):
        W1.append(std * jax.random.normal(keys[i], (R, D, R, C), jnp.float32))
    W1.append(std * jax.random.normal(keys[L - 1], (R, D, O, C), jnp.float32))
    W2 = []
    for i in range(L - 1):
        W2.append(std * jax.random.normal(keys[L + i], (D, R, C), jnp.float32))
    W2.append(std * jax.random.normal(keys[2 * L - 1], (D, O, C), jnp.float32))
    W3 = std * jax.random.normal(keys[2 * L], (R, O, C), jnp.float32)
    return W1, W2, W3


def extract_input_bucket(x, lengthX, lengthY, ks):
    # Mirrors the PyTorch patch extraction (NCHW slicing + reshape, stacked on dim 3).
    N, D = x.shape[0], x.shape[1]
    buckets = []
    for k in range(lengthX - ks + 1):
        for l in range(lengthY - ks + 1):
            buckets.append(x[:, :, k:k + ks, l:l + ks].reshape(N, D, ks * ks))
    return jnp.stack(buckets, axis=3)                     # (N, D, ks*ks, P)


def build_site_tensors(W1, W2, W3, L, D, R, O, C, CG, NG, Dp):
    """Pack weights into channel-block-diagonal, K-stacked bf16 slabs.

    y layout per group: lanes c*R..c*R+R-1 = bond of local channel c, lane CR = CG*R
    holds the constant 1 (shared across channels).  Slab column CR (and any column
    >= CG*R / CG*O) is never written, so the constant lane is preserved across the
    residual adds and unused output lanes stay zero.
    """
    CR = CG * R
    G0 = np.zeros((NG, Dp, RP), np.float32)
    TMID = np.zeros((L - 2, NG, D * RP, RP), np.float32)
    TLAST = np.zeros((NG, (D + 1) * RP, RP), np.float32)

    w1_0 = np.asarray(W1[0])          # (D, R, C)
    w1_L = np.asarray(W1[L - 1])      # (R, D, O, C)
    w2_L = np.asarray(W2[L - 1])      # (D, O, C)
    w3 = np.asarray(W3)               # (R, O, C)
    for c in range(C):
        g, cg = divmod(c, CG)
        rb, ob = cg * R, cg * O
        G0[g, :D, rb:rb + R] = w1_0[:, :, c]
        G0[g, D, CR] = 1.0                                    # constant-1 lane seed
        TLAST[g, rb:rb + R, ob:ob + O] = w3[:, :, c]          # carry block: y @ W3
        for d in range(D):
            base = (d + 1) * RP
            TLAST[g, base + rb:base + rb + R, ob:ob + O] = w1_L[:, d, :, c]
            TLAST[g, base + CR, ob:ob + O] = w2_L[d, :, c]
    for i in range(1, L - 1):
        w1 = np.asarray(W1[i])        # (R, D, R, C)
        w2 = np.asarray(W2[i])        # (D, R, C)
        for c in range(C):
            g, cg = divmod(c, CG)
            rb = cg * R
            for d in range(D):
                base = d * RP
                TMID[i - 1, g, base + rb:base + rb + R, rb:rb + R] = w1[:, d, :, c]
                TMID[i - 1, g, base + CR, rb:rb + R] = w2[d, :, c]

    to_bf16 = lambda a: jnp.asarray(a).astype(jnp.bfloat16)
    return to_bf16(G0), to_bf16(TMID), to_bf16(TLAST)


def _estimate_vmem_bytes(L, TM, Dp, NG, D):
    bf16, f32 = 2, 4
    x_tile = L * TM * Dp * bf16
    out_tile = NG * TM * RP * f32
    weights = (NG * Dp * RP + (L - 2) * NG * D * RP * RP
               + NG * (D + 1) * RP * RP) * bf16
    live = TM * RP * (D + 3) * f32            # y, upd, fused LHS (+ bf16 copy), margin
    return 2 * (x_tile + out_tile + weights) + live + (8 << 20)


def restt_pallas(x, W1, W2, W3, *, lengthX, lengthY, kernel_size,
                 in_bond, hidden_bond, output_dim, channel):
    N = x.shape[0]
    D, R, O, C = in_bond, hidden_bond, output_dim, channel
    L = lengthX * lengthY

    assert L >= 3, "need at least 3 tensor-train sites"
    assert kernel_size * kernel_size >= L, "requires kernel_size**2 >= lengthX*lengthY"
    assert R + 1 <= RP and O <= RP, "hidden_bond/output_dim must fit in 128 lanes"

    # Channel packing: CG channels share one 128-lane bond (block-diagonal slabs).
    CG = max(1, min(C, (RP - 1) // R, RP // O))
    NG = _cdiv(C, CG)

    IB = extract_input_bucket(x, lengthX, lengthY, kernel_size)   # (N, D, ks*ks, P)
    P = IB.shape[3]
    M = N * P
    X = jnp.transpose(IB[:, :, :L, :], (2, 0, 3, 1)).reshape(L, M, D)

    Dp = _round_up(D + 1, 8)     # input bond + 1 constant column, sublane padded

    # Row tiling: aim for >= 2 tiles so both v7x TensorCores get work via "parallel".
    M8 = _round_up(M, 8)
    if M8 <= 8:
        TM = 8
    elif M8 <= 2048:
        TM = _round_up(_cdiv(M, 2), 8)
    else:
        TM = 1024

    # VMEM budget: derive from the chip (v7x has only 64 MiB/TC) with ~25% headroom,
    # and shrink TM rather than over-requesting.
    try:
        vmem_cap = int(pltpu.get_tpu_info().vmem_capacity_bytes)
    except Exception:            # query unavailable -> assume smallest (v7x) capacity
        vmem_cap = 64 << 20
    budget = (vmem_cap * 3) // 4
    while _estimate_vmem_bytes(L, TM, Dp, NG, D) > budget and TM > 8:
        TM = max(8, _round_up(TM // 2, 8))
    # TODO(synk): for very deep TT chains whose weight slabs alone exceed the budget
    # (mainly v7x), stream TMID per-site (inner grid axis / single-buffered spec)
    # instead of keeping every slab resident.
    vmem_limit = int(min(max(_estimate_vmem_bytes(L, TM, Dp, NG, D), 32 << 20), budget))

    Mp = _round_up(M, TM)
    num_m_tiles = Mp // TM

    # bf16 inputs (halve DMA, feed the MXU directly); column D holds the constant 1
    # that folds the linear W2 term into the fused slab matmul.
    Xp = jnp.zeros((L, Mp, Dp), jnp.bfloat16)
    Xp = Xp.at[:, :M, :D].set(X.astype(jnp.bfloat16))
    Xp = Xp.at[:, :M, D].set(1.0)

    G0, TMID, TLAST = build_site_tensors(W1, W2, W3, L, D, R, O, C, CG, NG, Dp)

    kernel = functools.partial(_restt_kernel, in_bond=D, num_sites=L, num_groups=NG)

    out_padded = pl.pallas_call(
        kernel,
        out_shape=jax.ShapeDtypeStruct((NG, Mp, RP), jnp.float32),
        grid_spec=pltpu.PrefetchScalarGridSpec(
            num_scalar_prefetch=0,
            grid=(num_m_tiles,),
            in_specs=[
                pl.BlockSpec((L, TM, Dp), lambda m: (0, m, 0)),                 # X tile
                pl.BlockSpec((NG, Dp, RP), lambda m: (0, 0, 0)),                # G0
                pl.BlockSpec((L - 2, NG, D * RP, RP), lambda m: (0, 0, 0, 0)),  # mid slabs
                pl.BlockSpec((NG, (D + 1) * RP, RP), lambda m: (0, 0, 0)),      # last slab
            ],
            out_specs=pl.BlockSpec((NG, TM, RP), lambda m: (0, m, 0)),
        ),
        compiler_params=pltpu.CompilerParams(
            dimension_semantics=("parallel",),       # shard row tiles across cores
            vmem_limit_bytes=vmem_limit,
        ),
    )(Xp, G0, TMID, TLAST)

    out = out_padded[:, :M, :CG * O].reshape(NG, N, P, CG, O)
    out = jnp.transpose(out, (1, 2, 0, 3, 4)).reshape(N, P, NG * CG, O)
    return out[:, :, :C, :]                           # (N, P, C, O), as in PyTorch


# -----------------------------------------------------------------------------
# Pure-JAX reference (line-by-line mirror of the PyTorch forward, f32 HIGHEST).
# -----------------------------------------------------------------------------
def restt_reference(x, W1, W2, W3, *, lengthX, lengthY, kernel_size):
    L = lengthX * lengthY
    IB = extract_input_bucket(x, lengthX, lengthY, kernel_size)
    hi = jax.lax.Precision.HIGHEST
    y = jnp.einsum('ndp,drc->npcr', IB[:, :, 0, :], W1[0], precision=hi)
    for i in range(1, L - 1):
        cwd = jnp.einsum('ndp,rdlc->npcrl', IB[:, :, i, :], W1[i], precision=hi)
        y_new = jnp.einsum('npcr,npcrl->npcl', y, cwd, precision=hi)
        y_lin = jnp.einsum('ndp,drc->npcr', IB[:, :, i, :], W2[i], precision=hi)
        y = y + y_lin + y_new
    cwd = jnp.einsum('ndp,rdoc->npcro', IB[:, :, L - 1, :], W1[L - 1], precision=hi)
    y_new = jnp.einsum('npcr,npcro->npco', y, cwd, precision=hi)
    y_lin = jnp.einsum('ndp,doc->npco', IB[:, :, L - 1, :], W2[L - 1], precision=hi)
    y = jnp.einsum('npcr,roc->npco', y, W3, precision=hi)
    return y + y_lin + y_new


if __name__ == "__main__":
    # Small config consistent with the module (kernel_size == lengthX == lengthY, as
    # in the defaults, so there is a single patch); channel=3 exercises channel packing.
    lengthX = lengthY = kernel_size = 4
    in_bond, hidden_bond, output_dim, channel = 2, 4, 2, 3
    std = 0.01
    N = 4
    L = lengthX * lengthY

    key = jax.random.PRNGKey(0)
    kx, kw = jax.random.split(key)
    x = jax.random.normal(kx, (N, in_bond, lengthX, lengthY), jnp.float32)
    W1, W2, W3 = init_restt_params(kw, L, in_bond, hidden_bond, output_dim, channel, std)

    out = restt_pallas(x, W1, W2, W3, lengthX=lengthX, lengthY=lengthY,
                       kernel_size=kernel_size, in_bond=in_bond,
                       hidden_bond=hidden_bond, output_dim=output_dim,
                       channel=channel)
    out = jax.block_until_ready(out)

    ref = restt_reference(x, W1, W2, W3, lengthX=lengthX, lengthY=lengthY,
                          kernel_size=kernel_size)
    # bf16 MXU operands with f32 accumulation: expect ~0.2-0.4% relative error vs the
    # f32-HIGHEST reference (all residual/combine math stays f32).
    np.testing.assert_allclose(np.asarray(out), np.asarray(ref), rtol=2e-2, atol=3e-4)
    print("KERNEL_OK")
</pallas_src>

<mosaic_0001>
module attributes {stable_mosaic.version = 11 : i64} {
  func.func @_restt_kernel(%arg0: i32, %arg1: memref<16x8x8xbf16, #tpu.memory_space<vmem>>, %arg2: memref<1x8x128xbf16, #tpu.memory_space<vmem>>, %arg3: memref<14x1x256x128xbf16, #tpu.memory_space<vmem>>, %arg4: memref<1x384x128xbf16, #tpu.memory_space<vmem>>, %arg5: memref<1x8x128xf32, #tpu.memory_space<vmem>>) attributes {dimension_semantics = [#tpu.dimension_semantics<parallel>], iteration_bounds = array<i64: 1>, scalar_prefetch = 0 : i64, scratch_operands = 0 : i64, tpu.core_type = #tpu.core_type<tc>, window_params = [{transform_indices = @transform_0, window_bounds = array<i64: 16, 8, 8>}, {pipeline_mode = #tpu.pipeline_mode<synchronous>, transform_indices = @transform_1, window_bounds = array<i64: 1, 8, 128>}, {pipeline_mode = #tpu.pipeline_mode<synchronous>, transform_indices = @transform_2, window_bounds = array<i64: 14, 1, 256, 128>}, {pipeline_mode = #tpu.pipeline_mode<synchronous>, transform_indices = @transform_3, window_bounds = array<i64: 1, 384, 128>}, {transform_indices = @transform_4, window_bounds = array<i64: 1, 8, 128>}]} {
    %c0 = arith.constant 0 : index
    %c0_0 = arith.constant 0 : index
    %c0_1 = arith.constant 0 : index
    %0 = vector.load %arg1[%c0, %c0_0, %c0_1] : memref<16x8x8xbf16, #tpu.memory_space<vmem>>, vector<1x8x8xbf16>
    %1 = vector.shape_cast %0 : vector<1x8x8xbf16> to vector<8x8xbf16>
    %c0_2 = arith.constant 0 : index
    %c0_3 = arith.constant 0 : index
    %c0_4 = arith.constant 0 : index
    %2 = vector.load %arg2[%c0_2, %c0_3, %c0_4] : memref<1x8x128xbf16, #tpu.memory_space<vmem>>, vector<1x8x128xbf16>
    %3 = vector.shape_cast %2 : vector<1x8x128xbf16> to vector<8x128xbf16>
    %cst = arith.constant dense<0.000000e+00> : vector<8x128xf32>
    %4 = tpu.matmul %1, %3, %cst {dimension_numbers = #tpu.dot_dimension_numbers<[1], [0], [0], [1], [0, 0, 1, 1], [], []>} : vector<8x8xbf16>, vector<8x128xbf16>, vector<8x128xf32> -> vector<8x128xf32>
    %c1 = arith.constant 1 : index
    %c0_5 = arith.constant 0 : index
    %c0_6 = arith.constant 0 : index
    %5 = vector.load %arg1[%c1, %c0_5, %c0_6] : memref<16x8x8xbf16, #tpu.memory_space<vmem>>, vector<1x8x8xbf16>
    %6 = vector.shape_cast %5 : vector<1x8x8xbf16> to vector<8x8xbf16>
    %7 = arith.extf %6 : vector<8x8xbf16> to vector<8x8xf32>
    %c0_7 = arith.constant 0 : index
    %c0_8 = arith.constant 0 : index
    %c0_9 = arith.constant 0 : index
    %c0_10 = arith.constant 0 : index
    %8 = vector.load %arg3[%c0_7, %c0_8, %c0_9, %c0_10] : memref<14x1x256x128xbf16, #tpu.memory_space<vmem>>, vector<1x1x256x128xbf16>
    %9 = vector.shape_cast %8 : vector<1x1x256x128xbf16> to vector<256x128xbf16>
    %10 = vector.extract_strided_slice %7 {offsets = [0, 0], sizes = [8, 1], strides = [1, 1]} : vector<8x8xf32> to vector<8x1xf32>
    %11 = vector.broadcast %10 : vector<8x1xf32> to vector<8x128xf32>
    %12 = arith.mulf %11, %4 : vector<8x128xf32>
    %13 = vector.extract_strided_slice %7 {offsets = [0, 1], sizes = [8, 1], strides = [1, 1]} : vector<8x8xf32> to vector<8x1xf32>
    %14 = vector.broadcast %13 : vector<8x1xf32> to vector<8x128xf32>
    %15 = arith.mulf %14, %4 : vector<8x128xf32>
    %16 = tpu.concatenate %12, %15 in 1 : vector<8x128xf32>, vector<8x128xf32> -> vector<8x256xf32>
    %17 = arith.truncf %16 : vector<8x256xf32> to vector<8x256xbf16>
    %cst_11 = arith.constant dense<0.000000e+00> : vector<8x128xf32>
    %18 = tpu.matmul %17, %9, %cst_11 {dimension_numbers = #tpu.dot_dimension_numbers<[1], [0], [0], [1], [0, 0, 1, 1], [], []>} : vector<8x256xbf16>, vector<256x128xbf16>, vector<8x128xf32> -> vector<8x128xf32>
    %19 = arith.addf %4, %18 : vector<8x128xf32>
    %c2 = arith.constant 2 : index
    %c0_12 = arith.constant 0 : index
    %c0_13 = arith.constant 0 : index
    %20 = vector.load %arg1[%c2, %c0_12, %c0_13] : memref<16x8x8xbf16, #tpu.memory_space<vmem>>, vector<1x8x8xbf16>
    %21 = vector.shape_cast %20 : vector<1x8x8xbf16> to vector<8x8xbf16>
    %22 = arith.extf %21 : vector<8x8xbf16> to vector<8x8xf32>
    %c1_14 = arith.constant 1 : index
    %c0_15 = arith.constant 0 : index
    %c0_16 = arith.constant 0 : index
    %c0_17 = arith.constant 0 : index
    %23 = vector.load %arg3[%c1_14, %c0_15, %c0_16, %c0_17] : memref<14x1x256x128xbf16, #tpu.memory_space<vmem>>, vector<1x1x256x128xbf16>
    %24 = vector.shape_cast %23 : vector<1x1x256x128xbf16> to vector<256x128xbf16>
    %25 = vector.extract_strided_slice %22 {offsets = [0, 0], sizes = [8, 1], strides = [1, 1]} : vector<8x8xf32> to vector<8x1xf32>
    %26 = vector.broadcast %25 : vector<8x1xf32> to vector<8x128xf32>
    %27 = arith.mulf %26, %19 : vector<8x128xf32>
    %28 = vector.extract_strided_slice %22 {offsets = [0, 1], sizes = [8, 1], strides = [1, 1]} : vector<8x8xf32> to vector<8x1xf32>
    %29 = vector.broadcast %28 : vector<8x1xf32> to vector<8x128xf32>
    %30 = arith.mulf %29, %19 : vector<8x128xf32>
    %31 = tpu.concatenate %27, %30 in 1 : vector<8x128xf32>, vector<8x128xf32> -> vector<8x256xf32>
    %32 = arith.truncf %31 : vector<8x256xf32> to vector<8x256xbf16>
    %cst_18 = arith.constant dense<0.000000e+00> : vector<8x128xf32>
    %33 = tpu.matmul %32, %24, %cst_18 {dimension_numbers = #tpu.dot_dimension_numbers<[1], [0], [0], [1], [0, 0, 1, 1], [], []>} : vector<8x256xbf16>, vector<256x128xbf16>, vector<8x128xf32> -> vector<8x128xf32>
    %34 = arith.addf %19, %33 : vector<8x128xf32>
    %c3 = arith.constant 3 : index
    %c0_19 = arith.constant 0 : index
    %c0_20 = arith.constant 0 : index
    %35 = vector.load %arg1[%c3, %c0_19, %c0_20] : memref<16x8x8xbf16, #tpu.memory_space<vmem>>, vector<1x8x8xbf16>
    %36 = vector.shape_cast %35 : vector<1x8x8xbf16> to vector<8x8xbf16>
    %37 = arith.extf %36 : vector<8x8xbf16> to vector<8x8xf32>
    %c2_21 = arith.constant 2 : index
    %c0_22 = arith.constant 0 : index
    %c0_23 = arith.constant 0 : index
    %c0_24 = arith.constant 0 : index
    %38 = vector.load %arg3[%c2_21, %c0_22, %c0_23, %c0_24] : memref<14x1x256x128xbf16, #tpu.memory_space<vmem>>, vector<1x1x256x128xbf16>
    %39 = vector.shape_cast %38 : vector<1x1x256x128xbf16> to vector<256x128xbf16>
    %40 = vector.extract_strided_slice %37 {offsets = [0, 0], sizes = [8, 1], strides = [1, 1]} : vector<8x8xf32> to vector<8x1xf32>
    %41 = vector.broadcast %40 : vector<8x1xf32> to vector<8x128xf32>
    %42 = arith.mulf %41, %34 : vector<8x128xf32>
    %43 = vector.extract_strided_slice %37 {offsets = [0, 1], sizes = [8, 1], strides = [1, 1]} : vector<8x8xf32> to vector<8x1xf32>
    %44 = vector.broadcast %43 : vector<8x1xf32> to vector<8x128xf32>
    %45 = arith.mulf %44, %34 : vector<8x128xf32>
    %46 = tpu.concatenate %42, %45 in 1 : vector<8x128xf32>, vector<8x128xf32> -> vector<8x256xf32>
    %47 = arith.truncf %46 : vector<8x256xf32> to vector<8x256xbf16>
    %cst_25 = arith.constant dense<0.000000e+00> : vector<8x128xf32>
    %48 = tpu.matmul %47, %39, %cst_25 {dimension_numbers = #tpu.dot_dimension_numbers<[1], [0], [0], [1], [0, 0, 1, 1], [], []>} : vector<8x256xbf16>, vector<256x128xbf16>, vector<8x128xf32> -> vector<8x128xf32>
    %49 = arith.addf %34, %48 : vector<8x128xf32>
    %c4 = arith.constant 4 : index
    %c0_26 = arith.constant 0 : index
    %c0_27 = arith.constant 0 : index
    %50 = vector.load %arg1[%c4, %c0_26, %c0_27] : memref<16x8x8xbf16, #tpu.memory_space<vmem>>, vector<1x8x8xbf16>
    %51 = vector.shape_cast %50 : vector<1x8x8xbf16> to vector<8x8xbf16>
    %52 = arith.extf %51 : vector<8x8xbf16> to vector<8x8xf32>
    %c3_28 = arith.constant 3 : index
    %c0_29 = arith.constant 0 : index
    %c0_30 = arith.constant 0 : index
    %c0_31 = arith.constant 0 : index
    %53 = vector.load %arg3[%c3_28, %c0_29, %c0_30, %c0_31] : memref<14x1x256x128xbf16, #tpu.memory_space<vmem>>, vector<1x1x256x128xbf16>
    %54 = vector.shape_cast %53 : vector<1x1x256x128xbf16> to vector<256x128xbf16>
    %55 = vector.extract_strided_slice %52 {offsets = [0, 0], sizes = [8, 1], strides = [1, 1]} : vector<8x8xf32> to vector<8x1xf32>
    %56 = vector.broadcast %55 : vector<8x1xf32> to vector<8x128xf32>
    %57 = arith.mulf %56, %49 : vector<8x128xf32>
    %58 = vector.extract_strided_slice %52 {offsets = [0, 1], sizes = [8, 1], strides = [1, 1]} : vector<8x8xf32> to vector<8x1xf32>
    %59 = vector.broadcast %58 : vector<8x1xf32> to vector<8x128xf32>
    %60 = arith.mulf %59, %49 : vector<8x128xf32>
    %61 = tpu.concatenate %57, %60 in 1 : vector<8x128xf32>, vector<8x128xf32> -> vector<8x256xf32>
    %62 = arith.truncf %61 : vector<8x256xf32> to vector<8x256xbf16>
    %cst_32 = arith.constant dense<0.000000e+00> : vector<8x128xf32>
    %63 = tpu.matmul %62, %54, %cst_32 {dimension_numbers = #tpu.dot_dimension_numbers<[1], [0], [0], [1], [0, 0, 1, 1], [], []>} : vector<8x256xbf16>, vector<256x128xbf16>, vector<8x128xf32> -> vector<8x128xf32>
    %64 = arith.addf %49, %63 : vector<8x128xf32>
    %c5 = arith.constant 5 : index
    %c0_33 = arith.constant 0 : index
    %c0_34 = arith.constant 0 : index
    %65 = vector.load %arg1[%c5, %c0_33, %c0_34] : memref<16x8x8xbf16, #tpu.memory_space<vmem>>, vector<1x8x8xbf16>
    %66 = vector.shape_cast %65 : vector<1x8x8xbf16> to vector<8x8xbf16>
    %67 = arith.extf %66 : vector<8x8xbf16> to vector<8x8xf32>
    %c4_35 = arith.constant 4 : index
    %c0_36 = arith.constant 0 : index
    %c0_37 = arith.constant 0 : index
    %c0_38 = arith.constant 0 : index
    %68 = vector.load %arg3[%c4_35, %c0_36, %c0_37, %c0_38] : memref<14x1x256x128xbf16, #tpu.memory_space<vmem>>, vector<1x1x256x128xbf16>
    %69 = vector.shape_cast %68 : vector<1x1x256x128xbf16> to vector<256x128xbf16>
    %70 = vector.extract_strided_slice %67 {offsets = [0, 0], sizes = [8, 1], strides = [1, 1]} : vector<8x8xf32> to vector<8x1xf32>
    %71 = vector.broadcast %70 : vector<8x1xf32> to vector<8x128xf32>
    %72 = arith.mulf %71, %64 : vector<8x128xf32>
    %73 = vector.extract_strided_slice %67 {offsets = [0, 1], sizes = [8, 1], strides = [1, 1]} : vector<8x8xf32> to vector<8x1xf32>
    %74 = vector.broadcast %73 : vector<8x1xf32> to vector<8x128xf32>
    %75 = arith.mulf %74, %64 : vector<8x128xf32>
    %76 = tpu.concatenate %72, %75 in 1 : vector<8x128xf32>, vector<8x128xf32> -> vector<8x256xf32>
    %77 = arith.truncf %76 : vector<8x256xf32> to vector<8x256xbf16>
    %cst_39 = arith.constant dense<0.000000e+00> : vector<8x128xf32>
    %78 = tpu.matmul %77, %69, %cst_39 {dimension_numbers = #tpu.dot_dimension_numbers<[1], [0], [0], [1], [0, 0, 1, 1], [], []>} : vector<8x256xbf16>, vector<256x128xbf16>, vector<8x128xf32> -> vector<8x128xf32>
    %79 = arith.addf %64, %78 : vector<8x128xf32>
    %c6 = arith.constant 6 : index
    %c0_40 = arith.constant 0 : index
    %c0_41 = arith.constant 0 : index
    %80 = vector.load %arg1[%c6, %c0_40, %c0_41] : memref<16x8x8xbf16, #tpu.memory_space<vmem>>, vector<1x8x8xbf16>
    %81 = vector.shape_cast %80 : vector<1x8x8xbf16> to vector<8x8xbf16>
    %82 = arith.extf %81 : vector<8x8xbf16> to vector<8x8xf32>
    %c5_42 = arith.constant 5 : index
    %c0_43 = arith.constant 0 : index
    %c0_44 = arith.constant 0 : index
    %c0_45 = arith.constant 0 : index
    %83 = vector.load %arg3[%c5_42, %c0_43, %c0_44, %c0_45] : memref<14x1x256x128xbf16, #tpu.memory_space<vmem>>, vector<1x1x256x128xbf16>
    %84 = vector.shape_cast %83 : vector<1x1x256x128xbf16> to vector<256x128xbf16>
    %85 = vector.extract_strided_slice %82 {offsets = [0, 0], sizes = [8, 1], strides = [1, 1]} : vector<8x8xf32> to vector<8x1xf32>
    %86 = vector.broadcast %85 : vector<8x1xf32> to vector<8x128xf32>
    %87 = arith.mulf %86, %79 : vector<8x128xf32>
    %88 = vector.extract_strided_slice %82 {offsets = [0, 1], sizes = [8, 1], strides = [1, 1]} : vector<8x8xf32> to vector<8x1xf32>
    %89 = vector.broadcast %88 : vector<8x1xf32> to vector<8x128xf32>
    %90 = arith.mulf %89, %79 : vector<8x128xf32>
    %91 = tpu.concatenate %87, %90 in 1 : vector<8x128xf32>, vector<8x128xf32> -> vector<8x256xf32>
    %92 = arith.truncf %91 : vector<8x256xf32> to vector<8x256xbf16>
    %cst_46 = arith.constant dense<0.000000e+00> : vector<8x128xf32>
    %93 = tpu.matmul %92, %84, %cst_46 {dimension_numbers = #tpu.dot_dimension_numbers<[1], [0], [0], [1], [0, 0, 1, 1], [], []>} : vector<8x256xbf16>, vector<256x128xbf16>, vector<8x128xf32> -> vector<8x128xf32>
    %94 = arith.addf %79, %93 : vector<8x128xf32>
    %c7 = arith.constant 7 : index
    %c0_47 = arith.constant 0 : index
    %c0_48 = arith.constant 0 : index
    %95 = vector.load %arg1[%c7, %c0_47, %c0_48] : memref<16x8x8xbf16, #tpu.memory_space<vmem>>, vector<1x8x8xbf16>
    %96 = vector.shape_cast %95 : vector<1x8x8xbf16> to vector<8x8xbf16>
    %97 = arith.extf %96 : vector<8x8xbf16> to vector<8x8xf32>
    %c6_49 = arith.constant 6 : index
    %c0_50 = arith.constant 0 : index
    %c0_51 = arith.constant 0 : index
    %c0_52 = arith.constant 0 : index
    %98 = vector.load %arg3[%c6_49, %c0_50, %c0_51, %c0_52] : memref<14x1x256x128xbf16, #tpu.memory_space<vmem>>, vector<1x1x256x128xbf16>
    %99 = vector.shape_cast %98 : vector<1x1x256x128xbf16> to vector<256x128xbf16>
    %100 = vector.extract_strided_slice %97 {offsets = [0, 0], sizes = [8, 1], strides = [1, 1]} : vector<8x8xf32> to vector<8x1xf32>
    %101 = vector.broadcast %100 : vector<8x1xf32> to vector<8x128xf32>
    %102 = arith.mulf %101, %94 : vector<8x128xf32>
    %103 = vector.extract_strided_slice %97 {offsets = [0, 1], sizes = [8, 1], strides = [1, 1]} : vector<8x8xf32> to vector<8x1xf32>
    %104 = vector.broadcast %103 : vector<8x1xf32> to vector<8x128xf32>
    %105 = arith.mulf %104, %94 : vector<8x128xf32>
    %106 = tpu.concatenate %102, %105 in 1 : vector<8x128xf32>, vector<8x128xf32> -> vector<8x256xf32>
    %107 = arith.truncf %106 : vector<8x256xf32> to vector<8x256xbf16>
    %cst_53 = arith.constant dense<0.000000e+00> : vector<8x128xf32>
    %108 = tpu.matmul %107, %99, %cst_53 {dimension_numbers = #tpu.dot_dimension_numbers<[1], [0], [0], [1], [0, 0, 1, 1], [], []>} : vector<8x256xbf16>, vector<256x128xbf16>, vector<8x128xf32> -> vector<8x128xf32>
    %109 = arith.addf %94, %108 : vector<8x128xf32>
    %c8 = arith.constant 8 : index
    %c0_54 = arith.constant 0 : index
    %c0_55 = arith.constant 0 : index
    %110 = vector.load %arg1[%c8, %c0_54, %c0_55] : memref<16x8x8xbf16, #tpu.memory_space<vmem>>, vector<1x8x8xbf16>
    %111 = vector.shape_cast %110 : vector<1x8x8xbf16> to vector<8x8xbf16>
    %112 = arith.extf %111 : vector<8x8xbf16> to vector<8x8xf32>
    %c7_56 = arith.constant 7 : index
    %c0_57 = arith.constant 0 : index
    %c0_58 = arith.constant 0 : index
    %c0_59 = arith.constant 0 : index
    %113 = vector.load %arg3[%c7_56, %c0_57, %c0_58, %c0_59] : memref<14x1x256x128xbf16, #tpu.memory_space<vmem>>, vector<1x1x256x128xbf16>
    %114 = vector.shape_cast %113 : vector<1x1x256x128xbf16> to vector<256x128xbf16>
    %115 = vector.extract_strided_slice %112 {offsets = [0, 0], sizes = [8, 1], strides = [1, 1]} : vector<8x8xf32> to vector<8x1xf32>
    %116 = vector.broadcast %115 : vector<8x1xf32> to vector<8x128xf32>
    %117 = arith.mulf %116, %109 : vector<8x128xf32>
    %118 = vector.extract_strided_slice %112 {offsets = [0, 1], sizes = [8, 1], strides = [1, 1]} : vector<8x8xf32> to vector<8x1xf32>
    %119 = vector.broadcast %118 : vector<8x1xf32> to vector<8x128xf32>
    %120 = arith.mulf %119, %109 : vector<8x128xf32>
    %121 = tpu.concatenate %117, %120 in 1 : vector<8x128xf32>, vector<8x128xf32> -> vector<8x256xf32>
    %122 = arith.truncf %121 : vector<8x256xf32> to vector<8x256xbf16>
    %cst_60 = arith.constant dense<0.000000e+00> : vector<8x128xf32>
    %123 = tpu.matmul %122, %114, %cst_60 {dimension_numbers = #tpu.dot_dimension_numbers<[1], [0], [0], [1], [0, 0, 1, 1], [], []>} : vector<8x256xbf16>, vector<256x128xbf16>, vector<8x128xf32> -> vector<8x128xf32>
    %124 = arith.addf %109, %123 : vector<8x128xf32>
    %c9 = arith.constant 9 : index
    %c0_61 = arith.constant 0 : index
    %c0_62 = arith.constant 0 : index
    %125 = vector.load %arg1[%c9, %c0_61, %c0_62] : memref<16x8x8xbf16, #tpu.memory_space<vmem>>, vector<1x8x8xbf16>
    %126 = vector.shape_cast %125 : vector<1x8x8xbf16> to vector<8x8xbf16>
    %127 = arith.extf %126 : vector<8x8xbf16> to vector<8x8xf32>
    %c8_63 = arith.constant 8 : index
    %c0_64 = arith.constant 0 : index
    %c0_65 = arith.constant 0 : index
    %c0_66 = arith.constant 0 : index
    %128 = vector.load %arg3[%c8_63, %c0_64, %c0_65, %c0_66] : memref<14x1x256x128xbf16, #tpu.memory_space<vmem>>, vector<1x1x256x128xbf16>
    %129 = vector.shape_cast %128 : vector<1x1x256x128xbf16> to vector<256x128xbf16>
    %130 = vector.extract_strided_slice %127 {offsets = [0, 0], sizes = [8, 1], strides = [1, 1]} : vector<8x8xf32> to vector<8x1xf32>
    %131 = vector.broadcast %130 : vector<8x1xf32> to vector<8x128xf32>
    %132 = arith.mulf %131, %124 : vector<8x128xf32>
    %133 = vector.extract_strided_slice %127 {offsets = [0, 1], sizes = [8, 1], strides = [1, 1]} : vector<8x8xf32> to vector<8x1xf32>
    %134 = vector.broadcast %133 : vector<8x1xf32> to vector<8x128xf32>
    %135 = arith.mulf %134, %124 : vector<8x128xf32>
    %136 = tpu.concatenate %132, %135 in 1 : vector<8x128xf32>, vector<8x128xf32> -> vector<8x256xf32>
    %137 = arith.truncf %136 : vector<8x256xf32> to vector<8x256xbf16>
    %cst_67 = arith.constant dense<0.000000e+00> : vector<8x128xf32>
    %138 = tpu.matmul %137, %129, %cst_67 {dimension_numbers = #tpu.dot_dimension_numbers<[1], [0], [0], [1], [0, 0, 1, 1], [], []>} : vector<8x256xbf16>, vector<256x128xbf16>, vector<8x128xf32> -> vector<8x128xf32>
    %139 = arith.addf %124, %138 : vector<8x128xf32>
    %c10 = arith.constant 10 : index
    %c0_68 = arith.constant 0 : index
    %c0_69 = arith.constant 0 : index
    %140 = vector.load %arg1[%c10, %c0_68, %c0_69] : memref<16x8x8xbf16, #tpu.memory_space<vmem>>, vector<1x8x8xbf16>
    %141 = vector.shape_cast %140 : vector<1x8x8xbf16> to vector<8x8xbf16>
    %142 = arith.extf %141 : vector<8x8xbf16> to vector<8x8xf32>
    %c9_70 = arith.constant 9 : index
    %c0_71 = arith.constant 0 : index
    %c0_72 = arith.constant 0 : index
    %c0_73 = arith.constant 0 : index
    %143 = vector.load %arg3[%c9_70, %c0_71, %c0_72, %c0_73] : memref<14x1x256x128xbf16, #tpu.memory_space<vmem>>, vector<1x1x256x128xbf16>
    %144 = vector.shape_cast %143 : vector<1x1x256x128xbf16> to vector<256x128xbf16>
    %145 = vector.extract_strided_slice %142 {offsets = [0, 0], sizes = [8, 1], strides = [1, 1]} : vector<8x8xf32> to vector<8x1xf32>
    %146 = vector.broadcast %145 : vector<8x1xf32> to vector<8x128xf32>
    %147 = arith.mulf %146, %139 : vector<8x128xf32>
    %148 = vector.extract_strided_slice %142 {offsets = [0, 1], sizes = [8, 1], strides = [1, 1]} : vector<8x8xf32> to vector<8x1xf32>
    %149 = vector.broadcast %148 : vector<8x1xf32> to vector<8x128xf32>
    %150 = arith.mulf %149, %139 : vector<8x128xf32>
    %151 = tpu.concatenate %147, %150 in 1 : vector<8x128xf32>, vector<8x128xf32> -> vector<8x256xf32>
    %152 = arith.truncf %151 : vector<8x256xf32> to vector<8x256xbf16>
    %cst_74 = arith.constant dense<0.000000e+00> : vector<8x128xf32>
    %153 = tpu.matmul %152, %144, %cst_74 {dimension_numbers = #tpu.dot_dimension_numbers<[1], [0], [0], [1], [0, 0, 1, 1], [], []>} : vector<8x256xbf16>, vector<256x128xbf16>, vector<8x128xf32> -> vector<8x128xf32>
    %154 = arith.addf %139, %153 : vector<8x128xf32>
    %c11 = arith.constant 11 : index
    %c0_75 = arith.constant 0 : index
    %c0_76 = arith.constant 0 : index
    %155 = vector.load %arg1[%c11, %c0_75, %c0_76] : memref<16x8x8xbf16, #tpu.memory_space<vmem>>, vector<1x8x8xbf16>
    %156 = vector.shape_cast %155 : vector<1x8x8xbf16> to vector<8x8xbf16>
    %157 = arith.extf %156 : vector<8x8xbf16> to vector<8x8xf32>
    %c10_77 = arith.constant 10 : index
    %c0_78 = arith.constant 0 : index
    %c0_79 = arith.constant 0 : index
    %c0_80 = arith.constant 0 : index
    %158 = vector.load %arg3[%c10_77, %c0_78, %c0_79, %c0_80] : memref<14x1x256x128xbf16, #tpu.memory_space<vmem>>, vector<1x1x256x128xbf16>
    %159 = vector.shape_cast %158 : vector<1x1x256x128xbf16> to vector<256x128xbf16>
    %160 = vector.extract_strided_slice %157 {offsets = [0, 0], sizes = [8, 1], strides = [1, 1]} : vector<8x8xf32> to vector<8x1xf32>
    %161 = vector.broadcast %160 : vector<8x1xf32> to vector<8x128xf32>
    %162 = arith.mulf %161, %154 : vector<8x128xf32>
    %163 = vector.extract_strided_slice %157 {offsets = [0, 1], sizes = [8, 1], strides = [1, 1]} : vector<8x8xf32> to vector<8x1xf32>
    %164 = vector.broadcast %163 : vector<8x1xf32> to vector<8x128xf32>
    %165 = arith.mulf %164, %154 : vector<8x128xf32>
    %166 = tpu.concatenate %162, %165 in 1 : vector<8x128xf32>, vector<8x128xf32> -> vector<8x256xf32>
    %167 = arith.truncf %166 : vector<8x256xf32> to vector<8x256xbf16>
    %cst_81 = arith.constant dense<0.000000e+00> : vector<8x128xf32>
    %168 = tpu.matmul %167, %159, %cst_81 {dimension_numbers = #tpu.dot_dimension_numbers<[1], [0], [0], [1], [0, 0, 1, 1], [], []>} : vector<8x256xbf16>, vector<256x128xbf16>, vector<8x128xf32> -> vector<8x128xf32>
    %169 = arith.addf %154, %168 : vector<8x128xf32>
    %c12 = arith.constant 12 : index
    %c0_82 = arith.constant 0 : index
    %c0_83 = arith.constant 0 : index
    %170 = vector.load %arg1[%c12, %c0_82, %c0_83] : memref<16x8x8xbf16, #tpu.memory_space<vmem>>, vector<1x8x8xbf16>
    %171 = vector.shape_cast %170 : vector<1x8x8xbf16> to vector<8x8xbf16>
    %172 = arith.extf %171 : vector<8x8xbf16> to vector<8x8xf32>
    %c11_84 = arith.constant 11 : index
    %c0_85 = arith.constant 0 : index
    %c0_86 = arith.constant 0 : index
    %c0_87 = arith.constant 0 : index
    %173 = vector.load %arg3[%c11_84, %c0_85, %c0_86, %c0_87] : memref<14x1x256x128xbf16, #tpu.memory_space<vmem>>, vector<1x1x256x128xbf16>
    %174 = vector.shape_cast %173 : vector<1x1x256x128xbf16> to vector<256x128xbf16>
    %175 = vector.extract_strided_slice %172 {offsets = [0, 0], sizes = [8, 1], strides = [1, 1]} : vector<8x8xf32> to vector<8x1xf32>
    %176 = vector.broadcast %175 : vector<8x1xf32> to vector<8x128xf32>
    %177 = arith.mulf %176, %169 : vector<8x128xf32>
    %178 = vector.extract_strided_slice %172 {offsets = [0, 1], sizes = [8, 1], strides = [1, 1]} : vector<8x8xf32> to vector<8x1xf32>
    %179 = vector.broadcast %178 : vector<8x1xf32> to vector<8x128xf32>
    %180 = arith.mulf %179, %169 : vector<8x128xf32>
    %181 = tpu.concatenate %177, %180 in 1 : vector<8x128xf32>, vector<8x128xf32> -> vector<8x256xf32>
    %182 = arith.truncf %181 : vector<8x256xf32> to vector<8x256xbf16>
    %cst_88 = arith.constant dense<0.000000e+00> : vector<8x128xf32>
    %183 = tpu.matmul %182, %174, %cst_88 {dimension_numbers = #tpu.dot_dimension_numbers<[1], [0], [0], [1], [0, 0, 1, 1], [], []>} : vector<8x256xbf16>, vector<256x128xbf16>, vector<8x128xf32> -> vector<8x128xf32>
    %184 = arith.addf %169, %183 : vector<8x128xf32>
    %c13 = arith.constant 13 : index
    %c0_89 = arith.constant 0 : index
    %c0_90 = arith.constant 0 : index
    %185 = vector.load %arg1[%c13, %c0_89, %c0_90] : memref<16x8x8xbf16, #tpu.memory_space<vmem>>, vector<1x8x8xbf16>
    %186 = vector.shape_cast %185 : vector<1x8x8xbf16> to vector<8x8xbf16>
    %187 = arith.extf %186 : vector<8x8xbf16> to vector<8x8xf32>
    %c12_91 = arith.constant 12 : index
    %c0_92 = arith.constant 0 : index
    %c0_93 = arith.constant 0 : index
    %c0_94 = arith.constant 0 : index
    %188 = vector.load %arg3[%c12_91, %c0_92, %c0_93, %c0_94] : memref<14x1x256x128xbf16, #tpu.memory_space<vmem>>, vector<1x1x256x128xbf16>
    %189 = vector.shape_cast %188 : vector<1x1x256x128xbf16> to vector<256x128xbf16>
    %190 = vector.extract_strided_slice %187 {offsets = [0, 0], sizes = [8, 1], strides = [1, 1]} : vector<8x8xf32> to vector<8x1xf32>
    %191 = vector.broadcast %190 : vector<8x1xf32> to vector<8x128xf32>
    %192 = arith.mulf %191, %184 : vector<8x128xf32>
    %193 = vector.extract_strided_slice %187 {offsets = [0, 1], sizes = [8, 1], strides = [1, 1]} : vector<8x8xf32> to vector<8x1xf32>
    %194 = vector.broadcast %193 : vector<8x1xf32> to vector<8x128xf32>
    %195 = arith.mulf %194, %184 : vector<8x128xf32>
    %196 = tpu.concatenate %192, %195 in 1 : vector<8x128xf32>, vector<8x128xf32> -> vector<8x256xf32>
    %197 = arith.truncf %196 : vector<8x256xf32> to vector<8x256xbf16>
    %cst_95 = arith.constant dense<0.000000e+00> : vector<8x128xf32>
    %198 = tpu.matmul %197, %189, %cst_95 {dimension_numbers = #tpu.dot_dimension_numbers<[1], [0], [0], [1], [0, 0, 1, 1], [], []>} : vector<8x256xbf16>, vector<256x128xbf16>, vector<8x128xf32> -> vector<8x128xf32>
    %199 = arith.addf %184, %198 : vector<8x128xf32>
    %c14 = arith.constant 14 : index
    %c0_96 = arith.constant 0 : index
    %c0_97 = arith.constant 0 : index
    %200 = vector.load %arg1[%c14, %c0_96, %c0_97] : memref<16x8x8xbf16, #tpu.memory_space<vmem>>, vector<1x8x8xbf16>
    %201 = vector.shape_cast %200 : vector<1x8x8xbf16> to vector<8x8xbf16>
    %202 = arith.extf %201 : vector<8x8xbf16> to vector<8x8xf32>
    %c13_98 = arith.constant 13 : index
    %c0_99 = arith.constant 0 : index
    %c0_100 = arith.constant 0 : index
    %c0_101 = arith.constant 0 : index
    %203 = vector.load %arg3[%c13_98, %c0_99, %c0_100, %c0_101] : memref<14x1x256x128xbf16, #tpu.memory_space<vmem>>, vector<1x1x256x128xbf16>
    %204 = vector.shape_cast %203 : vector<1x1x256x128xbf16> to vector<256x128xbf16>
    %205 = vector.extract_strided_slice %202 {offsets = [0, 0], sizes = [8, 1], strides = [1, 1]} : vector<8x8xf32> to vector<8x1xf32>
    %206 = vector.broadcast %205 : vector<8x1xf32> to vector<8x128xf32>
    %207 = arith.mulf %206, %199 : vector<8x128xf32>
    %208 = vector.extract_strided_slice %202 {offsets = [0, 1], sizes = [8, 1], strides = [1, 1]} : vector<8x8xf32> to vector<8x1xf32>
    %209 = vector.broadcast %208 : vector<8x1xf32> to vector<8x128xf32>
    %210 = arith.mulf %209, %199 : vector<8x128xf32>
    %211 = tpu.concatenate %207, %210 in 1 : vector<8x128xf32>, vector<8x128xf32> -> vector<8x256xf32>
    %212 = arith.truncf %211 : vector<8x256xf32> to vector<8x256xbf16>
    %cst_102 = arith.constant dense<0.000000e+00> : vector<8x128xf32>
    %213 = tpu.matmul %212, %204, %cst_102 {dimension_numbers = #tpu.dot_dimension_numbers<[1], [0], [0], [1], [0, 0, 1, 1], [], []>} : vector<8x256xbf16>, vector<256x128xbf16>, vector<8x128xf32> -> vector<8x128xf32>
    %214 = arith.addf %199, %213 : vector<8x128xf32>
    %c15 = arith.constant 15 : index
    %c0_103 = arith.constant 0 : index
    %c0_104 = arith.constant 0 : index
    %215 = vector.load %arg1[%c15, %c0_103, %c0_104] : memref<16x8x8xbf16, #tpu.memory_space<vmem>>, vector<1x8x8xbf16>
    %216 = vector.shape_cast %215 : vector<1x8x8xbf16> to vector<8x8xbf16>
    %217 = arith.extf %216 : vector<8x8xbf16> to vector<8x8xf32>
    %218 = vector.extract_strided_slice %217 {offsets = [0, 0], sizes = [8, 1], strides = [1, 1]} : vector<8x8xf32> to vector<8x1xf32>
    %219 = vector.broadcast %218 : vector<8x1xf32> to vector<8x128xf32>
    %220 = arith.mulf %219, %214 : vector<8x128xf32>
    %221 = vector.extract_strided_slice %217 {offsets = [0, 1], sizes = [8, 1], strides = [1, 1]} : vector<8x8xf32> to vector<8x1xf32>
    %222 = vector.broadcast %221 : vector<8x1xf32> to vector<8x128xf32>
    %223 = arith.mulf %222, %214 : vector<8x128xf32>
    %224 = tpu.concatenate %214, %220, %223 in 1 : vector<8x128xf32>, vector<8x128xf32>, vector<8x128xf32> -> vector<8x384xf32>
    %225 = arith.truncf %224 : vector<8x384xf32> to vector<8x384xbf16>
    %c0_105 = arith.constant 0 : index
    %c0_106 = arith.constant 0 : index
    %c0_107 = arith.constant 0 : index
    %226 = vector.load %arg4[%c0_105, %c0_106, %c0_107] : memref<1x384x128xbf16, #tpu.memory_space<vmem>>, vector<1x384x128xbf16>
    %227 = vector.shape_cast %226 : vector<1x384x128xbf16> to vector<384x128xbf16>
    %cst_108 = arith.constant dense<0.000000e+00> : vector<8x128xf32>
    %228 = tpu.matmul %225, %227, %cst_108 {dimension_numbers = #tpu.dot_dimension_numbers<[1], [0], [0], [1], [0, 0, 1, 1], [], []>} : vector<8x384xbf16>, vector<384x128xbf16>, vector<8x128xf32> -> vector<8x128xf32>
    %c0_109 = arith.constant 0 : index
    %c0_110 = arith.constant 0 : index
    %c0_111 = arith.constant 0 : index
    %229 = vector.load %arg5[%c0_109, %c0_110, %c0_111] : memref<1x8x128xf32, #tpu.memory_space<vmem>>, vector<1x8x128xf32>
    %230 = vector.shape_cast %229 : vector<1x8x128xf32> to vector<8x128xf32>
    %231 = vector.shape_cast %228 : vector<8x128xf32> to vector<1x8x128xf32>
    tpu.vector_store %arg5[%c0_109, %c0_110, %c0_111], %231 {strides = array<i32>} : memref<1x8x128xf32, #tpu.memory_space<vmem>>, vector<1x8x128xf32>,
    return
  }
  func.func @transform_0(%arg0: i32) -> (i32, i32, i32) {
    %c0_i32 = arith.constant 0 : i32
    %c0_i32_0 = arith.constant 0 : i32
    %c0_i32_1 = arith.constant 0 : i32
    return %c0_i32, %arg0, %c0_i32_0 : i32, i32, i32
  }
  func.func @transform_1(%arg0: i32) -> (i32, i32, i32) {
    %c0_i32 = arith.constant 0 : i32
    %c0_i32_0 = arith.constant 0 : i32
    %c0_i32_1 = arith.constant 0 : i32
    %c0_i32_2 = arith.constant 0 : i32
    return %c0_i32, %c0_i32_0, %c0_i32_1 : i32, i32, i32
  }
  func.func @transform_2(%arg0: i32) -> (i32, i32, i32, i32) {
    %c0_i32 = arith.constant 0 : i32
    %c0_i32_0 = arith.constant 0 : i32
    %c0_i32_1 = arith.constant 0 : i32
    %c0_i32_2 = arith.constant 0 : i32
    %c0_i32_3 = arith.constant 0 : i32
    return %c0_i32, %c0_i32_0, %c0_i32_1, %c0_i32_2 : i32, i32, i32, i32
  }
  func.func @transform_3(%arg0: i32) -> (i32, i32, i32) {
    %c0_i32 = arith.constant 0 : i32
    %c0_i32_0 = arith.constant 0 : i32
    %c0_i32_1 = arith.constant 0 : i32
    %c0_i32_2 = arith.constant 0 : i32
    return %c0_i32, %c0_i32_0, %c0_i32_1 : i32, i32, i32
  }
  func.func @transform_4(%arg0: i32) -> (i32, i32, i32) {
    %c0_i32 = arith.constant 0 : i32
    %c0_i32_0 = arith.constant 0 : i32
    %c0_i32_1 = arith.constant 0 : i32
    return %c0_i32, %arg0, %c0_i32_0 : i32, i32, i32
  }
}

</mosaic_0001>

<llo_original>
// kernel: tpu_custom_call.1
$region0: #{tpu_custom_call.1}
  #allocation0 [shape = 'u32[]', space=smem, size = 0x4, offset = 0x4, fixed_abs, tag = 'smem constant byte address 0x4 - core index']
  #allocation1 [shape = 'u32[144,128]{1,0:T(1,128)}', space=vmem, size = 0x12000, scoped, tag = 'internal scratch']
  %s0 = inlined_call_operand.vmem [shape: bf16[16,8,8], index: 0, kind: input, shape index: {}]
  %s1 = inlined_call_operand.vmem [shape: bf16[1,8,128], index: 1, kind: input, shape index: {}]
  %s2 = inlined_call_operand.hbm [shape: bf16[14,1,256,128], index: 2, kind: input, shape index: {}]
  %s3 = inlined_call_operand.hbm [shape: bf16[1,384,128], index: 3, kind: input, shape index: {}]
  %s4 = inlined_call_operand.hbm [shape: f32[1,8,128], index: 4, kind: output, shape index: {}]
  %s5 = sld [smem:[#allocation0]]
  $region34: #{tpu_custom_call.1} parent=0
    _
  %s7 = ssub.s32 1, %s5
  %s8 = scalar_select 0, %s7, %s5
  $region1: #{tpu_custom_call.1} parent=0
    #allocation2 [shape = 'u8[917504]{0}', space=vmem, size = 0xe0000, scoped, tag = 'input window, operand 2, single buffered']
    #allocation3 [shape = 's32[1]{0}', space=sflag, size = 0x4, scoped, tag = 'scoped memory for tpu_custom_call.1']
    #allocation4 [shape = 's32[1]{0}', space=sflag, size = 0x4, scoped, tag = 'scoped memory for tpu_custom_call.1']
    #allocation5 [shape = 'u8[98304]{0}', space=vmem, size = 0x18000, scoped, tag = 'input window, operand 3, single buffered']
    #allocation6 [shape = 's32[1]{0}', space=sflag, size = 0x4, scoped, tag = 'scoped memory for tpu_custom_call.1']
    #allocation7 [shape = 'u8[4096]{0}', space=vmem, size = 0x1000, scoped, tag = 'output window, operand 0, single buffered']
    %9 = vsyncpa [#allocation3], 0
    %10 = vsyncpa [#allocation6], 0
    %11 = vsyncpa [#allocation4], 0
    // Predicated region
    $region2: #{tpu_custom_call.1} parent=1 // pred_check
      _
    $region3: #{tpu_custom_call.1} parent=1 // pred_check_branch
      %13 = sbr.rel (0) target = $region5
    $region4: #{tpu_custom_call.1} parent=1 // pred_region
      _
    $region5: #{tpu_custom_call.1} parent=1 // pred_fallthru
      _
    // Predicated region
    $region6: #{tpu_custom_call.1} parent=1 // pred_check
      _
    $region7: #{tpu_custom_call.1} parent=1 // pred_check_branch
      %15 = sbr.rel (0) target = $region9
    $region8: #{tpu_custom_call.1} parent=1 // pred_region
      _
    $region9: #{tpu_custom_call.1} parent=1 // pred_fallthru
      _
    // Predicated region
    $region10: #{tpu_custom_call.1} parent=1 // pred_check
      _
    $region11: #{tpu_custom_call.1} parent=1 // pred_check_branch
      %17 = sbr.rel (0) target = $region13
    $region12: #{tpu_custom_call.1} parent=1 // pred_region
      %s19 = ssub.s32 28672, 28672
      %20 = vsyncadd [#allocation3], %s19
      %s21 = sshll.u32 [#allocation2], 4
      %s22 = int_to_ptr.vmem [resolvable:$true] %s21
      %27 = dma.hbm_to_vmem [thread:$0]  %s2, 28672, %s22, [#allocation3], 64, 64, 4
    $region13: #{tpu_custom_call.1} parent=1 // pred_fallthru
      _
    // Predicated region
    $region14: #{tpu_custom_call.1} parent=1 // pred_check
      _
    $region15: #{tpu_custom_call.1} parent=1 // pred_check_branch
      %29 = sbr.rel (0) target = $region17
    $region16: #{tpu_custom_call.1} parent=1 // pred_region
      %s31 = ssub.s32 3072, 3072
      %32 = vsyncadd [#allocation6], %s31
      %s33 = sshll.u32 [#allocation5], 4
      %s34 = int_to_ptr.vmem [resolvable:$true] %s33
      %39 = dma.hbm_to_vmem [thread:$0]  %s3, 3072, %s34, [#allocation6], 64, 64, 4
    $region17: #{tpu_custom_call.1} parent=1 // pred_fallthru
      _
    // Predicated region
    $region18: #{tpu_custom_call.1} parent=1 // pred_check
      _
    $region19: #{tpu_custom_call.1} parent=1 // pred_check_branch
      %41 = sbr.rel (0) target = $region21
    $region20: #{tpu_custom_call.1} parent=1 // pred_region
      %42 = dma.done [#allocation3], 28672
    $region21: #{tpu_custom_call.1} parent=1 // pred_fallthru
      _
    // Predicated region
    $region22: #{tpu_custom_call.1} parent=1 // pred_check
      _
    $region23: #{tpu_custom_call.1} parent=1 // pred_check_branch
      %44 = sbr.rel (0) target = $region25
    $region24: #{tpu_custom_call.1} parent=1 // pred_region
      %45 = dma.done [#allocation6], 3072
    $region25: #{tpu_custom_call.1} parent=1 // pred_fallthru
      _
    %v47 = vld [vmem:[%s0] sm:$0xf]
    %v48 = vld [vmem:[%s1] sm:$0xf]
    %vm49 = vcmask 64512
    %v51 = vsel %vm49, %v47, 0
    %vm53 = vcmask 1043456
    %v55 = vsel %vm53, %v48, 0
    %57 = vmatprep.subr.bf16.mxu0 0
    %58 = vmatpush1.bf16.msra.mxu0 %v55
    %59 = vmatprep.subr.bf16.mxu0 0
    %60 = vmatpush1.bf16.msra.mxu0 0
    %61 = vmatprep.subr.bf16.mxu0 0
    %62 = vmatpush1.bf16.msra.mxu0 0
    %63 = vmatprep.subr.bf16.mxu0 0
    %64 = vmatpush1.bf16.msra.mxu0 0
    %65 = vmatprep.subr.bf16.mxu0 0
    %66 = vmatpush1.bf16.msra.mxu0 0
    %67 = vmatprep.subr.bf16.mxu0 0
    %68 = vmatpush1.bf16.msra.mxu0 0
    %69 = vmatprep.subr.bf16.mxu0 0
    %70 = vmatpush1.bf16.msra.mxu0 0
    %71 = vmatprep.subr.bf16.mxu0 0
    %72 = vmatpush1.bf16.msra.mxu0 0
    %73 = vmatprep.subr.bf16.mxu0 0
    %74 = vmatpush1.bf16.msra.mxu0 0
    %75 = vmatprep.subr.bf16.mxu0 0
    %76 = vmatpush1.bf16.msra.mxu0 0
    %77 = vmatprep.subr.bf16.mxu0 0
    %78 = vmatpush1.bf16.msra.mxu0 0
    %79 = vmatprep.subr.bf16.mxu0 0
    %80 = vmatpush1.bf16.msra.mxu0 0
    %81 = vmatprep.subr.bf16.mxu0 0
    %82 = vmatpush1.bf16.msra.mxu0 0
    %83 = vmatprep.subr.bf16.mxu0 0
    %84 = vmatpush1.bf16.msra.mxu0 0
    %85 = vmatprep.subr.bf16.mxu0 0
    %86 = vmatpush1.bf16.msra.mxu0 0
    %87 = vmatprep.subr.bf16.mxu0 0
    %88 = vmatpush1.bf16.msra.mxu0 0
    %89 = vmatprep.mubr.bf16.mxu0 0
    %90 = vmatmul.mubr.bf16.gmra.mrb[0].mxu0 %v51
    %v91 = vpop.f32.mrb[0].mxu0
    %v92 = vadd.f32 0.0, %v91
    %v93 = vpop.f32.mrb[0].mxu0
    %v94 = vpop.f32.mrb[0].mxu0
    %v95 = vpop.f32.mrb[0].mxu0
    %96 = vdwg.mxu0
    %s97 = scalar_lea.vmem %s0, 4
    %v98 = vld [vmem:[%s97] sm:$0xf]
    %v99 = vunpack.c.l.bf16 %v98
    %v100 = vld [vmem:[#allocation2] sm:$0xf]
    %v101 = vld [vmem:[#allocation2 + $0x4] sm:$0xf]
    %v102 = vld [vmem:[#allocation2 + $0x8] sm:$0xf]
    %v103 = vld [vmem:[#allocation2 + $0xc] sm:$0xf]
    %v104 = vld [vmem:[#allocation2 + $0x10] sm:$0xf]
    %v105 = vld [vmem:[#allocation2 + $0x14] sm:$0xf]
    %v106 = vld [vmem:[#allocation2 + $0x18] sm:$0xf]
    %v107 = vld [vmem:[#allocation2 + $0x1c] sm:$0xf]
    %v108 = vld [vmem:[#allocation2 + $0x20] sm:$0xf]
    %v109 = vld [vmem:[#allocation2 + $0x24] sm:$0xf]
    %v110 = vld [vmem:[#allocation2 + $0x28] sm:$0xf]
    %v111 = vld [vmem:[#allocation2 + $0x2c] sm:$0xf]
    %v112 = vld [vmem:[#allocation2 + $0x30] sm:$0xf]
    %v113 = vld [vmem:[#allocation2 + $0x34] sm:$0xf]
    %v114 = vld [vmem:[#allocation2 + $0x38] sm:$0xf]
    %v115 = vld [vmem:[#allocation2 + $0x3c] sm:$0xf]
    %v116 = vld [vmem:[#allocation2 + $0x40] sm:$0xf]
    %v117 = vld [vmem:[#allocation2 + $0x44] sm:$0xf]
    %v118 = vld [vmem:[#allocation2 + $0x48] sm:$0xf]
    %v119 = vld [vmem:[#allocation2 + $0x4c] sm:$0xf]
    %v120 = vld [vmem:[#allocation2 + $0x50] sm:$0xf]
    %v121 = vld [vmem:[#allocation2 + $0x54] sm:$0xf]
    %v122 = vld [vmem:[#allocation2 + $0x58] sm:$0xf]
    %v123 = vld [vmem:[#allocation2 + $0x5c] sm:$0xf]
    %v124 = vld [vmem:[#allocation2 + $0x60] sm:$0xf]
    %v125 = vld [vmem:[#allocation2 + $0x64] sm:$0xf]
    %v126 = vld [vmem:[#allocation2 + $0x68] sm:$0xf]
    %v127 = vld [vmem:[#allocation2 + $0x6c] sm:$0xf]
    %v128 = vld [vmem:[#allocation2 + $0x70] sm:$0xf]
    %v129 = vld [vmem:[#allocation2 + $0x74] sm:$0xf]
    %v130 = vld [vmem:[#allocation2 + $0x78] sm:$0xf]
    %v131 = vld [vmem:[#allocation2 + $0x7c] sm:$0xf]
    %133 = vset.pattern.permute.xlu0 0
    %134 = vperm.xlu0 %133, %v99
    %v135 = vpop.permute.xlu0 %134
    %v137 = vmul.f32 %v135, %v92
    %138 = vset.pattern.permute.xlu0 1
    %139 = vperm.xlu0 %138, %v99
    %v140 = vpop.permute.xlu0 %139
    %v142 = vmul.f32 %v140, %v92
    %v143 = vpack.c.bf16 %v137, %v137
    %v144 = vpack.c.bf16 %v142, %v142
    %v177 = vunpack.c.l.b16 %v100
    %v178 = vunpack.c.l.b16 %v101
    %v179 = vunpack.c.l.b16 %v102
    %v180 = vunpack.c.l.b16 %v103
    %v181 = vunpack.c.l.b16 %v104
    %v182 = vunpack.c.l.b16 %v105
    %v183 = vunpack.c.l.b16 %v106
    %v184 = vunpack.c.l.b16 %v107
    %v185 = vunpack.c.l.b16 %v108
    %v186 = vunpack.c.l.b16 %v109
    %v187 = vunpack.c.l.b16 %v110
    %v188 = vunpack.c.l.b16 %v111
    %v189 = vunpack.c.l.b16 %v112
    %v190 = vunpack.c.l.b16 %v113
    %v191 = vunpack.c.l.b16 %v114
    %v192 = vunpack.c.l.b16 %v115
    %v193 = vunpack.c.l.b16 %v116
    %v194 = vunpack.c.l.b16 %v117
    %v195 = vunpack.c.l.b16 %v118
    %v196 = vunpack.c.l.b16 %v119
    %v197 = vunpack.c.l.b16 %v120
    %v198 = vunpack.c.l.b16 %v121
    %v199 = vunpack.c.l.b16 %v122
    %v200 = vunpack.c.l.b16 %v123
    %v201 = vunpack.c.l.b16 %v124
    %v202 = vunpack.c.l.b16 %v125
    %v203 = vunpack.c.l.b16 %v126
    %v204 = vunpack.c.l.b16 %v127
    %v205 = vunpack.c.l.b16 %v128
    %v206 = vunpack.c.l.b16 %v129
    %v207 = vunpack.c.l.b16 %v130
    %v208 = vunpack.c.l.b16 %v131
    %v209 = vpack.c.b16 %v178, %v177
    %v210 = vpack.c.b16 %v180, %v179
    %v211 = vpack.c.b16 %v182, %v181
    %v212 = vpack.c.b16 %v184, %v183
    %v213 = vpack.c.b16 %v186, %v185
    %v214 = vpack.c.b16 %v188, %v187
    %v215 = vpack.c.b16 %v190, %v189
    %v216 = vpack.c.b16 %v192, %v191
    %v217 = vpack.c.b16 %v194, %v193
    %v218 = vpack.c.b16 %v196, %v195
    %v219 = vpack.c.b16 %v198, %v197
    %v220 = vpack.c.b16 %v200, %v199
    %v221 = vpack.c.b16 %v202, %v201
    %v222 = vpack.c.b16 %v204, %v203
    %v223 = vpack.c.b16 %v206, %v205
    %v224 = vpack.c.b16 %v208, %v207
    %241 = vmatprep.subr.bf16.mxu0 0
    %242 = vmatpush1.bf16.msra.mxu0 %v209
    %243 = vmatprep.subr.bf16.mxu0 0
    %244 = vmatpush1.bf16.msra.mxu0 %v210
    %245 = vmatprep.subr.bf16.mxu0 0
    %246 = vmatpush1.bf16.msra.mxu0 %v211
    %247 = vmatprep.subr.bf16.mxu0 0
    %248 = vmatpush1.bf16.msra.mxu0 %v212
    %249 = vmatprep.subr.bf16.mxu0 0
    %250 = vmatpush1.bf16.msra.mxu0 %v213
    %251 = vmatprep.subr.bf16.mxu0 0
    %252 = vmatpush1.bf16.msra.mxu0 %v214
    %253 = vmatprep.subr.bf16.mxu0 0
    %254 = vmatpush1.bf16.msra.mxu0 %v215
    %255 = vmatprep.subr.bf16.mxu0 0
    %256 = vmatpush1.bf16.msra.mxu0 %v216
    %257 = vmatprep.subr.bf16.mxu0 0
    %258 = vmatpush1.bf16.msra.mxu0 %v217
    %259 = vmatprep.subr.bf16.mxu0 0
    %260 = vmatpush1.bf16.msra.mxu0 %v218
    %261 = vmatprep.subr.bf16.mxu0 0
    %262 = vmatpush1.bf16.msra.mxu0 %v219
    %263 = vmatprep.subr.bf16.mxu0 0
    %264 = vmatpush1.bf16.msra.mxu0 %v220
    %265 = vmatprep.subr.bf16.mxu0 0
    %266 = vmatpush1.bf16.msra.mxu0 %v221
    %267 = vmatprep.subr.bf16.mxu0 0
    %268 = vmatpush1.bf16.msra.mxu0 %v222
    %269 = vmatprep.subr.bf16.mxu0 0
    %270 = vmatpush1.bf16.msra.mxu0 %v223
    %271 = vmatprep.subr.bf16.mxu0 0
    %272 = vmatpush1.bf16.msra.mxu0 %v224
    %273 = vmatprep.mubr.bf16.mxu0 %v144
    %274 = vmatmul.mubr.bf16.gmra.mrb[0].mxu0 %v143
    %v275 = vpop.f32.mrb[0].mxu0
    %v276 = vadd.f32 0.0, %v275
    %v277 = vpop.f32.mrb[0].mxu0
    %v278 = vpop.f32.mrb[0].mxu0
    %v279 = vpop.f32.mrb[0].mxu0
    %280 = vdwg.mxu0
    %v281 = vadd.f32 %v92, %v276
    %s282 = scalar_lea.vmem %s0, 8
    %v283 = vld [vmem:[%s282] sm:$0xf]
    %v284 = vunpack.c.l.bf16 %v283
    %s285 = scalar_lea.vmem [#allocation2], 128
    %v286 = vld [vmem:[%s285] sm:$0xf]
    %v287 = vld [vmem:[%s285 + $0x4] sm:$0xf]
    %v288 = vld [vmem:[%s285 + $0x8] sm:$0xf]
    %v289 = vld [vmem:[%s285 + $0xc] sm:$0xf]
    %v290 = vld [vmem:[%s285 + $0x10] sm:$0xf]
    %v291 = vld [vmem:[%s285 + $0x14] sm:$0xf]
    %v292 = vld [vmem:[%s285 + $0x18] sm:$0xf]
    %v293 = vld [vmem:[%s285 + $0x1c] sm:$0xf]
    %v294 = vld [vmem:[%s285 + $0x20] sm:$0xf]
    %v295 = vld [vmem:[%s285 + $0x24] sm:$0xf]
    %v296 = vld [vmem:[%s285 + $0x28] sm:$0xf]
    %v297 = vld [vmem:[%s285 + $0x2c] sm:$0xf]
    %v298 = vld [vmem:[%s285 + $0x30] sm:$0xf]
    %v299 = vld [vmem:[%s285 + $0x34] sm:$0xf]
    %v300 = vld [vmem:[%s285 + $0x38] sm:$0xf]
    %v301 = vld [vmem:[%s285 + $0x3c] sm:$0xf]
    %v302 = vld [vmem:[%s285 + $0x40] sm:$0xf]
    %v303 = vld [vmem:[%s285 + $0x44] sm:$0xf]
    %v304 = vld [vmem:[%s285 + $0x48] sm:$0xf]
    %v305 = vld [vmem:[%s285 + $0x4c] sm:$0xf]
    %v306 = vld [vmem:[%s285 + $0x50] sm:$0xf]
    %v307 = vld [vmem:[%s285 + $0x54] sm:$0xf]
    %v308 = vld [vmem:[%s285 + $0x58] sm:$0xf]
    %v309 = vld [vmem:[%s285 + $0x5c] sm:$0xf]
    %v310 = vld [vmem:[%s285 + $0x60] sm:$0xf]
    %v311 = vld [vmem:[%s285 + $0x64] sm:$0xf]
    %v312 = vld [vmem:[%s285 + $0x68] sm:$0xf]
    %v313 = vld [vmem:[%s285 + $0x6c] sm:$0xf]
    %v314 = vld [vmem:[%s285 + $0x70] sm:$0xf]
    %v315 = vld [vmem:[%s285 + $0x74] sm:$0xf]
    %v316 = vld [vmem:[%s285 + $0x78] sm:$0xf]
    %v317 = vld [vmem:[%s285 + $0x7c] sm:$0xf]
    %319 = vset.pattern.permute.xlu0 0
    %320 = vperm.xlu0 %319, %v284
    %v321 = vpop.permute.xlu0 %320
    %v323 = vmul.f32 %v321, %v281
    %324 = vset.pattern.permute.xlu0 1
    %325 = vperm.xlu0 %324, %v284
    %v326 = vpop.permute.xlu0 %325
    %v328 = vmul.f32 %v326, %v281
    %v329 = vpack.c.bf16 %v323, %v323
    %v330 = vpack.c.bf16 %v328, %v328
    %v363 = vunpack.c.l.b16 %v286
    %v364 = vunpack.c.l.b16 %v287
    %v365 = vunpack.c.l.b16 %v288
    %v366 = vunpack.c.l.b16 %v289
    %v367 = vunpack.c.l.b16 %v290
    %v368 = vunpack.c.l.b16 %v291
    %v369 = vunpack.c.l.b16 %v292
    %v370 = vunpack.c.l.b16 %v293
    %v371 = vunpack.c.l.b16 %v294
    %v372 = vunpack.c.l.b16 %v295
    %v373 = vunpack.c.l.b16 %v296
    %v374 = vunpack.c.l.b16 %v297
    %v375 = vunpack.c.l.b16 %v298
    %v376 = vunpack.c.l.b16 %v299
    %v377 = vunpack.c.l.b16 %v300
    %v378 = vunpack.c.l.b16 %v301
    %v379 = vunpack.c.l.b16 %v302
    %v380 = vunpack.c.l.b16 %v303
    %v381 = vunpack.c.l.b16 %v304
    %v382 = vunpack.c.l.b16 %v305
    %v383 = vunpack.c.l.b16 %v306
    %v384 = vunpack.c.l.b16 %v307
    %v385 = vunpack.c.l.b16 %v308
    %v386 = vunpack.c.l.b16 %v309
    %v387 = vunpack.c.l.b16 %v310
    %v388 = vunpack.c.l.b16 %v311
    %v389 = vunpack.c.l.b16 %v312
    %v390 = vunpack.c.l.b16 %v313
    %v391 = vunpack.c.l.b16 %v314
    %v392 = vunpack.c.l.b16 %v315
    %v393 = vunpack.c.l.b16 %v316
    %v394 = vunpack.c.l.b16 %v317
    %v395 = vpack.c.b16 %v364, %v363
    %v396 = vpack.c.b16 %v366, %v365
    %v397 = vpack.c.b16 %v368, %v367
    %v398 = vpack.c.b16 %v370, %v369
    %v399 = vpack.c.b16 %v372, %v371
    %v400 = vpack.c.b16 %v374, %v373
    %v401 = vpack.c.b16 %v376, %v375
    %v402 = vpack.c.b16 %v378, %v377
    %v403 = vpack.c.b16 %v380, %v379
    %v404 = vpack.c.b16 %v382, %v381
    %v405 = vpack.c.b16 %v384, %v383
    %v406 = vpack.c.b16 %v386, %v385
    %v407 = vpack.c.b16 %v388, %v387
    %v408 = vpack.c.b16 %v390, %v389
    %v409 = vpack.c.b16 %v392, %v391
    %v410 = vpack.c.b16 %v394, %v393
    %427 = vmatprep.subr.bf16.mxu0 0
    %428 = vmatpush1.bf16.msra.mxu0 %v395
    %429 = vmatprep.subr.bf16.mxu0 0
    %430 = vmatpush1.bf16.msra.mxu0 %v396
    %431 = vmatprep.subr.bf16.mxu0 0
    %432 = vmatpush1.bf16.msra.mxu0 %v397
    %433 = vmatprep.subr.bf16.mxu0 0
    %434 = vmatpush1.bf16.msra.mxu0 %v398
    %435 = vmatprep.subr.bf16.mxu0 0
    %436 = vmatpush1.bf16.msra.mxu0 %v399
    %437 = vmatprep.subr.bf16.mxu0 0
    %438 = vmatpush1.bf16.msra.mxu0 %v400
    %439 = vmatprep.subr.bf16.mxu0 0
    %440 = vmatpush1.bf16.msra.mxu0 %v401
    %441 = vmatprep.subr.bf16.mxu0 0
    %442 = vmatpush1.bf16.msra.mxu0 %v402
    %443 = vmatprep.subr.bf16.mxu0 0
    %444 = vmatpush1.bf16.msra.mxu0 %v403
    %445 = vmatprep.subr.bf16.mxu0 0
    %446 = vmatpush1.bf16.msra.mxu0 %v404
    %447 = vmatprep.subr.bf16.mxu0 0
    %448 = vmatpush1.bf16.msra.mxu0 %v405
    %449 = vmatprep.subr.bf16.mxu0 0
    %450 = vmatpush1.bf16.msra.mxu0 %v406
    %451 = vmatprep.subr.bf16.mxu0 0
    %452 = vmatpush1.bf16.msra.mxu0 %v407
    %453 = vmatprep.subr.bf16.mxu0 0
    %454 = vmatpush1.bf16.msra.mxu0 %v408
    %455 = vmatprep.subr.bf16.mxu0 0
    %456 = vmatpush1.bf16.msra.mxu0 %v409
    %457 = vmatprep.subr.bf16.mxu0 0
    %458 = vmatpush1.bf16.msra.mxu0 %v410
    %459 = vmatprep.mubr.bf16.mxu0 %v330
    %460 = vmatmul.mubr.bf16.gmra.mrb[0].mxu0 %v329
    %v461 = vpop.f32.mrb[0].mxu0
    %v462 = vadd.f32 0.0, %v461
    %v463 = vpop.f32.mrb[0].mxu0
    %v464 = vpop.f32.mrb[0].mxu0
    %v465 = vpop.f32.mrb[0].mxu0
    %466 = vdwg.mxu0
    %v467 = vadd.f32 %v281, %v462
    %s468 = scalar_lea.vmem %s0, 12
    %v469 = vld [vmem:[%s468] sm:$0xf]
    %v470 = vunpack.c.l.bf16 %v469
    %s471 = scalar_lea.vmem [#allocation2], 256
    %v472 = vld [vmem:[%s471] sm:$0xf]
    %v473 = vld [vmem:[%s471 + $0x4] sm:$0xf]
    %v474 = vld [vmem:[%s471 + $0x8] sm:$0xf]
    %v475 = vld [vmem:[%s471 + $0xc] sm:$0xf]
    %v476 = vld [vmem:[%s471 + $0x10] sm:$0xf]
    %v477 = vld [vmem:[%s471 + $0x14] sm:$0xf]
    %v478 = vld [vmem:[%s471 + $0x18] sm:$0xf]
    %v479 = vld [vmem:[%s471 + $0x1c] sm:$0xf]
    %v480 = vld [vmem:[%s471 + $0x20] sm:$0xf]
    %v481 = vld [vmem:[%s471 + $0x24] sm:$0xf]
    %v482 = vld [vmem:[%s471 + $0x28] sm:$0xf]
    %v483 = vld [vmem:[%s471 + $0x2c] sm:$0xf]
    %v484 = vld [vmem:[%s471 + $0x30] sm:$0xf]
    %v485 = vld [vmem:[%s471 + $0x34] sm:$0xf]
    %v486 = vld [vmem:[%s471 + $0x38] sm:$0xf]
    %v487 = vld [vmem:[%s471 + $0x3c] sm:$0xf]
    %v488 = vld [vmem:[%s471 + $0x40] sm:$0xf]
    %v489 = vld [vmem:[%s471 + $0x44] sm:$0xf]
    %v490 = vld [vmem:[%s471 + $0x48] sm:$0xf]
    %v491 = vld [vmem:[%s471 + $0x4c] sm:$0xf]
    %v492 = vld [vmem:[%s471 + $0x50] sm:$0xf]
    %v493 = vld [vmem:[%s471 + $0x54] sm:$0xf]
    %v494 = vld [vmem:[%s471 + $0x58] sm:$0xf]
    %v495 = vld [vmem:[%s471 + $0x5c] sm:$0xf]
    %v496 = vld [vmem:[%s471 + $0x60] sm:$0xf]
    %v497 = vld [vmem:[%s471 + $0x64] sm:$0xf]
    %v498 = vld [vmem:[%s471 + $0x68] sm:$0xf]
    %v499 = vld [vmem:[%s471 + $0x6c] sm:$0xf]
    %v500 = vld [vmem:[%s471 + $0x70] sm:$0xf]
    %v501 = vld [vmem:[%s471 + $0x74] sm:$0xf]
    %v502 = vld [vmem:[%s471 + $0x78] sm:$0xf]
    %v503 = vld [vmem:[%s471 + $0x7c] sm:$0xf]
    %505 = vset.pattern.permute.xlu0 0
    %506 = vperm.xlu0 %505, %v470
    %v507 = vpop.permute.xlu0 %506
    %v509 = vmul.f32 %v507, %v467
    %510 = vset.pattern.permute.xlu0 1
    %511 = vperm.xlu0 %510, %v470
    %v512 = vpop.permute.xlu0 %511
    %v514 = vmul.f32 %v512, %v467
    %v515 = vpack.c.bf16 %v509, %v509
    %v516 = vpack.c.bf16 %v514, %v514
    %v549 = vunpack.c.l.b16 %v472
    %v550 = vunpack.c.l.b16 %v473
    %v551 = vunpack.c.l.b16 %v474
    %v552 = vunpack.c.l.b16 %v475
    %v553 = vunpack.c.l.b16 %v476
    %v554 = vunpack.c.l.b16 %v477
    %v555 = vunpack.c.l.b16 %v478
    %v556 = vunpack.c.l.b16 %v479
    %v557 = vunpack.c.l.b16 %v480
    %v558 = vunpack.c.l.b16 %v481
    %v559 = vunpack.c.l.b16 %v482
    %v560 = vunpack.c.l.b16 %v483
    %v561 = vunpack.c.l.b16 %v484
    %v562 = vunpack.c.l.b16 %v485
    %v563 = vunpack.c.l.b16 %v486
    %v564 = vunpack.c.l.b16 %v487
    %v565 = vunpack.c.l.b16 %v488
    %v566 = vunpack.c.l.b16 %v489
    %v567 = vunpack.c.l.b16 %v490
    %v568 = vunpack.c.l.b16 %v491
    %v569 = vunpack.c.l.b16 %v492
    %v570 = vunpack.c.l.b16 %v493
    %v571 = vunpack.c.l.b16 %v494
    %v572 = vunpack.c.l.b16 %v495
    %v573 = vunpack.c.l.b16 %v496
    %v574 = vunpack.c.l.b16 %v497
    %v575 = vunpack.c.l.b16 %v498
    %v576 = vunpack.c.l.b16 %v499
    %v577 = vunpack.c.l.b16 %v500
    %v578 = vunpack.c.l.b16 %v501
    %v579 = vunpack.c.l.b16 %v502
    %v580 = vunpack.c.l.b16 %v503
    %v581 = vpack.c.b16 %v550, %v549
    %v582 = vpack.c.b16 %v552, %v551
    %v583 = vpack.c.b16 %v554, %v553
    %v584 = vpack.c.b16 %v556, %v555
    %v585 = vpack.c.b16 %v558, %v557
    %v586 = vpack.c.b16 %v560, %v559
    %v587 = vpack.c.b16 %v562, %v561
    %v588 = vpack.c.b16 %v564, %v563
    %v589 = vpack.c.b16 %v566, %v565
    %v590 = vpack.c.b16 %v568, %v567
    %v591 = vpack.c.b16 %v570, %v569
    %v592 = vpack.c.b16 %v572, %v571
    %v593 = vpack.c.b16 %v574, %v573
    %v594 = vpack.c.b16 %v576, %v575
    %v595 = vpack.c.b16 %v578, %v577
    %v596 = vpack.c.b16 %v580, %v579
    %613 = vmatprep.subr.bf16.mxu0 0
    %614 = vmatpush1.bf16.msra.mxu0 %v581
    %615 = vmatprep.subr.bf16.mxu0 0
    %616 = vmatpush1.bf16.msra.mxu0 %v582
    %617 = vmatprep.subr.bf16.mxu0 0
    %618 = vmatpush1.bf16.msra.mxu0 %v583
    %619 = vmatprep.subr.bf16.mxu0 0
    %620 = vmatpush1.bf16.msra.mxu0 %v584
    %621 = vmatprep.subr.bf16.mxu0 0
    %622 = vmatpush1.bf16.msra.mxu0 %v585
    %623 = vmatprep.subr.bf16.mxu0 0
    %624 = vmatpush1.bf16.msra.mxu0 %v586
    %625 = vmatprep.subr.bf16.mxu0 0
    %626 = vmatpush1.bf16.msra.mxu0 %v587
    %627 = vmatprep.subr.bf16.mxu0 0
    %628 = vmatpush1.bf16.msra.mxu0 %v588
    %629 = vmatprep.subr.bf16.mxu0 0
    %630 = vmatpush1.bf16.msra.mxu0 %v589
    %631 = vmatprep.subr.bf16.mxu0 0
    %632 = vmatpush1.bf16.msra.mxu0 %v590
    %633 = vmatprep.subr.bf16.mxu0 0
    %634 = vmatpush1.bf16.msra.mxu0 %v591
    %635 = vmatprep.subr.bf16.mxu0 0
    %636 = vmatpush1.bf16.msra.mxu0 %v592
    %637 = vmatprep.subr.bf16.mxu0 0
    %638 = vmatpush1.bf16.msra.mxu0 %v593
    %639 = vmatprep.subr.bf16.mxu0 0
    %640 = vmatpush1.bf16.msra.mxu0 %v594
    %641 = vmatprep.subr.bf16.mxu0 0
    %642 = vmatpush1.bf16.msra.mxu0 %v595
    %643 = vmatprep.subr.bf16.mxu0 0
    %644 = vmatpush1.bf16.msra.mxu0 %v596
    %645 = vmatprep.mubr.bf16.mxu0 %v516
    %646 = vmatmul.mubr.bf16.gmra.mrb[0].mxu0 %v515
    %v647 = vpop.f32.mrb[0].mxu0
    %v648 = vadd.f32 0.0, %v647
    %v649 = vpop.f32.mrb[0].mxu0
    %v650 = vpop.f32.mrb[0].mxu0
    %v651 = vpop.f32.mrb[0].mxu0
    %652 = vdwg.mxu0
    %v653 = vadd.f32 %v467, %v648
    %s654 = scalar_lea.vmem %s0, 16
    %v655 = vld [vmem:[%s654] sm:$0xf]
    %v656 = vunpack.c.l.bf16 %v655
    %s657 = scalar_lea.vmem [#allocation2], 384
    %v658 = vld [vmem:[%s657] sm:$0xf]
    %v659 = vld [vmem:[%s657 + $0x4] sm:$0xf]
    %v660 = vld [vmem:[%s657 + $0x8] sm:$0xf]
    %v661 = vld [vmem:[%s657 + $0xc] sm:$0xf]
    %v662 = vld [vmem:[%s657 + $0x10] sm:$0xf]
    %v663 = vld [vmem:[%s657 + $0x14] sm:$0xf]
    %v664 = vld [vmem:[%s657 + $0x18] sm:$0xf]
    %v665 = vld [vmem:[%s657 + $0x1c] sm:$0xf]
    %v666 = vld [vmem:[%s657 + $0x20] sm:$0xf]
    %v667 = vld [vmem:[%s657 + $0x24] sm:$0xf]
    %v668 = vld [vmem:[%s657 + $0x28] sm:$0xf]
    %v669 = vld [vmem:[%s657 + $0x2c] sm:$0xf]
    %v670 = vld [vmem:[%s657 + $0x30] sm:$0xf]
    %v671 = vld [vmem:[%s657 + $0x34] sm:$0xf]
    %v672 = vld [vmem:[%s657 + $0x38] sm:$0xf]
    %v673 = vld [vmem:[%s657 + $0x3c] sm:$0xf]
    %v674 = vld [vmem:[%s657 + $0x40] sm:$0xf]
    %v675 = vld [vmem:[%s657 + $0x44] sm:$0xf]
    %v676 = vld [vmem:[%s657 + $0x48] sm:$0xf]
    %v677 = vld [vmem:[%s657 + $0x4c] sm:$0xf]
    %v678 = vld [vmem:[%s657 + $0x50] sm:$0xf]
    %v679 = vld [vmem:[%s657 + $0x54] sm:$0xf]
    %v680 = vld [vmem:[%s657 + $0x58] sm:$0xf]
    %v681 = vld [vmem:[%s657 + $0x5c] sm:$0xf]
    %v682 = vld [vmem:[%s657 + $0x60] sm:$0xf]
    %v683 = vld [vmem:[%s657 + $0x64] sm:$0xf]
    %v684 = vld [vmem:[%s657 + $0x68] sm:$0xf]
    %v685 = vld [vmem:[%s657 + $0x6c] sm:$0xf]
    %v686 = vld [vmem:[%s657 + $0x70] sm:$0xf]
    %v687 = vld [vmem:[%s657 + $0x74] sm:$0xf]
    %v688 = vld [vmem:[%s657 + $0x78] sm:$0xf]
    %v689 = vld [vmem:[%s657 + $0x7c] sm:$0xf]
    %691 = vset.pattern.permute.xlu0 0
    %692 = vperm.xlu0 %691, %v656
    %v693 = vpop.permute.xlu0 %692
    %v695 = vmul.f32 %v693, %v653
    %696 = vset.pattern.permute.xlu0 1
    %697 = vperm.xlu0 %696, %v656
    %v698 = vpop.permute.xlu0 %697
    %v700 = vmul.f32 %v698, %v653
    %v701 = vpack.c.bf16 %v695, %v695
    %v702 = vpack.c.bf16 %v700, %v700
    %v735 = vunpack.c.l.b16 %v658
    %v736 = vunpack.c.l.b16 %v659
    %v737 = vunpack.c.l.b16 %v660
    %v738 = vunpack.c.l.b16 %v661
    %v739 = vunpack.c.l.b16 %v662
    %v740 = vunpack.c.l.b16 %v663
    %v741 = vunpack.c.l.b16 %v664
    %v742 = vunpack.c.l.b16 %v665
    %v743 = vunpack.c.l.b16 %v666
    %v744 = vunpack.c.l.b16 %v667
    %v745 = vunpack.c.l.b16 %v668
    %v746 = vunpack.c.l.b16 %v669
    %v747 = vunpack.c.l.b16 %v670
    %v748 = vunpack.c.l.b16 %v671
    %v749 = vunpack.c.l.b16 %v672
    %v750 = vunpack.c.l.b16 %v673
    %v751 = vunpack.c.l.b16 %v674
    %v752 = vunpack.c.l.b16 %v675
    %v753 = vunpack.c.l.b16 %v676
    %v754 = vunpack.c.l.b16 %v677
    %v755 = vunpack.c.l.b16 %v678
    %v756 = vunpack.c.l.b16 %v679
    %v757 = vunpack.c.l.b16 %v680
    %v758 = vunpack.c.l.b16 %v681
    %v759 = vunpack.c.l.b16 %v682
    %v760 = vunpack.c.l.b16 %v683
    %v761 = vunpack.c.l.b16 %v684
    %v762 = vunpack.c.l.b16 %v685
    %v763 = vunpack.c.l.b16 %v686
    %v764 = vunpack.c.l.b16 %v687
    %v765 = vunpack.c.l.b16 %v688
    %v766 = vunpack.c.l.b16 %v689
    %v767 = vpack.c.b16 %v736, %v735
    %v768 = vpack.c.b16 %v738, %v737
    %v769 = vpack.c.b16 %v740, %v739
    %v770 = vpack.c.b16 %v742, %v741
    %v771 = vpack.c.b16 %v744, %v743
    %v772 = vpack.c.b16 %v746, %v745
    %v773 = vpack.c.b16 %v748, %v747
    %v774 = vpack.c.b16 %v750, %v749
    %v775 = vpack.c.b16 %v752, %v751
    %v776 = vpack.c.b16 %v754, %v753
    %v777 = vpack.c.b16 %v756, %v755
    %v778 = vpack.c.b16 %v758, %v757
    %v779 = vpack.c.b16 %v760, %v759
    %v780 = vpack.c.b16 %v762, %v761
    %v781 = vpack.c.b16 %v764, %v763
    %v782 = vpack.c.b16 %v766, %v765
    %799 = vmatprep.subr.bf16.mxu0 0
    %800 = vmatpush1.bf16.msra.mxu0 %v767
    %801 = vmatprep.subr.bf16.mxu0 0
    %802 = vmatpush1.bf16.msra.mxu0 %v768
    %803 = vmatprep.subr.bf16.mxu0 0
    %804 = vmatpush1.bf16.msra.mxu0 %v769
    %805 = vmatprep.subr.bf16.mxu0 0
    %806 = vmatpush1.bf16.msra.mxu0 %v770
    %807 = vmatprep.subr.bf16.mxu0 0
    %808 = vmatpush1.bf16.msra.mxu0 %v771
    %809 = vmatprep.subr.bf16.mxu0 0
    %810 = vmatpush1.bf16.msra.mxu0 %v772
    %811 = vmatprep.subr.bf16.mxu0 0
    %812 = vmatpush1.bf16.msra.mxu0 %v773
    %813 = vmatprep.subr.bf16.mxu0 0
    %814 = vmatpush1.bf16.msra.mxu0 %v774
    %815 = vmatprep.subr.bf16.mxu0 0
    %816 = vmatpush1.bf16.msra.mxu0 %v775
    %817 = vmatprep.subr.bf16.mxu0 0
    %818 = vmatpush1.bf16.msra.mxu0 %v776
    %819 = vmatprep.subr.bf16.mxu0 0
    %820 = vmatpush1.bf16.msra.mxu0 %v777
    %821 = vmatprep.subr.bf16.mxu0 0
    %822 = vmatpush1.bf16.msra.mxu0 %v778
    %823 = vmatprep.subr.bf16.mxu0 0
    %824 = vmatpush1.bf16.msra.mxu0 %v779
    %825 = vmatprep.subr.bf16.mxu0 0
    %826 = vmatpush1.bf16.msra.mxu0 %v780
    %827 = vmatprep.subr.bf16.mxu0 0
    %828 = vmatpush1.bf16.msra.mxu0 %v781
    %829 = vmatprep.subr.bf16.mxu0 0
    %830 = vmatpush1.bf16.msra.mxu0 %v782
    %831 = vmatprep.mubr.bf16.mxu0 %v702
    %832 = vmatmul.mubr.bf16.gmra.mrb[0].mxu0 %v701
    %v833 = vpop.f32.mrb[0].mxu0
    %v834 = vadd.f32 0.0, %v833
    %v835 = vpop.f32.mrb[0].mxu0
    %v836 = vpop.f32.mrb[0].mxu0
    %v837 = vpop.f32.mrb[0].mxu0
    %838 = vdwg.mxu0
    %v839 = vadd.f32 %v653, %v834
    %s840 = scalar_lea.vmem %s0, 20
    %v841 = vld [vmem:[%s840] sm:$0xf]
    %v842 = vunpack.c.l.bf16 %v841
    %s843 = scalar_lea.vmem [#allocation2], 512
    %v844 = vld [vmem:[%s843] sm:$0xf]
    %v845 = vld [vmem:[%s843 + $0x4] sm:$0xf]
    %v846 = vld [vmem:[%s843 + $0x8] sm:$0xf]
    %v847 = vld [vmem:[%s843 + $0xc] sm:$0xf]
    %v848 = vld [vmem:[%s843 + $0x10] sm:$0xf]
    %v849 = vld [vmem:[%s843 + $0x14] sm:$0xf]
    %v850 = vld [vmem:[%s843 + $0x18] sm:$0xf]
    %v851 = vld [vmem:[%s843 + $0x1c] sm:$0xf]
    %v852 = vld [vmem:[%s843 + $0x20] sm:$0xf]
    %v853 = vld [vmem:[%s843 + $0x24] sm:$0xf]
    %v854 = vld [vmem:[%s843 + $0x28] sm:$0xf]
    %v855 = vld [vmem:[%s843 + $0x2c] sm:$0xf]
    %v856 = vld [vmem:[%s843 + $0x30] sm:$0xf]
    %v857 = vld [vmem:[%s843 + $0x34] sm:$0xf]
    %v858 = vld [vmem:[%s843 + $0x38] sm:$0xf]
    %v859 = vld [vmem:[%s843 + $0x3c] sm:$0xf]
    %v860 = vld [vmem:[%s843 + $0x40] sm:$0xf]
    %v861 = vld [vmem:[%s843 + $0x44] sm:$0xf]
    %v862 = vld [vmem:[%s843 + $0x48] sm:$0xf]
    %v863 = vld [vmem:[%s843 + $0x4c] sm:$0xf]
    %v864 = vld [vmem:[%s843 + $0x50] sm:$0xf]
    %v865 = vld [vmem:[%s843 + $0x54] sm:$0xf]
    %v866 = vld [vmem:[%s843 + $0x58] sm:$0xf]
    %v867 = vld [vmem:[%s843 + $0x5c] sm:$0xf]
    %v868 = vld [vmem:[%s843 + $0x60] sm:$0xf]
    %v869 = vld [vmem:[%s843 + $0x64] sm:$0xf]
    %v870 = vld [vmem:[%s843 + $0x68] sm:$0xf]
    %v871 = vld [vmem:[%s843 + $0x6c] sm:$0xf]
    %v872 = vld [vmem:[%s843 + $0x70] sm:$0xf]
    %v873 = vld [vmem:[%s843 + $0x74] sm:$0xf]
    %v874 = vld [vmem:[%s843 + $0x78] sm:$0xf]
    %v875 = vld [vmem:[%s843 + $0x7c] sm:$0xf]
    %877 = vset.pattern.permute.xlu0 0
    %878 = vperm.xlu0 %877, %v842
    %v879 = vpop.permute.xlu0 %878
    %v881 = vmul.f32 %v879, %v839
    %882 = vset.pattern.permute.xlu0 1
    %883 = vperm.xlu0 %882, %v842
    %v884 = vpop.permute.xlu0 %883
    %v886 = vmul.f32 %v884, %v839
    %v887 = vpack.c.bf16 %v881, %v881
    %v888 = vpack.c.bf16 %v886, %v886
    %v921 = vunpack.c.l.b16 %v844
    %v922 = vunpack.c.l.b16 %v845
    %v923 = vunpack.c.l.b16 %v846
    %v924 = vunpack.c.l.b16 %v847
    %v925 = vunpack.c.l.b16 %v848
    %v926 = vunpack.c.l.b16 %v849
    %v927 = vunpack.c.l.b16 %v850
    %v928 = vunpack.c.l.b16 %v851
    %v929 = vunpack.c.l.b16 %v852
    %v930 = vunpack.c.l.b16 %v853
    %v931 = vunpack.c.l.b16 %v854
    %v932 = vunpack.c.l.b16 %v855
    %v933 = vunpack.c.l.b16 %v856
    %v934 = vunpack.c.l.b16 %v857
    %v935 = vunpack.c.l.b16 %v858
    %v936 = vunpack.c.l.b16 %v859
    %v937 = vunpack.c.l.b16 %v860
    %v938 = vunpack.c.l.b16 %v861
    %v939 = vunpack.c.l.b16 %v862
    %v940 = vunpack.c.l.b16 %v863
    %v941 = vunpack.c.l.b16 %v864
    %v942 = vunpack.c.l.b16 %v865
    %v943 = vunpack.c.l.b16 %v866
    %v944 = vunpack.c.l.b16 %v867
    %v945 = vunpack.c.l.b16 %v868
    %v946 = vunpack.c.l.b16 %v869
    %v947 = vunpack.c.l.b16 %v870
    %v948 = vunpack.c.l.b16 %v871
    %v949 = vunpack.c.l.b16 %v872
    %v950 = vunpack.c.l.b16 %v873
    %v951 = vunpack.c.l.b16 %v874
    %v952 = vunpack.c.l.b16 %v875
    %v953 = vpack.c.b16 %v922, %v921
    %v954 = vpack.c.b16 %v924, %v923
    %v955 = vpack.c.b16 %v926, %v925
    %v956 = vpack.c.b16 %v928, %v927
    %v957 = vpack.c.b16 %v930, %v929
    %v958 = vpack.c.b16 %v932, %v931
    %v959 = vpack.c.b16 %v934, %v933
    %v960 = vpack.c.b16 %v936, %v935
    %v961 = vpack.c.b16 %v938, %v937
    %v962 = vpack.c.b16 %v940, %v939
    %v963 = vpack.c.b16 %v942, %v941
    %v964 = vpack.c.b16 %v944, %v943
    %v965 = vpack.c.b16 %v946, %v945
    %v966 = vpack.c.b16 %v948, %v947
    %v967 = vpack.c.b16 %v950, %v949
    %v968 = vpack.c.b16 %v952, %v951
    %985 = vmatprep.subr.bf16.mxu0 0
    %986 = vmatpush1.bf16.msra.mxu0 %v953
    %987 = vmatprep.subr.bf16.mxu0 0
    %988 = vmatpush1.bf16.msra.mxu0 %v954
    %989 = vmatprep.subr.bf16.mxu0 0
    %990 = vmatpush1.bf16.msra.mxu0 %v955
    %991 = vmatprep.subr.bf16.mxu0 0
    %992 = vmatpush1.bf16.msra.mxu0 %v956
    %993 = vmatprep.subr.bf16.mxu0 0
    %994 = vmatpush1.bf16.msra.mxu0 %v957
    %995 = vmatprep.subr.bf16.mxu0 0
    %996 = vmatpush1.bf16.msra.mxu0 %v958
    %997 = vmatprep.subr.bf16.mxu0 0
    %998 = vmatpush1.bf16.msra.mxu0 %v959
    %999 = vmatprep.subr.bf16.mxu0 0
    %1000 = vmatpush1.bf16.msra.mxu0 %v960
    %1001 = vmatprep.subr.bf16.mxu0 0
    %1002 = vmatpush1.bf16.msra.mxu0 %v961
    %1003 = vmatprep.subr.bf16.mxu0 0
    %1004 = vmatpush1.bf16.msra.mxu0 %v962
    %1005 = vmatprep.subr.bf16.mxu0 0
    %1006 = vmatpush1.bf16.msra.mxu0 %v963
    %1007 = vmatprep.subr.bf16.mxu0 0
    %1008 = vmatpush1.bf16.msra.mxu0 %v964
    %1009 = vmatprep.subr.bf16.mxu0 0
    %1010 = vmatpush1.bf16.msra.mxu0 %v965
    %1011 = vmatprep.subr.bf16.mxu0 0
    %1012 = vmatpush1.bf16.msra.mxu0 %v966
    %1013 = vmatprep.subr.bf16.mxu0 0
    %1014 = vmatpush1.bf16.msra.mxu0 %v967
    %1015 = vmatprep.subr.bf16.mxu0 0
    %1016 = vmatpush1.bf16.msra.mxu0 %v968
    %1017 = vmatprep.mubr.bf16.mxu0 %v888
    %1018 = vmatmul.mubr.bf16.gmra.mrb[0].mxu0 %v887
    %v1019 = vpop.f32.mrb[0].mxu0
    %v1020 = vadd.f32 0.0, %v1019
    %v1021 = vpop.f32.mrb[0].mxu0
    %v1022 = vpop.f32.mrb[0].mxu0
    %v1023 = vpop.f32.mrb[0].mxu0
    %1024 = vdwg.mxu0
    %v1025 = vadd.f32 %v839, %v1020
    %s1026 = scalar_lea.vmem %s0, 24
    %v1027 = vld [vmem:[%s1026] sm:$0xf]
    %v1028 = vunpack.c.l.bf16 %v1027
    %s1029 = scalar_lea.vmem [#allocation2], 640
    %v1030 = vld [vmem:[%s1029] sm:$0xf]
    %v1031 = vld [vmem:[%s1029 + $0x4] sm:$0xf]
    %v1032 = vld [vmem:[%s1029 + $0x8] sm:$0xf]
    %v1033 = vld [vmem:[%s1029 + $0xc] sm:$0xf]
    %v1034 = vld [vmem:[%s1029 + $0x10] sm:$0xf]
    %v1035 = vld [vmem:[%s1029 + $0x14] sm:$0xf]
    %v1036 = vld [vmem:[%s1029 + $0x18] sm:$0xf]
    %v1037 = vld [vmem:[%s1029 + $0x1c] sm:$0xf]
    %v1038 = vld [vmem:[%s1029 + $0x20] sm:$0xf]
    %v1039 = vld [vmem:[%s1029 + $0x24] sm:$0xf]
    %v1040 = vld [vmem:[%s1029 + $0x28] sm:$0xf]
    %v1041 = vld [vmem:[%s1029 + $0x2c] sm:$0xf]
    %v1042 = vld [vmem:[%s1029 + $0x30] sm:$0xf]
    %v1043 = vld [vmem:[%s1029 + $0x34] sm:$0xf]
    %v1044 = vld [vmem:[%s1029 + $0x38] sm:$0xf]
    %v1045 = vld [vmem:[%s1029 + $0x3c] sm:$0xf]
    %v1046 = vld [vmem:[%s1029 + $0x40] sm:$0xf]
    %v1047 = vld [vmem:[%s1029 + $0x44] sm:$0xf]
    %v1048 = vld [vmem:[%s1029 + $0x48] sm:$0xf]
    %v1049 = vld [vmem:[%s1029 + $0x4c] sm:$0xf]
    %v1050 = vld [vmem:[%s1029 + $0x50] sm:$0xf]
    %v1051 = vld [vmem:[%s1029 + $0x54] sm:$0xf]
    %v1052 = vld [vmem:[%s1029 + $0x58] sm:$0xf]
    %v1053 = vld [vmem:[%s1029 + $0x5c] sm:$0xf]
    %v1054 = vld [vmem:[%s1029 + $0x60] sm:$0xf]
    %v1055 = vld [vmem:[%s1029 + $0x64] sm:$0xf]
    %v1056 = vld [vmem:[%s1029 + $0x68] sm:$0xf]
    %v1057 = vld [vmem:[%s1029 + $0x6c] sm:$0xf]
    %v1058 = vld [vmem:[%s1029 + $0x70] sm:$0xf]
    %v1059 = vld [vmem:[%s1029 + $0x74] sm:$0xf]
    %v1060 = vld [vmem:[%s1029 + $0x78] sm:$0xf]
    %v1061 = vld [vmem:[%s1029 + $0x7c] sm:$0xf]
    %1063 = vset.pattern.permute.xlu0 0
    %1064 = vperm.xlu0 %1063, %v1028
    %v1065 = vpop.permute.xlu0 %1064
    %v1067 = vmul.f32 %v1065, %v1025
    %1068 = vset.pattern.permute.xlu0 1
    %1069 = vperm.xlu0 %1068, %v1028
    %v1070 = vpop.permute.xlu0 %1069
    %v1072 = vmul.f32 %v1070, %v1025
    %v1073 = vpack.c.bf16 %v1067, %v1067
    %v1074 = vpack.c.bf16 %v1072, %v1072
    %v1107 = vunpack.c.l.b16 %v1030
    %v1108 = vunpack.c.l.b16 %v1031
    %v1109 = vunpack.c.l.b16 %v1032
    %v1110 = vunpack.c.l.b16 %v1033
    %v1111 = vunpack.c.l.b16 %v1034
    %v1112 = vunpack.c.l.b16 %v1035
    %v1113 = vunpack.c.l.b16 %v1036
    %v1114 = vunpack.c.l.b16 %v1037
    %v1115 = vunpack.c.l.b16 %v1038
    %v1116 = vunpack.c.l.b16 %v1039
    %v1117 = vunpack.c.l.b16 %v1040
    %v1118 = vunpack.c.l.b16 %v1041
    %v1119 = vunpack.c.l.b16 %v1042
    %v1120 = vunpack.c.l.b16 %v1043
    %v1121 = vunpack.c.l.b16 %v1044
    %v1122 = vunpack.c.l.b16 %v1045
    %v1123 = vunpack.c.l.b16 %v1046
    %v1124 = vunpack.c.l.b16 %v1047
    %v1125 = vunpack.c.l.b16 %v1048
    %v1126 = vunpack.c.l.b16 %v1049
    %v1127 = vunpack.c.l.b16 %v1050
    %v1128 = vunpack.c.l.b16 %v1051
    %v1129 = vunpack.c.l.b16 %v1052
    %v1130 = vunpack.c.l.b16 %v1053
    %v1131 = vunpack.c.l.b16 %v1054
    %v1132 = vunpack.c.l.b16 %v1055
    %v1133 = vunpack.c.l.b16 %v1056
    %v1134 = vunpack.c.l.b16 %v1057
    %v1135 = vunpack.c.l.b16 %v1058
    %v1136 = vunpack.c.l.b16 %v1059
    %v1137 = vunpack.c.l.b16 %v1060
    %v1138 = vunpack.c.l.b16 %v1061
    %v1139 = vpack.c.b16 %v1108, %v1107
    %v1140 = vpack.c.b16 %v1110, %v1109
    %v1141 = vpack.c.b16 %v1112, %v1111
    %v1142 = vpack.c.b16 %v1114, %v1113
    %v1143 = vpack.c.b16 %v1116, %v1115
    %v1144 = vpack.c.b16 %v1118, %v1117
    %v1145 = vpack.c.b16 %v1120, %v1119
    %v1146 = vpack.c.b16 %v1122, %v1121
    %v1147 = vpack.c.b16 %v1124, %v1123
    %v1148 = vpack.c.b16 %v1126, %v1125
    %v1149 = vpack.c.b16 %v1128, %v1127
    %v1150 = vpack.c.b16 %v1130, %v1129
    %v1151 = vpack.c.b16 %v1132, %v1131
    %v1152 = vpack.c.b16 %v1134, %v1133
    %v1153 = vpack.c.b16 %v1136, %v1135
    %v1154 = vpack.c.b16 %v1138, %v1137
    %1171 = vmatprep.subr.bf16.mxu0 0
    %1172 = vmatpush1.bf16.msra.mxu0 %v1139
    %1173 = vmatprep.subr.bf16.mxu0 0
    %1174 = vmatpush1.bf16.msra.mxu0 %v1140
    %1175 = vmatprep.subr.bf16.mxu0 0
    %1176 = vmatpush1.bf16.msra.mxu0 %v1141
    %1177 = vmatprep.subr.bf16.mxu0 0
    %1178 = vmatpush1.bf16.msra.mxu0 %v1142
    %1179 = vmatprep.subr.bf16.mxu0 0
    %1180 = vmatpush1.bf16.msra.mxu0 %v1143
    %1181 = vmatprep.subr.bf16.mxu0 0
    %1182 = vmatpush1.bf16.msra.mxu0 %v1144
    %1183 = vmatprep.subr.bf16.mxu0 0
    %1184 = vmatpush1.bf16.msra.mxu0 %v1145
    %1185 = vmatprep.subr.bf16.mxu0 0
    %1186 = vmatpush1.bf16.msra.mxu0 %v1146
    %1187 = vmatprep.subr.bf16.mxu0 0
    %1188 = vmatpush1.bf16.msra.mxu0 %v1147
    %1189 = vmatprep.subr.bf16.mxu0 0
    %1190 = vmatpush1.bf16.msra.mxu0 %v1148
    %1191 = vmatprep.subr.bf16.mxu0 0
    %1192 = vmatpush1.bf16.msra.mxu0 %v1149
    %1193 = vmatprep.subr.bf16.mxu0 0
    %1194 = vmatpush1.bf16.msra.mxu0 %v1150
    %1195 = vmatprep.subr.bf16.mxu0 0
    %1196 = vmatpush1.bf16.msra.mxu0 %v1151
    %1197 = vmatprep.subr.bf16.mxu0 0
    %1198 = vmatpush1.bf16.msra.mxu0 %v1152
    %1199 = vmatprep.subr.bf16.mxu0 0
    %1200 = vmatpush1.bf16.msra.mxu0 %v1153
    %1201 = vmatprep.subr.bf16.mxu0 0
    %1202 = vmatpush1.bf16.msra.mxu0 %v1154
    %1203 = vmatprep.mubr.bf16.mxu0 %v1074
    %1204 = vmatmul.mubr.bf16.gmra.mrb[0].mxu0 %v1073
    %v1205 = vpop.f32.mrb[0].mxu0
    %v1206 = vadd.f32 0.0, %v1205
    %v1207 = vpop.f32.mrb[0].mxu0
    %v1208 = vpop.f32.mrb[0].mxu0
    %v1209 = vpop.f32.mrb[0].mxu0
    %1210 = vdwg.mxu0
    %v1211 = vadd.f32 %v1025, %v1206
    %s1212 = scalar_lea.vmem %s0, 28
    %v1213 = vld [vmem:[%s1212] sm:$0xf]
    %v1214 = vunpack.c.l.bf16 %v1213
    %s1215 = scalar_lea.vmem [#allocation2], 768
    %v1216 = vld [vmem:[%s1215] sm:$0xf]
    %v1217 = vld [vmem:[%s1215 + $0x4] sm:$0xf]
    %v1218 = vld [vmem:[%s1215 + $0x8] sm:$0xf]
    %v1219 = vld [vmem:[%s1215 + $0xc] sm:$0xf]
    %v1220 = vld [vmem:[%s1215 + $0x10] sm:$0xf]
    %v1221 = vld [vmem:[%s1215 + $0x14] sm:$0xf]
    %v1222 = vld [vmem:[%s1215 + $0x18] sm:$0xf]
    %v1223 = vld [vmem:[%s1215 + $0x1c] sm:$0xf]
    %v1224 = vld [vmem:[%s1215 + $0x20] sm:$0xf]
    %v1225 = vld [vmem:[%s1215 + $0x24] sm:$0xf]
    %v1226 = vld [vmem:[%s1215 + $0x28] sm:$0xf]
    %v1227 = vld [vmem:[%s1215 + $0x2c] sm:$0xf]
    %v1228 = vld [vmem:[%s1215 + $0x30] sm:$0xf]
    %v1229 = vld [vmem:[%s1215 + $0x34] sm:$0xf]
    %v1230 = vld [vmem:[%s1215 + $0x38] sm:$0xf]
    %v1231 = vld [vmem:[%s1215 + $0x3c] sm:$0xf]
    %v1232 = vld [vmem:[%s1215 + $0x40] sm:$0xf]
    %v1233 = vld [vmem:[%s1215 + $0x44] sm:$0xf]
    %v1234 = vld [vmem:[%s1215 + $0x48] sm:$0xf]
    %v1235 = vld [vmem:[%s1215 + $0x4c] sm:$0xf]
    %v1236 = vld [vmem:[%s1215 + $0x50] sm:$0xf]
    %v1237 = vld [vmem:[%s1215 + $0x54] sm:$0xf]
    %v1238 = vld [vmem:[%s1215 + $0x58] sm:$0xf]
    %v1239 = vld [vmem:[%s1215 + $0x5c] sm:$0xf]
    %v1240 = vld [vmem:[%s1215 + $0x60] sm:$0xf]
    %v1241 = vld [vmem:[%s1215 + $0x64] sm:$0xf]
    %v1242 = vld [vmem:[%s1215 + $0x68] sm:$0xf]
    %v1243 = vld [vmem:[%s1215 + $0x6c] sm:$0xf]
    %v1244 = vld [vmem:[%s1215 + $0x70] sm:$0xf]
    %v1245 = vld [vmem:[%s1215 + $0x74] sm:$0xf]
    %v1246 = vld [vmem:[%s1215 + $0x78] sm:$0xf]
    %v1247 = vld [vmem:[%s1215 + $0x7c] sm:$0xf]
    %1249 = vset.pattern.permute.xlu0 0
    %1250 = vperm.xlu0 %1249, %v1214
    %v1251 = vpop.permute.xlu0 %1250
    %v1253 = vmul.f32 %v1251, %v1211
    %1254 = vset.pattern.permute.xlu0 1
    %1255 = vperm.xlu0 %1254, %v1214
    %v1256 = vpop.permute.xlu0 %1255
    %v1258 = vmul.f32 %v1256, %v1211
    %v1259 = vpack.c.bf16 %v1253, %v1253
    %v1260 = vpack.c.bf16 %v1258, %v1258
    %v1293 = vunpack.c.l.b16 %v1216
    %v1294 = vunpack.c.l.b16 %v1217
    %v1295 = vunpack.c.l.b16 %v1218
    %v1296 = vunpack.c.l.b16 %v1219
    %v1297 = vunpack.c.l.b16 %v1220
    %v1298 = vunpack.c.l.b16 %v1221
    %v1299 = vunpack.c.l.b16 %v1222
    %v1300 = vunpack.c.l.b16 %v1223
    %v1301 = vunpack.c.l.b16 %v1224
    %v1302 = vunpack.c.l.b16 %v1225
    %v1303 = vunpack.c.l.b16 %v1226
    %v1304 = vunpack.c.l.b16 %v1227
    %v1305 = vunpack.c.l.b16 %v1228
    %v1306 = vunpack.c.l.b16 %v1229
    %v1307 = vunpack.c.l.b16 %v1230
    %v1308 = vunpack.c.l.b16 %v1231
    %v1309 = vunpack.c.l.b16 %v1232
    %v1310 = vunpack.c.l.b16 %v1233
    %v1311 = vunpack.c.l.b16 %v1234
    %v1312 = vunpack.c.l.b16 %v1235
    %v1313 = vunpack.c.l.b16 %v1236
    %v1314 = vunpack.c.l.b16 %v1237
    %v1315 = vunpack.c.l.b16 %v1238
    %v1316 = vunpack.c.l.b16 %v1239
    %v1317 = vunpack.c.l.b16 %v1240
    %v1318 = vunpack.c.l.b16 %v1241
    %v1319 = vunpack.c.l.b16 %v1242
    %v1320 = vunpack.c.l.b16 %v1243
    %v1321 = vunpack.c.l.b16 %v1244
    %v1322 = vunpack.c.l.b16 %v1245
    %v1323 = vunpack.c.l.b16 %v1246
    %v1324 = vunpack.c.l.b16 %v1247
    %v1325 = vpack.c.b16 %v1294, %v1293
    %v1326 = vpack.c.b16 %v1296, %v1295
    %v1327 = vpack.c.b16 %v1298, %v1297
    %v1328 = vpack.c.b16 %v1300, %v1299
    %v1329 = vpack.c.b16 %v1302, %v1301
    %v1330 = vpack.c.b16 %v1304, %v1303
    %v1331 = vpack.c.b16 %v1306, %v1305
    %v1332 = vpack.c.b16 %v1308, %v1307
    %v1333 = vpack.c.b16 %v1310, %v1309
    %v1334 = vpack.c.b16 %v1312, %v1311
    %v1335 = vpack.c.b16 %v1314, %v1313
    %v1336 = vpack.c.b16 %v1316, %v1315
    %v1337 = vpack.c.b16 %v1318, %v1317
    %v1338 = vpack.c.b16 %v1320, %v1319
    %v1339 = vpack.c.b16 %v1322, %v1321
    %v1340 = vpack.c.b16 %v1324, %v1323
    %1357 = vmatprep.subr.bf16.mxu0 0
    %1358 = vmatpush1.bf16.msra.mxu0 %v1325
    %1359 = vmatprep.subr.bf16.mxu0 0
    %1360 = vmatpush1.bf16.msra.mxu0 %v1326
    %1361 = vmatprep.subr.bf16.mxu0 0
    %1362 = vmatpush1.bf16.msra.mxu0 %v1327
    %1363 = vmatprep.subr.bf16.mxu0 0
    %1364 = vmatpush1.bf16.msra.mxu0 %v1328
    %1365 = vmatprep.subr.bf16.mxu0 0
    %1366 = vmatpush1.bf16.msra.mxu0 %v1329
    %1367 = vmatprep.subr.bf16.mxu0 0
    %1368 = vmatpush1.bf16.msra.mxu0 %v1330
    %1369 = vmatprep.subr.bf16.mxu0 0
    %1370 = vmatpush1.bf16.msra.mxu0 %v1331
    %1371 = vmatprep.subr.bf16.mxu0 0
    %1372 = vmatpush1.bf16.msra.mxu0 %v1332
    %1373 = vmatprep.subr.bf16.mxu0 0
    %1374 = vmatpush1.bf16.msra.mxu0 %v1333
    %1375 = vmatprep.subr.bf16.mxu0 0
    %1376 = vmatpush1.bf16.msra.mxu0 %v1334
    %1377 = vmatprep.subr.bf16.mxu0 0
    %1378 = vmatpush1.bf16.msra.mxu0 %v1335
    %1379 = vmatprep.subr.bf16.mxu0 0
    %1380 = vmatpush1.bf16.msra.mxu0 %v1336
    %1381 = vmatprep.subr.bf16.mxu0 0
    %1382 = vmatpush1.bf16.msra.mxu0 %v1337
    %1383 = vmatprep.subr.bf16.mxu0 0
    %1384 = vmatpush1.bf16.msra.mxu0 %v1338
    %1385 = vmatprep.subr.bf16.mxu0 0
    %1386 = vmatpush1.bf16.msra.mxu0 %v1339
    %1387 = vmatprep.subr.bf16.mxu0 0
    %1388 = vmatpush1.bf16.msra.mxu0 %v1340
    %1389 = vmatprep.mubr.bf16.mxu0 %v1260
    %1390 = vmatmul.mubr.bf16.gmra.mrb[0].mxu0 %v1259
    %v1391 = vpop.f32.mrb[0].mxu0
    %v1392 = vadd.f32 0.0, %v1391
    %v1393 = vpop.f32.mrb[0].mxu0
    %v1394 = vpop.f32.mrb[0].mxu0
    %v1395 = vpop.f32.mrb[0].mxu0
    %1396 = vdwg.mxu0
    %v1397 = vadd.f32 %v1211, %v1392
    %s1398 = scalar_lea.vmem %s0, 32
    %v1399 = vld [vmem:[%s1398] sm:$0xf]
    %v1400 = vunpack.c.l.bf16 %v1399
    %s1401 = scalar_lea.vmem [#allocation2], 896
    %v1402 = vld [vmem:[%s1401] sm:$0xf]
    %v1403 = vld [vmem:[%s1401 + $0x4] sm:$0xf]
    %v1404 = vld [vmem:[%s1401 + $0x8] sm:$0xf]
    %v1405 = vld [vmem:[%s1401 + $0xc] sm:$0xf]
    %v1406 = vld [vmem:[%s1401 + $0x10] sm:$0xf]
    %v1407 = vld [vmem:[%s1401 + $0x14] sm:$0xf]
    %v1408 = vld [vmem:[%s1401 + $0x18] sm:$0xf]
    %v1409 = vld [vmem:[%s1401 + $0x1c] sm:$0xf]
    %v1410 = vld [vmem:[%s1401 + $0x20] sm:$0xf]
    %v1411 = vld [vmem:[%s1401 + $0x24] sm:$0xf]
    %v1412 = vld [vmem:[%s1401 + $0x28] sm:$0xf]
    %v1413 = vld [vmem:[%s1401 + $0x2c] sm:$0xf]
    %v1414 = vld [vmem:[%s1401 + $0x30] sm:$0xf]
    %v1415 = vld [vmem:[%s1401 + $0x34] sm:$0xf]
    %v1416 = vld [vmem:[%s1401 + $0x38] sm:$0xf]
    %v1417 = vld [vmem:[%s1401 + $0x3c] sm:$0xf]
    %v1418 = vld [vmem:[%s1401 + $0x40] sm:$0xf]
    %v1419 = vld [vmem:[%s1401 + $0x44] sm:$0xf]
    %v1420 = vld [vmem:[%s1401 + $0x48] sm:$0xf]
    %v1421 = vld [vmem:[%s1401 + $0x4c] sm:$0xf]
    %v1422 = vld [vmem:[%s1401 + $0x50] sm:$0xf]
    %v1423 = vld [vmem:[%s1401 + $0x54] sm:$0xf]
    %v1424 = vld [vmem:[%s1401 + $0x58] sm:$0xf]
    %v1425 = vld [vmem:[%s1401 + $0x5c] sm:$0xf]
    %v1426 = vld [vmem:[%s1401 + $0x60] sm:$0xf]
    %v1427 = vld [vmem:[%s1401 + $0x64] sm:$0xf]
    %v1428 = vld [vmem:[%s1401 + $0x68] sm:$0xf]
    %v1429 = vld [vmem:[%s1401 + $0x6c] sm:$0xf]
    %v1430 = vld [vmem:[%s1401 + $0x70] sm:$0xf]
    %v1431 = vld [vmem:[%s1401 + $0x74] sm:$0xf]
    %v1432 = vld [vmem:[%s1401 + $0x78] sm:$0xf]
    %v1433 = vld [vmem:[%s1401 + $0x7c] sm:$0xf]
    %1435 = vset.pattern.permute.xlu0 0
    %1436 = vperm.xlu0 %1435, %v1400
    %v1437 = vpop.permute.xlu0 %1436
    %v1439 = vmul.f32 %v1437, %v1397
    %1440 = vset.pattern.permute.xlu0 1
    %1441 = vperm.xlu0 %1440, %v1400
    %v1442 = vpop.permute.xlu0 %1441
    %v1444 = vmul.f32 %v1442, %v1397
    %v1445 = vpack.c.bf16 %v1439, %v1439
    %v1446 = vpack.c.bf16 %v1444, %v1444
    %v1479 = vunpack.c.l.b16 %v1402
    %v1480 = vunpack.c.l.b16 %v1403
    %v1481 = vunpack.c.l.b16 %v1404
    %v1482 = vunpack.c.l.b16 %v1405
    %v1483 = vunpack.c.l.b16 %v1406
    %v1484 = vunpack.c.l.b16 %v1407
    %v1485 = vunpack.c.l.b16 %v1408
    %v1486 = vunpack.c.l.b16 %v1409
    %v1487 = vunpack.c.l.b16 %v1410
    %v1488 = vunpack.c.l.b16 %v1411
    %v1489 = vunpack.c.l.b16 %v1412
    %v1490 = vunpack.c.l.b16 %v1413
    %v1491 = vunpack.c.l.b16 %v1414
    %v1492 = vunpack.c.l.b16 %v1415
    %v1493 = vunpack.c.l.b16 %v1416
    %v1494 = vunpack.c.l.b16 %v1417
    %v1495 = vunpack.c.l.b16 %v1418
    %v1496 = vunpack.c.l.b16 %v1419
    %v1497 = vunpack.c.l.b16 %v1420
    %v1498 = vunpack.c.l.b16 %v1421
    %v1499 = vunpack.c.l.b16 %v1422
    %v1500 = vunpack.c.l.b16 %v1423
    %v1501 = vunpack.c.l.b16 %v1424
    %v1502 = vunpack.c.l.b16 %v1425
    %v1503 = vunpack.c.l.b16 %v1426
    %v1504 = vunpack.c.l.b16 %v1427
    %v1505 = vunpack.c.l.b16 %v1428
    %v1506 = vunpack.c.l.b16 %v1429
    %v1507 = vunpack.c.l.b16 %v1430
    %v1508 = vunpack.c.l.b16 %v1431
    %v1509 = vunpack.c.l.b16 %v1432
    %v1510 = vunpack.c.l.b16 %v1433
    %v1511 = vpack.c.b16 %v1480, %v1479
    %v1512 = vpack.c.b16 %v1482, %v1481
    %v1513 = vpack.c.b16 %v1484, %v1483
    %v1514 = vpack.c.b16 %v1486, %v1485
    %v1515 = vpack.c.b16 %v1488, %v1487
    %v1516 = vpack.c.b16 %v1490, %v1489
    %v1517 = vpack.c.b16 %v1492, %v1491
    %v1518 = vpack.c.b16 %v1494, %v1493
    %v1519 = vpack.c.b16 %v1496, %v1495
    %v1520 = vpack.c.b16 %v1498, %v1497
    %v1521 = vpack.c.b16 %v1500, %v1499
    %v1522 = vpack.c.b16 %v1502, %v1501
    %v1523 = vpack.c.b16 %v1504, %v1503
    %v1524 = vpack.c.b16 %v1506, %v1505
    %v1525 = vpack.c.b16 %v1508, %v1507
    %v1526 = vpack.c.b16 %v1510, %v1509
    %1543 = vmatprep.subr.bf16.mxu0 0
    %1544 = vmatpush1.bf16.msra.mxu0 %v1511
    %1545 = vmatprep.subr.bf16.mxu0 0
    %1546 = vmatpush1.bf16.msra.mxu0 %v1512
    %1547 = vmatprep.subr.bf16.mxu0 0
    %1548 = vmatpush1.bf16.msra.mxu0 %v1513
    %1549 = vmatprep.subr.bf16.mxu0 0
    %1550 = vmatpush1.bf16.msra.mxu0 %v1514
    %1551 = vmatprep.subr.bf16.mxu0 0
    %1552 = vmatpush1.bf16.msra.mxu0 %v1515
    %1553 = vmatprep.subr.bf16.mxu0 0
    %1554 = vmatpush1.bf16.msra.mxu0 %v1516
    %1555 = vmatprep.subr.bf16.mxu0 0
    %1556 = vmatpush1.bf16.msra.mxu0 %v1517
    %1557 = vmatprep.subr.bf16.mxu0 0
    %1558 = vmatpush1.bf16.msra.mxu0 %v1518
    %1559 = vmatprep.subr.bf16.mxu0 0
    %1560 = vmatpush1.bf16.msra.mxu0 %v1519
    %1561 = vmatprep.subr.bf16.mxu0 0
    %1562 = vmatpush1.bf16.msra.mxu0 %v1520
    %1563 = vmatprep.subr.bf16.mxu0 0
    %1564 = vmatpush1.bf16.msra.mxu0 %v1521
    %1565 = vmatprep.subr.bf16.mxu0 0
    %1566 = vmatpush1.bf16.msra.mxu0 %v1522
    %1567 = vmatprep.subr.bf16.mxu0 0
    %1568 = vmatpush1.bf16.msra.mxu0 %v1523
    %1569 = vmatprep.subr.bf16.mxu0 0
    %1570 = vmatpush1.bf16.msra.mxu0 %v1524
    %1571 = vmatprep.subr.bf16.mxu0 0
    %1572 = vmatpush1.bf16.msra.mxu0 %v1525
    %1573 = vmatprep.subr.bf16.mxu0 0
    %1574 = vmatpush1.bf16.msra.mxu0 %v1526
    %1575 = vmatprep.mubr.bf16.mxu0 %v1446
    %1576 = vmatmul.mubr.bf16.gmra.mrb[0].mxu0 %v1445
    %v1577 = vpop.f32.mrb[0].mxu0
    %v1578 = vadd.f32 0.0, %v1577
    %v1579 = vpop.f32.mrb[0].mxu0
    %v1580 = vpop.f32.mrb[0].mxu0
    %v1581 = vpop.f32.mrb[0].mxu0
    %1582 = vdwg.mxu0
    %v1583 = vadd.f32 %v1397, %v1578
    %s1584 = scalar_lea.vmem %s0, 36
    %v1585 = vld [vmem:[%s1584] sm:$0xf]
    %v1586 = vunpack.c.l.bf16 %v1585
    %s1587 = scalar_lea.vmem [#allocation2], 1024
    %v1588 = vld [vmem:[%s1587] sm:$0xf]
    %v1589 = vld [vmem:[%s1587 + $0x4] sm:$0xf]
    %v1590 = vld [vmem:[%s1587 + $0x8] sm:$0xf]
    %v1591 = vld [vmem:[%s1587 + $0xc] sm:$0xf]
    %v1592 = vld [vmem:[%s1587 + $0x10] sm:$0xf]
    %v1593 = vld [vmem:[%s1587 + $0x14] sm:$0xf]
    %v1594 = vld [vmem:[%s1587 + $0x18] sm:$0xf]
    %v1595 = vld [vmem:[%s1587 + $0x1c] sm:$0xf]
    %v1596 = vld [vmem:[%s1587 + $0x20] sm:$0xf]
    %v1597 = vld [vmem:[%s1587 + $0x24] sm:$0xf]
    %v1598 = vld [vmem:[%s1587 + $0x28] sm:$0xf]
    %v1599 = vld [vmem:[%s1587 + $0x2c] sm:$0xf]
    %v1600 = vld [vmem:[%s1587 + $0x30] sm:$0xf]
    %v1601 = vld [vmem:[%s1587 + $0x34] sm:$0xf]
    %v1602 = vld [vmem:[%s1587 + $0x38] sm:$0xf]
    %v1603 = vld [vmem:[%s1587 + $0x3c] sm:$0xf]
    %v1604 = vld [vmem:[%s1587 + $0x40] sm:$0xf]
    %v1605 = vld [vmem:[%s1587 + $0x44] sm:$0xf]
    %v1606 = vld [vmem:[%s1587 + $0x48] sm:$0xf]
    %v1607 = vld [vmem:[%s1587 + $0x4c] sm:$0xf]
    %v1608 = vld [vmem:[%s1587 + $0x50] sm:$0xf]
    %v1609 = vld [vmem:[%s1587 + $0x54] sm:$0xf]
    %v1610 = vld [vmem:[%s1587 + $0x58] sm:$0xf]
    %v1611 = vld [vmem:[%s1587 + $0x5c] sm:$0xf]
    %v1612 = vld [vmem:[%s1587 + $0x60] sm:$0xf]
    %v1613 = vld [vmem:[%s1587 + $0x64] sm:$0xf]
    %v1614 = vld [vmem:[%s1587 + $0x68] sm:$0xf]
    %v1615 = vld [vmem:[%s1587 + $0x6c] sm:$0xf]
    %v1616 = vld [vmem:[%s1587 + $0x70] sm:$0xf]
    %v1617 = vld [vmem:[%s1587 + $0x74] sm:$0xf]
    %v1618 = vld [vmem:[%s1587 + $0x78] sm:$0xf]
    %v1619 = vld [vmem:[%s1587 + $0x7c] sm:$0xf]
    %1621 = vset.pattern.permute.xlu0 0
    %1622 = vperm.xlu0 %1621, %v1586
    %v1623 = vpop.permute.xlu0 %1622
    %v1625 = vmul.f32 %v1623, %v1583
    %1626 = vset.pattern.permute.xlu0 1
    %1627 = vperm.xlu0 %1626, %v1586
    %v1628 = vpop.permute.xlu0 %1627
    %v1630 = vmul.f32 %v1628, %v1583
    %v1631 = vpack.c.bf16 %v1625, %v1625
    %v1632 = vpack.c.bf16 %v1630, %v1630
    %v1665 = vunpack.c.l.b16 %v1588
    %v1666 = vunpack.c.l.b16 %v1589
    %v1667 = vunpack.c.l.b16 %v1590
    %v1668 = vunpack.c.l.b16 %v1591
    %v1669 = vunpack.c.l.b16 %v1592
    %v1670 = vunpack.c.l.b16 %v1593
    %v1671 = vunpack.c.l.b16 %v1594
    %v1672 = vunpack.c.l.b16 %v1595
    %v1673 = vunpack.c.l.b16 %v1596
    %v1674 = vunpack.c.l.b16 %v1597
    %v1675 = vunpack.c.l.b16 %v1598
    %v1676 = vunpack.c.l.b16 %v1599
    %v1677 = vunpack.c.l.b16 %v1600
    %v1678 = vunpack.c.l.b16 %v1601
    %v1679 = vunpack.c.l.b16 %v1602
    %v1680 = vunpack.c.l.b16 %v1603
    %v1681 = vunpack.c.l.b16 %v1604
    %v1682 = vunpack.c.l.b16 %v1605
    %v1683 = vunpack.c.l.b16 %v1606
    %v1684 = vunpack.c.l.b16 %v1607
    %v1685 = vunpack.c.l.b16 %v1608
    %v1686 = vunpack.c.l.b16 %v1609
    %v1687 = vunpack.c.l.b16 %v1610
    %v1688 = vunpack.c.l.b16 %v1611
    %v1689 = vunpack.c.l.b16 %v1612
    %v1690 = vunpack.c.l.b16 %v1613
    %v1691 = vunpack.c.l.b16 %v1614
    %v1692 = vunpack.c.l.b16 %v1615
    %v1693 = vunpack.c.l.b16 %v1616
    %v1694 = vunpack.c.l.b16 %v1617
    %v1695 = vunpack.c.l.b16 %v1618
    %v1696 = vunpack.c.l.b16 %v1619
    %v1697 = vpack.c.b16 %v1666, %v1665
    %v1698 = vpack.c.b16 %v1668, %v1667
    %v1699 = vpack.c.b16 %v1670, %v1669
    %v1700 = vpack.c.b16 %v1672, %v1671
    %v1701 = vpack.c.b16 %v1674, %v1673
    %v1702 = vpack.c.b16 %v1676, %v1675
    %v1703 = vpack.c.b16 %v1678, %v1677
    %v1704 = vpack.c.b16 %v1680, %v1679
    %v1705 = vpack.c.b16 %v1682, %v1681
    %v1706 = vpack.c.b16 %v1684, %v1683
    %v1707 = vpack.c.b16 %v1686, %v1685
    %v1708 = vpack.c.b16 %v1688, %v1687
    %v1709 = vpack.c.b16 %v1690, %v1689
    %v1710 = vpack.c.b16 %v1692, %v1691
    %v1711 = vpack.c.b16 %v1694, %v1693
    %v1712 = vpack.c.b16 %v1696, %v1695
    %1729 = vmatprep.subr.bf16.mxu0 0
    %1730 = vmatpush1.bf16.msra.mxu0 %v1697
    %1731 = vmatprep.subr.bf16.mxu0 0
    %1732 = vmatpush1.bf16.msra.mxu0 %v1698
    %1733 = vmatprep.subr.bf16.mxu0 0
    %1734 = vmatpush1.bf16.msra.mxu0 %v1699
    %1735 = vmatprep.subr.bf16.mxu0 0
    %1736 = vmatpush1.bf16.msra.mxu0 %v1700
    %1737 = vmatprep.subr.bf16.mxu0 0
    %1738 = vmatpush1.bf16.msra.mxu0 %v1701
    %1739 = vmatprep.subr.bf16.mxu0 0
    %1740 = vmatpush1.bf16.msra.mxu0 %v1702
    %1741 = vmatprep.subr.bf16.mxu0 0
    %1742 = vmatpush1.bf16.msra.mxu0 %v1703
    %1743 = vmatprep.subr.bf16.mxu0 0
    %1744 = vmatpush1.bf16.msra.mxu0 %v1704
    %1745 = vmatprep.subr.bf16.mxu0 0
    %1746 = vmatpush1.bf16.msra.mxu0 %v1705
    %1747 = vmatprep.subr.bf16.mxu0 0
    %1748 = vmatpush1.bf16.msra.mxu0 %v1706
    %1749 = vmatprep.subr.bf16.mxu0 0
    %1750 = vmatpush1.bf16.msra.mxu0 %v1707
    %1751 = vmatprep.subr.bf16.mxu0 0
    %1752 = vmatpush1.bf16.msra.mxu0 %v1708
    %1753 = vmatprep.subr.bf16.mxu0 0
    %1754 = vmatpush1.bf16.msra.mxu0 %v1709
    %1755 = vmatprep.subr.bf16.mxu0 0
    %1756 = vmatpush1.bf16.msra.mxu0 %v1710
    %1757 = vmatprep.subr.bf16.mxu0 0
    %1758 = vmatpush1.bf16.msra.mxu0 %v1711
    %1759 = vmatprep.subr.bf16.mxu0 0
    %1760 = vmatpush1.bf16.msra.mxu0 %v1712
    %1761 = vmatprep.mubr.bf16.mxu0 %v1632
    %1762 = vmatmul.mubr.bf16.gmra.mrb[0].mxu0 %v1631
    %v1763 = vpop.f32.mrb[0].mxu0
    %v1764 = vadd.f32 0.0, %v1763
    %v1765 = vpop.f32.mrb[0].mxu0
    %v1766 = vpop.f32.mrb[0].mxu0
    %v1767 = vpop.f32.mrb[0].mxu0
    %1768 = vdwg.mxu0
    %v1769 = vadd.f32 %v1583, %v1764
    %s1770 = scalar_lea.vmem %s0, 40
    %v1771 = vld [vmem:[%s1770] sm:$0xf]
    %v1772 = vunpack.c.l.bf16 %v1771
    %s1773 = scalar_lea.vmem [#allocation2], 1152
    %v1774 = vld [vmem:[%s1773] sm:$0xf]
    %v1775 = vld [vmem:[%s1773 + $0x4] sm:$0xf]
    %v1776 = vld [vmem:[%s1773 + $0x8] sm:$0xf]
    %v1777 = vld [vmem:[%s1773 + $0xc] sm:$0xf]
    %v1778 = vld [vmem:[%s1773 + $0x10] sm:$0xf]
    %v1779 = vld [vmem:[%s1773 + $0x14] sm:$0xf]
    %v1780 = vld [vmem:[%s1773 + $0x18] sm:$0xf]
    %v1781 = vld [vmem:[%s1773 + $0x1c] sm:$0xf]
    %v1782 = vld [vmem:[%s1773 + $0x20] sm:$0xf]
    %v1783 = vld [vmem:[%s1773 + $0x24] sm:$0xf]
    %v1784 = vld [vmem:[%s1773 + $0x28] sm:$0xf]
    %v1785 = vld [vmem:[%s1773 + $0x2c] sm:$0xf]
    %v1786 = vld [vmem:[%s1773 + $0x30] sm:$0xf]
    %v1787 = vld [vmem:[%s1773 + $0x34] sm:$0xf]
    %v1788 = vld [vmem:[%s1773 + $0x38] sm:$0xf]
    %v1789 = vld [vmem:[%s1773 + $0x3c] sm:$0xf]
    %v1790 = vld [vmem:[%s1773 + $0x40] sm:$0xf]
    %v1791 = vld [vmem:[%s1773 + $0x44] sm:$0xf]
    %v1792 = vld [vmem:[%s1773 + $0x48] sm:$0xf]
    %v1793 = vld [vmem:[%s1773 + $0x4c] sm:$0xf]
    %v1794 = vld [vmem:[%s1773 + $0x50] sm:$0xf]
    %v1795 = vld [vmem:[%s1773 + $0x54] sm:$0xf]
    %v1796 = vld [vmem:[%s1773 + $0x58] sm:$0xf]
    %v1797 = vld [vmem:[%s1773 + $0x5c] sm:$0xf]
    %v1798 = vld [vmem:[%s1773 + $0x60] sm:$0xf]
    %v1799 = vld [vmem:[%s1773 + $0x64] sm:$0xf]
    %v1800 = vld [vmem:[%s1773 + $0x68] sm:$0xf]
    %v1801 = vld [vmem:[%s1773 + $0x6c] sm:$0xf]
    %v1802 = vld [vmem:[%s1773 + $0x70] sm:$0xf]
    %v1803 = vld [vmem:[%s1773 + $0x74] sm:$0xf]
    %v1804 = vld [vmem:[%s1773 + $0x78] sm:$0xf]
    %v1805 = vld [vmem:[%s1773 + $0x7c] sm:$0xf]
    %1807 = vset.pattern.permute.xlu0 0
    %1808 = vperm.xlu0 %1807, %v1772
    %v1809 = vpop.permute.xlu0 %1808
    %v1811 = vmul.f32 %v1809, %v1769
    %1812 = vset.pattern.permute.xlu0 1
    %1813 = vperm.xlu0 %1812, %v1772
    %v1814 = vpop.permute.xlu0 %1813
    %v1816 = vmul.f32 %v1814, %v1769
    %v1817 = vpack.c.bf16 %v1811, %v1811
    %v1818 = vpack.c.bf16 %v1816, %v1816
    %v1851 = vunpack.c.l.b16 %v1774
    %v1852 = vunpack.c.l.b16 %v1775
    %v1853 = vunpack.c.l.b16 %v1776
    %v1854 = vunpack.c.l.b16 %v1777
    %v1855 = vunpack.c.l.b16 %v1778
    %v1856 = vunpack.c.l.b16 %v1779
    %v1857 = vunpack.c.l.b16 %v1780
    %v1858 = vunpack.c.l.b16 %v1781
    %v1859 = vunpack.c.l.b16 %v1782
    %v1860 = vunpack.c.l.b16 %v1783
    %v1861 = vunpack.c.l.b16 %v1784
    %v1862 = vunpack.c.l.b16 %v1785
    %v1863 = vunpack.c.l.b16 %v1786
    %v1864 = vunpack.c.l.b16 %v1787
    %v1865 = vunpack.c.l.b16 %v1788
    %v1866 = vunpack.c.l.b16 %v1789
    %v1867 = vunpack.c.l.b16 %v1790
    %v1868 = vunpack.c.l.b16 %v1791
    %v1869 = vunpack.c.l.b16 %v1792
    %v1870 = vunpack.c.l.b16 %v1793
    %v1871 = vunpack.c.l.b16 %v1794
    %v1872 = vunpack.c.l.b16 %v1795
    %v1873 = vunpack.c.l.b16 %v1796
    %v1874 = vunpack.c.l.b16 %v1797
    %v1875 = vunpack.c.l.b16 %v1798
    %v1876 = vunpack.c.l.b16 %v1799
    %v1877 = vunpack.c.l.b16 %v1800
    %v1878 = vunpack.c.l.b16 %v1801
    %v1879 = vunpack.c.l.b16 %v1802
    %v1880 = vunpack.c.l.b16 %v1803
    %v1881 = vunpack.c.l.b16 %v1804
    %v1882 = vunpack.c.l.b16 %v1805
    %v1883 = vpack.c.b16 %v1852, %v1851
    %v1884 = vpack.c.b16 %v1854, %v1853
    %v1885 = vpack.c.b16 %v1856, %v1855
    %v1886 = vpack.c.b16 %v1858, %v1857
    %v1887 = vpack.c.b16 %v1860, %v1859
    %v1888 = vpack.c.b16 %v1862, %v1861
    %v1889 = vpack.c.b16 %v1864, %v1863
    %v1890 = vpack.c.b16 %v1866, %v1865
    %v1891 = vpack.c.b16 %v1868, %v1867
    %v1892 = vpack.c.b16 %v1870, %v1869
    %v1893 = vpack.c.b16 %v1872, %v1871
    %v1894 = vpack.c.b16 %v1874, %v1873
    %v1895 = vpack.c.b16 %v1876, %v1875
    %v1896 = vpack.c.b16 %v1878, %v1877
    %v1897 = vpack.c.b16 %v1880, %v1879
    %v1898 = vpack.c.b16 %v1882, %v1881
    %1915 = vmatprep.subr.bf16.mxu0 0
    %1916 = vmatpush1.bf16.msra.mxu0 %v1883
    %1917 = vmatprep.subr.bf16.mxu0 0
    %1918 = vmatpush1.bf16.msra.mxu0 %v1884
    %1919 = vmatprep.subr.bf16.mxu0 0
    %1920 = vmatpush1.bf16.msra.mxu0 %v1885
    %1921 = vmatprep.subr.bf16.mxu0 0
    %1922 = vmatpush1.bf16.msra.mxu0 %v1886
    %1923 = vmatprep.subr.bf16.mxu0 0
    %1924 = vmatpush1.bf16.msra.mxu0 %v1887
    %1925 = vmatprep.subr.bf16.mxu0 0
    %1926 = vmatpush1.bf16.msra.mxu0 %v1888
    %1927 = vmatprep.subr.bf16.mxu0 0
    %1928 = vmatpush1.bf16.msra.mxu0 %v1889
    %1929 = vmatprep.subr.bf16.mxu0 0
    %1930 = vmatpush1.bf16.msra.mxu0 %v1890
    %1931 = vmatprep.subr.bf16.mxu0 0
    %1932 = vmatpush1.bf16.msra.mxu0 %v1891
    %1933 = vmatprep.subr.bf16.mxu0 0
    %1934 = vmatpush1.bf16.msra.mxu0 %v1892
    %1935 = vmatprep.subr.bf16.mxu0 0
    %1936 = vmatpush1.bf16.msra.mxu0 %v1893
    %1937 = vmatprep.subr.bf16.mxu0 0
    %1938 = vmatpush1.bf16.msra.mxu0 %v1894
    %1939 = vmatprep.subr.bf16.mxu0 0
    %1940 = vmatpush1.bf16.msra.mxu0 %v1895
    %1941 = vmatprep.subr.bf16.mxu0 0
    %1942 = vmatpush1.bf16.msra.mxu0 %v1896
    %1943 = vmatprep.subr.bf16.mxu0 0
    %1944 = vmatpush1.bf16.msra.mxu0 %v1897
    %1945 = vmatprep.subr.bf16.mxu0 0
    %1946 = vmatpush1.bf16.msra.mxu0 %v1898
    %1947 = vmatprep.mubr.bf16.mxu0 %v1818
    %1948 = vmatmul.mubr.bf16.gmra.mrb[0].mxu0 %v1817
    %v1949 = vpop.f32.mrb[0].mxu0
    %v1950 = vadd.f32 0.0, %v1949
    %v1951 = vpop.f32.mrb[0].mxu0
    %v1952 = vpop.f32.mrb[0].mxu0
    %v1953 = vpop.f32.mrb[0].mxu0
    %1954 = vdwg.mxu0
    %v1955 = vadd.f32 %v1769, %v1950
    %s1956 = scalar_lea.vmem %s0, 44
    %v1957 = vld [vmem:[%s1956] sm:$0xf]
    %v1958 = vunpack.c.l.bf16 %v1957
    %s1959 = scalar_lea.vmem [#allocation2], 1280
    %v1960 = vld [vmem:[%s1959] sm:$0xf]
    %v1961 = vld [vmem:[%s1959 + $0x4] sm:$0xf]
    %v1962 = vld [vmem:[%s1959 + $0x8] sm:$0xf]
    %v1963 = vld [vmem:[%s1959 + $0xc] sm:$0xf]
    %v1964 = vld [vmem:[%s1959 + $0x10] sm:$0xf]
    %v1965 = vld [vmem:[%s1959 + $0x14] sm:$0xf]
    %v1966 = vld [vmem:[%s1959 + $0x18] sm:$0xf]
    %v1967 = vld [vmem:[%s1959 + $0x1c] sm:$0xf]
    %v1968 = vld [vmem:[%s1959 + $0x20] sm:$0xf]
    %v1969 = vld [vmem:[%s1959 + $0x24] sm:$0xf]
    %v1970 = vld [vmem:[%s1959 + $0x28] sm:$0xf]
    %v1971 = vld [vmem:[%s1959 + $0x2c] sm:$0xf]
    %v1972 = vld [vmem:[%s1959 + $0x30] sm:$0xf]
    %v1973 = vld [vmem:[%s1959 + $0x34] sm:$0xf]
    %v1974 = vld [vmem:[%s1959 + $0x38] sm:$0xf]
    %v1975 = vld [vmem:[%s1959 + $0x3c] sm:$0xf]
    %v1976 = vld [vmem:[%s1959 + $0x40] sm:$0xf]
    %v1977 = vld [vmem:[%s1959 + $0x44] sm:$0xf]
    %v1978 = vld [vmem:[%s1959 + $0x48] sm:$0xf]
    %v1979 = vld [vmem:[%s1959 + $0x4c] sm:$0xf]
    %v1980 = vld [vmem:[%s1959 + $0x50] sm:$0xf]
    %v1981 = vld [vmem:[%s1959 + $0x54] sm:$0xf]
    %v1982 = vld [vmem:[%s1959 + $0x58] sm:$0xf]
    %v1983 = vld [vmem:[%s1959 + $0x5c] sm:$0xf]
    %v1984 = vld [vmem:[%s1959 + $0x60] sm:$0xf]
    %v1985 = vld [vmem:[%s1959 + $0x64] sm:$0xf]
    %v1986 = vld [vmem:[%s1959 + $0x68] sm:$0xf]
    %v1987 = vld [vmem:[%s1959 + $0x6c] sm:$0xf]
    %v1988 = vld [vmem:[%s1959 + $0x70] sm:$0xf]
    %v1989 = vld [vmem:[%s1959 + $0x74] sm:$0xf]
    %v1990 = vld [vmem:[%s1959 + $0x78] sm:$0xf]
    %v1991 = vld [vmem:[%s1959 + $0x7c] sm:$0xf]
    %1993 = vset.pattern.permute.xlu0 0
    %1994 = vperm.xlu0 %1993, %v1958
    %v1995 = vpop.permute.xlu0 %1994
    %v1997 = vmul.f32 %v1995, %v1955
    %1998 = vset.pattern.permute.xlu0 1
    %1999 = vperm.xlu0 %1998, %v1958
    %v2000 = vpop.permute.xlu0 %1999
    %v2002 = vmul.f32 %v2000, %v1955
    %v2003 = vpack.c.bf16 %v1997, %v1997
    %v2004 = vpack.c.bf16 %v2002, %v2002
    %v2037 = vunpack.c.l.b16 %v1960
    %v2038 = vunpack.c.l.b16 %v1961
    %v2039 = vunpack.c.l.b16 %v1962
    %v2040 = vunpack.c.l.b16 %v1963
    %v2041 = vunpack.c.l.b16 %v1964
    %v2042 = vunpack.c.l.b16 %v1965
    %v2043 = vunpack.c.l.b16 %v1966
    %v2044 = vunpack.c.l.b16 %v1967
    %v2045 = vunpack.c.l.b16 %v1968
    %v2046 = vunpack.c.l.b16 %v1969
    %v2047 = vunpack.c.l.b16 %v1970
    %v2048 = vunpack.c.l.b16 %v1971
    %v2049 = vunpack.c.l.b16 %v1972
    %v2050 = vunpack.c.l.b16 %v1973
    %v2051 = vunpack.c.l.b16 %v1974
    %v2052 = vunpack.c.l.b16 %v1975
    %v2053 = vunpack.c.l.b16 %v1976
    %v2054 = vunpack.c.l.b16 %v1977
    %v2055 = vunpack.c.l.b16 %v1978
    %v2056 = vunpack.c.l.b16 %v1979
    %v2057 = vunpack.c.l.b16 %v1980
    %v2058 = vunpack.c.l.b16 %v1981
    %v2059 = vunpack.c.l.b16 %v1982
    %v2060 = vunpack.c.l.b16 %v1983
    %v2061 = vunpack.c.l.b16 %v1984
    %v2062 = vunpack.c.l.b16 %v1985
    %v2063 = vunpack.c.l.b16 %v1986
    %v2064 = vunpack.c.l.b16 %v1987
    %v2065 = vunpack.c.l.b16 %v1988
    %v2066 = vunpack.c.l.b16 %v1989
    %v2067 = vunpack.c.l.b16 %v1990
    %v2068 = vunpack.c.l.b16 %v1991
    %v2069 = vpack.c.b16 %v2038, %v2037
    %v2070 = vpack.c.b16 %v2040, %v2039
    %v2071 = vpack.c.b16 %v2042, %v2041
    %v2072 = vpack.c.b16 %v2044, %v2043
    %v2073 = vpack.c.b16 %v2046, %v2045
    %v2074 = vpack.c.b16 %v2048, %v2047
    %v2075 = vpack.c.b16 %v2050, %v2049
    %v2076 = vpack.c.b16 %v2052, %v2051
    %v2077 = vpack.c.b16 %v2054, %v2053
    %v2078 = vpack.c.b16 %v2056, %v2055
    %v2079 = vpack.c.b16 %v2058, %v2057
    %v2080 = vpack.c.b16 %v2060, %v2059
    %v2081 = vpack.c.b16 %v2062, %v2061
    %v2082 = vpack.c.b16 %v2064, %v2063
    %v2083 = vpack.c.b16 %v2066, %v2065
    %v2084 = vpack.c.b16 %v2068, %v2067
    %2101 = vmatprep.subr.bf16.mxu0 0
    %2102 = vmatpush1.bf16.msra.mxu0 %v2069
    %2103 = vmatprep.subr.bf16.mxu0 0
    %2104 = vmatpush1.bf16.msra.mxu0 %v2070
    %2105 = vmatprep.subr.bf16.mxu0 0
    %2106 = vmatpush1.bf16.msra.mxu0 %v2071
    %2107 = vmatprep.subr.bf16.mxu0 0
    %2108 = vmatpush1.bf16.msra.mxu0 %v2072
    %2109 = vmatprep.subr.bf16.mxu0 0
    %2110 = vmatpush1.bf16.msra.mxu0 %v2073
    %2111 = vmatprep.subr.bf16.mxu0 0
    %2112 = vmatpush1.bf16.msra.mxu0 %v2074
    %2113 = vmatprep.subr.bf16.mxu0 0
    %2114 = vmatpush1.bf16.msra.mxu0 %v2075
    %2115 = vmatprep.subr.bf16.mxu0 0
    %2116 = vmatpush1.bf16.msra.mxu0 %v2076
    %2117 = vmatprep.subr.bf16.mxu0 0
    %2118 = vmatpush1.bf16.msra.mxu0 %v2077
    %2119 = vmatprep.subr.bf16.mxu0 0
    %2120 = vmatpush1.bf16.msra.mxu0 %v2078
    %2121 = vmatprep.subr.bf16.mxu0 0
    %2122 = vmatpush1.bf16.msra.mxu0 %v2079
    %2123 = vmatprep.subr.bf16.mxu0 0
    %2124 = vmatpush1.bf16.msra.mxu0 %v2080
    %2125 = vmatprep.subr.bf16.mxu0 0
    %2126 = vmatpush1.bf16.msra.mxu0 %v2081
    %2127 = vmatprep.subr.bf16.mxu0 0
    %2128 = vmatpush1.bf16.msra.mxu0 %v2082
    %2129 = vmatprep.subr.bf16.mxu0 0
    %2130 = vmatpush1.bf16.msra.mxu0 %v2083
    %2131 = vmatprep.subr.bf16.mxu0 0
    %2132 = vmatpush1.bf16.msra.mxu0 %v2084
    %2133 = vmatprep.mubr.bf16.mxu0 %v2004
    %2134 = vmatmul.mubr.bf16.gmra.mrb[0].mxu0 %v2003
    %v2135 = vpop.f32.mrb[0].mxu0
    %v2136 = vadd.f32 0.0, %v2135
    %v2137 = vpop.f32.mrb[0].mxu0
    %v2138 = vpop.f32.mrb[0].mxu0
    %v2139 = vpop.f32.mrb[0].mxu0
    %2140 = vdwg.mxu0
    %v2141 = vadd.f32 %v1955, %v2136
    %s2142 = scalar_lea.vmem %s0, 48
    %v2143 = vld [vmem:[%s2142] sm:$0xf]
    %v2144 = vunpack.c.l.bf16 %v2143
    %s2145 = scalar_lea.vmem [#allocation2], 1408
    %v2146 = vld [vmem:[%s2145] sm:$0xf]
    %v2147 = vld [vmem:[%s2145 + $0x4] sm:$0xf]
    %v2148 = vld [vmem:[%s2145 + $0x8] sm:$0xf]
    %v2149 = vld [vmem:[%s2145 + $0xc] sm:$0xf]
    %v2150 = vld [vmem:[%s2145 + $0x10] sm:$0xf]
    %v2151 = vld [vmem:[%s2145 + $0x14] sm:$0xf]
    %v2152 = vld [vmem:[%s2145 + $0x18] sm:$0xf]
    %v2153 = vld [vmem:[%s2145 + $0x1c] sm:$0xf]
    %v2154 = vld [vmem:[%s2145 + $0x20] sm:$0xf]
    %v2155 = vld [vmem:[%s2145 + $0x24] sm:$0xf]
    %v2156 = vld [vmem:[%s2145 + $0x28] sm:$0xf]
    %v2157 = vld [vmem:[%s2145 + $0x2c] sm:$0xf]
    %v2158 = vld [vmem:[%s2145 + $0x30] sm:$0xf]
    %v2159 = vld [vmem:[%s2145 + $0x34] sm:$0xf]
    %v2160 = vld [vmem:[%s2145 + $0x38] sm:$0xf]
    %v2161 = vld [vmem:[%s2145 + $0x3c] sm:$0xf]
    %v2162 = vld [vmem:[%s2145 + $0x40] sm:$0xf]
    %v2163 = vld [vmem:[%s2145 + $0x44] sm:$0xf]
    %v2164 = vld [vmem:[%s2145 + $0x48] sm:$0xf]
    %v2165 = vld [vmem:[%s2145 + $0x4c] sm:$0xf]
    %v2166 = vld [vmem:[%s2145 + $0x50] sm:$0xf]
    %v2167 = vld [vmem:[%s2145 + $0x54] sm:$0xf]
    %v2168 = vld [vmem:[%s2145 + $0x58] sm:$0xf]
    %v2169 = vld [vmem:[%s2145 + $0x5c] sm:$0xf]
    %v2170 = vld [vmem:[%s2145 + $0x60] sm:$0xf]
    %v2171 = vld [vmem:[%s2145 + $0x64] sm:$0xf]
    %v2172 = vld [vmem:[%s2145 + $0x68] sm:$0xf]
    %v2173 = vld [vmem:[%s2145 + $0x6c] sm:$0xf]
    %v2174 = vld [vmem:[%s2145 + $0x70] sm:$0xf]
    %v2175 = vld [vmem:[%s2145 + $0x74] sm:$0xf]
    %v2176 = vld [vmem:[%s2145 + $0x78] sm:$0xf]
    %v2177 = vld [vmem:[%s2145 + $0x7c] sm:$0xf]
    %2179 = vset.pattern.permute.xlu0 0
    %2180 = vperm.xlu0 %2179, %v2144
    %v2181 = vpop.permute.xlu0 %2180
    %v2183 = vmul.f32 %v2181, %v2141
    %2184 = vset.pattern.permute.xlu0 1
    %2185 = vperm.xlu0 %2184, %v2144
    %v2186 = vpop.permute.xlu0 %2185
    %v2188 = vmul.f32 %v2186, %v2141
    %v2189 = vpack.c.bf16 %v2183, %v2183
    %v2190 = vpack.c.bf16 %v2188, %v2188
    %v2223 = vunpack.c.l.b16 %v2146
    %v2224 = vunpack.c.l.b16 %v2147
    %v2225 = vunpack.c.l.b16 %v2148
    %v2226 = vunpack.c.l.b16 %v2149
    %v2227 = vunpack.c.l.b16 %v2150
    %v2228 = vunpack.c.l.b16 %v2151
    %v2229 = vunpack.c.l.b16 %v2152
    %v2230 = vunpack.c.l.b16 %v2153
    %v2231 = vunpack.c.l.b16 %v2154
    %v2232 = vunpack.c.l.b16 %v2155
    %v2233 = vunpack.c.l.b16 %v2156
    %v2234 = vunpack.c.l.b16 %v2157
    %v2235 = vunpack.c.l.b16 %v2158
    %v2236 = vunpack.c.l.b16 %v2159
    %v2237 = vunpack.c.l.b16 %v2160
    %v2238 = vunpack.c.l.b16 %v2161
    %v2239 = vunpack.c.l.b16 %v2162
    %v2240 = vunpack.c.l.b16 %v2163
    %v2241 = vunpack.c.l.b16 %v2164
    %v2242 = vunpack.c.l.b16 %v2165
    %v2243 = vunpack.c.l.b16 %v2166
    %v2244 = vunpack.c.l.b16 %v2167
    %v2245 = vunpack.c.l.b16 %v2168
    %v2246 = vunpack.c.l.b16 %v2169
    %v2247 = vunpack.c.l.b16 %v2170
    %v2248 = vunpack.c.l.b16 %v2171
    %v2249 = vunpack.c.l.b16 %v2172
    %v2250 = vunpack.c.l.b16 %v2173
    %v2251 = vunpack.c.l.b16 %v2174
    %v2252 = vunpack.c.l.b16 %v2175
    %v2253 = vunpack.c.l.b16 %v2176
    %v2254 = vunpack.c.l.b16 %v2177
    %v2255 = vpack.c.b16 %v2224, %v2223
    %v2256 = vpack.c.b16 %v2226, %v2225
    %v2257 = vpack.c.b16 %v2228, %v2227
    %v2258 = vpack.c.b16 %v2230, %v2229
    %v2259 = vpack.c.b16 %v2232, %v2231
    %v2260 = vpack.c.b16 %v2234, %v2233
    %v2261 = vpack.c.b16 %v2236, %v2235
    %v2262 = vpack.c.b16 %v2238, %v2237
    %v2263 = vpack.c.b16 %v2240, %v2239
    %v2264 = vpack.c.b16 %v2242, %v2241
    %v2265 = vpack.c.b16 %v2244, %v2243
    %v2266 = vpack.c.b16 %v2246, %v2245
    %v2267 = vpack.c.b16 %v2248, %v2247
    %v2268 = vpack.c.b16 %v2250, %v2249
    %v2269 = vpack.c.b16 %v2252, %v2251
    %v2270 = vpack.c.b16 %v2254, %v2253
    %2287 = vmatprep.subr.bf16.mxu0 0
    %2288 = vmatpush1.bf16.msra.mxu0 %v2255
    %2289 = vmatprep.subr.bf16.mxu0 0
    %2290 = vmatpush1.bf16.msra.mxu0 %v2256
    %2291 = vmatprep.subr.bf16.mxu0 0
    %2292 = vmatpush1.bf16.msra.mxu0 %v2257
    %2293 = vmatprep.subr.bf16.mxu0 0
    %2294 = vmatpush1.bf16.msra.mxu0 %v2258
    %2295 = vmatprep.subr.bf16.mxu0 0
    %2296 = vmatpush1.bf16.msra.mxu0 %v2259
    %2297 = vmatprep.subr.bf16.mxu0 0
    %2298 = vmatpush1.bf16.msra.mxu0 %v2260
    %2299 = vmatprep.subr.bf16.mxu0 0
    %2300 = vmatpush1.bf16.msra.mxu0 %v2261
    %2301 = vmatprep.subr.bf16.mxu0 0
    %2302 = vmatpush1.bf16.msra.mxu0 %v2262
    %2303 = vmatprep.subr.bf16.mxu0 0
    %2304 = vmatpush1.bf16.msra.mxu0 %v2263
    %2305 = vmatprep.subr.bf16.mxu0 0
    %2306 = vmatpush1.bf16.msra.mxu0 %v2264
    %2307 = vmatprep.subr.bf16.mxu0 0
    %2308 = vmatpush1.bf16.msra.mxu0 %v2265
    %2309 = vmatprep.subr.bf16.mxu0 0
    %2310 = vmatpush1.bf16.msra.mxu0 %v2266
    %2311 = vmatprep.subr.bf16.mxu0 0
    %2312 = vmatpush1.bf16.msra.mxu0 %v2267
    %2313 = vmatprep.subr.bf16.mxu0 0
    %2314 = vmatpush1.bf16.msra.mxu0 %v2268
    %2315 = vmatprep.subr.bf16.mxu0 0
    %2316 = vmatpush1.bf16.msra.mxu0 %v2269
    %2317 = vmatprep.subr.bf16.mxu0 0
    %2318 = vmatpush1.bf16.msra.mxu0 %v2270
    %2319 = vmatprep.mubr.bf16.mxu0 %v2190
    %2320 = vmatmul.mubr.bf16.gmra.mrb[0].mxu0 %v2189
    %v2321 = vpop.f32.mrb[0].mxu0
    %v2322 = vadd.f32 0.0, %v2321
    %v2323 = vpop.f32.mrb[0].mxu0
    %v2324 = vpop.f32.mrb[0].mxu0
    %v2325 = vpop.f32.mrb[0].mxu0
    %2326 = vdwg.mxu0
    %v2327 = vadd.f32 %v2141, %v2322
    %s2328 = scalar_lea.vmem %s0, 52
    %v2329 = vld [vmem:[%s2328] sm:$0xf]
    %v2330 = vunpack.c.l.bf16 %v2329
    %s2331 = scalar_lea.vmem [#allocation2], 1536
    %v2332 = vld [vmem:[%s2331] sm:$0xf]
    %v2333 = vld [vmem:[%s2331 + $0x4] sm:$0xf]
    %v2334 = vld [vmem:[%s2331 + $0x8] sm:$0xf]
    %v2335 = vld [vmem:[%s2331 + $0xc] sm:$0xf]
    %v2336 = vld [vmem:[%s2331 + $0x10] sm:$0xf]
    %v2337 = vld [vmem:[%s2331 + $0x14] sm:$0xf]
    %v2338 = vld [vmem:[%s2331 + $0x18] sm:$0xf]
    %v2339 = vld [vmem:[%s2331 + $0x1c] sm:$0xf]
    %v2340 = vld [vmem:[%s2331 + $0x20] sm:$0xf]
    %v2341 = vld [vmem:[%s2331 + $0x24] sm:$0xf]
    %v2342 = vld [vmem:[%s2331 + $0x28] sm:$0xf]
    %v2343 = vld [vmem:[%s2331 + $0x2c] sm:$0xf]
    %v2344 = vld [vmem:[%s2331 + $0x30] sm:$0xf]
    %v2345 = vld [vmem:[%s2331 + $0x34] sm:$0xf]
    %v2346 = vld [vmem:[%s2331 + $0x38] sm:$0xf]
    %v2347 = vld [vmem:[%s2331 + $0x3c] sm:$0xf]
    %v2348 = vld [vmem:[%s2331 + $0x40] sm:$0xf]
    %v2349 = vld [vmem:[%s2331 + $0x44] sm:$0xf]
    %v2350 = vld [vmem:[%s2331 + $0x48] sm:$0xf]
    %v2351 = vld [vmem:[%s2331 + $0x4c] sm:$0xf]
    %v2352 = vld [vmem:[%s2331 + $0x50] sm:$0xf]
    %v2353 = vld [vmem:[%s2331 + $0x54] sm:$0xf]
    %v2354 = vld [vmem:[%s2331 + $0x58] sm:$0xf]
    %v2355 = vld [vmem:[%s2331 + $0x5c] sm:$0xf]
    %v2356 = vld [vmem:[%s2331 + $0x60] sm:$0xf]
    %v2357 = vld [vmem:[%s2331 + $0x64] sm:$0xf]
    %v2358 = vld [vmem:[%s2331 + $0x68] sm:$0xf]
    %v2359 = vld [vmem:[%s2331 + $0x6c] sm:$0xf]
    %v2360 = vld [vmem:[%s2331 + $0x70] sm:$0xf]
    %v2361 = vld [vmem:[%s2331 + $0x74] sm:$0xf]
    %v2362 = vld [vmem:[%s2331 + $0x78] sm:$0xf]
    %v2363 = vld [vmem:[%s2331 + $0x7c] sm:$0xf]
    %2365 = vset.pattern.permute.xlu0 0
    %2366 = vperm.xlu0 %2365, %v2330
    %v2367 = vpop.permute.xlu0 %2366
    %v2369 = vmul.f32 %v2367, %v2327
    %2370 = vset.pattern.permute.xlu0 1
    %2371 = vperm.xlu0 %2370, %v2330
    %v2372 = vpop.permute.xlu0 %2371
    %v2374 = vmul.f32 %v2372, %v2327
    %v2375 = vpack.c.bf16 %v2369, %v2369
    %v2376 = vpack.c.bf16 %v2374, %v2374
    %v2409 = vunpack.c.l.b16 %v2332
    %v2410 = vunpack.c.l.b16 %v2333
    %v2411 = vunpack.c.l.b16 %v2334
    %v2412 = vunpack.c.l.b16 %v2335
    %v2413 = vunpack.c.l.b16 %v2336
    %v2414 = vunpack.c.l.b16 %v2337
    %v2415 = vunpack.c.l.b16 %v2338
    %v2416 = vunpack.c.l.b16 %v2339
    %v2417 = vunpack.c.l.b16 %v2340
    %v2418 = vunpack.c.l.b16 %v2341
    %v2419 = vunpack.c.l.b16 %v2342
    %v2420 = vunpack.c.l.b16 %v2343
    %v2421 = vunpack.c.l.b16 %v2344
    %v2422 = vunpack.c.l.b16 %v2345
    %v2423 = vunpack.c.l.b16 %v2346
    %v2424 = vunpack.c.l.b16 %v2347
    %v2425 = vunpack.c.l.b16 %v2348
    %v2426 = vunpack.c.l.b16 %v2349
    %v2427 = vunpack.c.l.b16 %v2350
    %v2428 = vunpack.c.l.b16 %v2351
    %v2429 = vunpack.c.l.b16 %v2352
    %v2430 = vunpack.c.l.b16 %v2353
    %v2431 = vunpack.c.l.b16 %v2354
    %v2432 = vunpack.c.l.b16 %v2355
    %v2433 = vunpack.c.l.b16 %v2356
    %v2434 = vunpack.c.l.b16 %v2357
    %v2435 = vunpack.c.l.b16 %v2358
    %v2436 = vunpack.c.l.b16 %v2359
    %v2437 = vunpack.c.l.b16 %v2360
    %v2438 = vunpack.c.l.b16 %v2361
    %v2439 = vunpack.c.l.b16 %v2362
    %v2440 = vunpack.c.l.b16 %v2363
    %v2441 = vpack.c.b16 %v2410, %v2409
    %v2442 = vpack.c.b16 %v2412, %v2411
    %v2443 = vpack.c.b16 %v2414, %v2413
    %v2444 = vpack.c.b16 %v2416, %v2415
    %v2445 = vpack.c.b16 %v2418, %v2417
    %v2446 = vpack.c.b16 %v2420, %v2419
    %v2447 = vpack.c.b16 %v2422, %v2421
    %v2448 = vpack.c.b16 %v2424, %v2423
    %v2449 = vpack.c.b16 %v2426, %v2425
    %v2450 = vpack.c.b16 %v2428, %v2427
    %v2451 = vpack.c.b16 %v2430, %v2429
    %v2452 = vpack.c.b16 %v2432, %v2431
    %v2453 = vpack.c.b16 %v2434, %v2433
    %v2454 = vpack.c.b16 %v2436, %v2435
    %v2455 = vpack.c.b16 %v2438, %v2437
    %v2456 = vpack.c.b16 %v2440, %v2439
    %2473 = vmatprep.subr.bf16.mxu0 0
    %2474 = vmatpush1.bf16.msra.mxu0 %v2441
    %2475 = vmatprep.subr.bf16.mxu0 0
    %2476 = vmatpush1.bf16.msra.mxu0 %v2442
    %2477 = vmatprep.subr.bf16.mxu0 0
    %2478 = vmatpush1.bf16.msra.mxu0 %v2443
    %2479 = vmatprep.subr.bf16.mxu0 0
    %2480 = vmatpush1.bf16.msra.mxu0 %v2444
    %2481 = vmatprep.subr.bf16.mxu0 0
    %2482 = vmatpush1.bf16.msra.mxu0 %v2445
    %2483 = vmatprep.subr.bf16.mxu0 0
    %2484 = vmatpush1.bf16.msra.mxu0 %v2446
    %2485 = vmatprep.subr.bf16.mxu0 0
    %2486 = vmatpush1.bf16.msra.mxu0 %v2447
    %2487 = vmatprep.subr.bf16.mxu0 0
    %2488 = vmatpush1.bf16.msra.mxu0 %v2448
    %2489 = vmatprep.subr.bf16.mxu0 0
    %2490 = vmatpush1.bf16.msra.mxu0 %v2449
    %2491 = vmatprep.subr.bf16.mxu0 0
    %2492 = vmatpush1.bf16.msra.mxu0 %v2450
    %2493 = vmatprep.subr.bf16.mxu0 0
    %2494 = vmatpush1.bf16.msra.mxu0 %v2451
    %2495 = vmatprep.subr.bf16.mxu0 0
    %2496 = vmatpush1.bf16.msra.mxu0 %v2452
    %2497 = vmatprep.subr.bf16.mxu0 0
    %2498 = vmatpush1.bf16.msra.mxu0 %v2453
    %2499 = vmatprep.subr.bf16.mxu0 0
    %2500 = vmatpush1.bf16.msra.mxu0 %v2454
    %2501 = vmatprep.subr.bf16.mxu0 0
    %2502 = vmatpush1.bf16.msra.mxu0 %v2455
    %2503 = vmatprep.subr.bf16.mxu0 0
    %2504 = vmatpush1.bf16.msra.mxu0 %v2456
    %2505 = vmatprep.mubr.bf16.mxu0 %v2376
    %2506 = vmatmul.mubr.bf16.gmra.mrb[0].mxu0 %v2375
    %v2507 = vpop.f32.mrb[0].mxu0
    %v2508 = vadd.f32 0.0, %v2507
    %v2509 = vpop.f32.mrb[0].mxu0
    %v2510 = vpop.f32.mrb[0].mxu0
    %v2511 = vpop.f32.mrb[0].mxu0
    %2512 = vdwg.mxu0
    %v2513 = vadd.f32 %v2327, %v2508
    %s2514 = scalar_lea.vmem %s0, 56
    %v2515 = vld [vmem:[%s2514] sm:$0xf]
    %v2516 = vunpack.c.l.bf16 %v2515
    %s2517 = scalar_lea.vmem [#allocation2], 1664
    %v2518 = vld [vmem:[%s2517] sm:$0xf]
    %v2519 = vld [vmem:[%s2517 + $0x4] sm:$0xf]
    %v2520 = vld [vmem:[%s2517 + $0x8] sm:$0xf]
    %v2521 = vld [vmem:[%s2517 + $0xc] sm:$0xf]
    %v2522 = vld [vmem:[%s2517 + $0x10] sm:$0xf]
    %v2523 = vld [vmem:[%s2517 + $0x14] sm:$0xf]
    %v2524 = vld [vmem:[%s2517 + $0x18] sm:$0xf]
    %v2525 = vld [vmem:[%s2517 + $0x1c] sm:$0xf]
    %v2526 = vld [vmem:[%s2517 + $0x20] sm:$0xf]
    %v2527 = vld [vmem:[%s2517 + $0x24] sm:$0xf]
    %v2528 = vld [vmem:[%s2517 + $0x28] sm:$0xf]
    %v2529 = vld [vmem:[%s2517 + $0x2c] sm:$0xf]
    %v2530 = vld [vmem:[%s2517 + $0x30] sm:$0xf]
    %v2531 = vld [vmem:[%s2517 + $0x34] sm:$0xf]
    %v2532 = vld [vmem:[%s2517 + $0x38] sm:$0xf]
    %v2533 = vld [vmem:[%s2517 + $0x3c] sm:$0xf]
    %v2534 = vld [vmem:[%s2517 + $0x40] sm:$0xf]
    %v2535 = vld [vmem:[%s2517 + $0x44] sm:$0xf]
    %v2536 = vld [vmem:[%s2517 + $0x48] sm:$0xf]
    %v2537 = vld [vmem:[%s2517 + $0x4c] sm:$0xf]
    %v2538 = vld [vmem:[%s2517 + $0x50] sm:$0xf]
    %v2539 = vld [vmem:[%s2517 + $0x54] sm:$0xf]
    %v2540 = vld [vmem:[%s2517 + $0x58] sm:$0xf]
    %v2541 = vld [vmem:[%s2517 + $0x5c] sm:$0xf]
    %v2542 = vld [vmem:[%s2517 + $0x60] sm:$0xf]
    %v2543 = vld [vmem:[%s2517 + $0x64] sm:$0xf]
    %v2544 = vld [vmem:[%s2517 + $0x68] sm:$0xf]
    %v2545 = vld [vmem:[%s2517 + $0x6c] sm:$0xf]
    %v2546 = vld [vmem:[%s2517 + $0x70] sm:$0xf]
    %v2547 = vld [vmem:[%s2517 + $0x74] sm:$0xf]
    %v2548 = vld [vmem:[%s2517 + $0x78] sm:$0xf]
    %v2549 = vld [vmem:[%s2517 + $0x7c] sm:$0xf]
    %2551 = vset.pattern.permute.xlu0 0
    %2552 = vperm.xlu0 %2551, %v2516
    %v2553 = vpop.permute.xlu0 %2552
    %v2555 = vmul.f32 %v2553, %v2513
    %2556 = vset.pattern.permute.xlu0 1
    %2557 = vperm.xlu0 %2556, %v2516
    %v2558 = vpop.permute.xlu0 %2557
    %v2560 = vmul.f32 %v2558, %v2513
    %v2561 = vpack.c.bf16 %v2555, %v2555
    %v2562 = vpack.c.bf16 %v2560, %v2560
    %v2595 = vunpack.c.l.b16 %v2518
    %v2596 = vunpack.c.l.b16 %v2519
    %v2597 = vunpack.c.l.b16 %v2520
    %v2598 = vunpack.c.l.b16 %v2521
    %v2599 = vunpack.c.l.b16 %v2522
    %v2600 = vunpack.c.l.b16 %v2523
    %v2601 = vunpack.c.l.b16 %v2524
    %v2602 = vunpack.c.l.b16 %v2525
    %v2603 = vunpack.c.l.b16 %v2526
    %v2604 = vunpack.c.l.b16 %v2527
    %v2605 = vunpack.c.l.b16 %v2528
    %v2606 = vunpack.c.l.b16 %v2529
    %v2607 = vunpack.c.l.b16 %v2530
    %v2608 = vunpack.c.l.b16 %v2531
    %v2609 = vunpack.c.l.b16 %v2532
    %v2610 = vunpack.c.l.b16 %v2533
    %v2611 = vunpack.c.l.b16 %v2534
    %v2612 = vunpack.c.l.b16 %v2535
    %v2613 = vunpack.c.l.b16 %v2536
    %v2614 = vunpack.c.l.b16 %v2537
    %v2615 = vunpack.c.l.b16 %v2538
    %v2616 = vunpack.c.l.b16 %v2539
    %v2617 = vunpack.c.l.b16 %v2540
    %v2618 = vunpack.c.l.b16 %v2541
    %v2619 = vunpack.c.l.b16 %v2542
    %v2620 = vunpack.c.l.b16 %v2543
    %v2621 = vunpack.c.l.b16 %v2544
    %v2622 = vunpack.c.l.b16 %v2545
    %v2623 = vunpack.c.l.b16 %v2546
    %v2624 = vunpack.c.l.b16 %v2547
    %v2625 = vunpack.c.l.b16 %v2548
    %v2626 = vunpack.c.l.b16 %v2549
    %v2627 = vpack.c.b16 %v2596, %v2595
    %v2628 = vpack.c.b16 %v2598, %v2597
    %v2629 = vpack.c.b16 %v2600, %v2599
    %v2630 = vpack.c.b16 %v2602, %v2601
    %v2631 = vpack.c.b16 %v2604, %v2603
    %v2632 = vpack.c.b16 %v2606, %v2605
    %v2633 = vpack.c.b16 %v2608, %v2607
    %v2634 = vpack.c.b16 %v2610, %v2609
    %v2635 = vpack.c.b16 %v2612, %v2611
    %v2636 = vpack.c.b16 %v2614, %v2613
    %v2637 = vpack.c.b16 %v2616, %v2615
    %v2638 = vpack.c.b16 %v2618, %v2617
    %v2639 = vpack.c.b16 %v2620, %v2619
    %v2640 = vpack.c.b16 %v2622, %v2621
    %v2641 = vpack.c.b16 %v2624, %v2623
    %v2642 = vpack.c.b16 %v2626, %v2625
    %2659 = vmatprep.subr.bf16.mxu0 0
    %2660 = vmatpush1.bf16.msra.mxu0 %v2627
    %2661 = vmatprep.subr.bf16.mxu0 0
    %2662 = vmatpush1.bf16.msra.mxu0 %v2628
    %2663 = vmatprep.subr.bf16.mxu0 0
    %2664 = vmatpush1.bf16.msra.mxu0 %v2629
    %2665 = vmatprep.subr.bf16.mxu0 0
    %2666 = vmatpush1.bf16.msra.mxu0 %v2630
    %2667 = vmatprep.subr.bf16.mxu0 0
    %2668 = vmatpush1.bf16.msra.mxu0 %v2631
    %2669 = vmatprep.subr.bf16.mxu0 0
    %2670 = vmatpush1.bf16.msra.mxu0 %v2632
    %2671 = vmatprep.subr.bf16.mxu0 0
    %2672 = vmatpush1.bf16.msra.mxu0 %v2633
    %2673 = vmatprep.subr.bf16.mxu0 0
    %2674 = vmatpush1.bf16.msra.mxu0 %v2634
    %2675 = vmatprep.subr.bf16.mxu0 0
    %2676 = vmatpush1.bf16.msra.mxu0 %v2635
    %2677 = vmatprep.subr.bf16.mxu0 0
    %2678 = vmatpush1.bf16.msra.mxu0 %v2636
    %2679 = vmatprep.subr.bf16.mxu0 0
    %2680 = vmatpush1.bf16.msra.mxu0 %v2637
    %2681 = vmatprep.subr.bf16.mxu0 0
    %2682 = vmatpush1.bf16.msra.mxu0 %v2638
    %2683 = vmatprep.subr.bf16.mxu0 0
    %2684 = vmatpush1.bf16.msra.mxu0 %v2639
    %2685 = vmatprep.subr.bf16.mxu0 0
    %2686 = vmatpush1.bf16.msra.mxu0 %v2640
    %2687 = vmatprep.subr.bf16.mxu0 0
    %2688 = vmatpush1.bf16.msra.mxu0 %v2641
    %2689 = vmatprep.subr.bf16.mxu0 0
    %2690 = vmatpush1.bf16.msra.mxu0 %v2642
    %2691 = vmatprep.mubr.bf16.mxu0 %v2562
    %2692 = vmatmul.mubr.bf16.gmra.mrb[0].mxu0 %v2561
    %v2693 = vpop.f32.mrb[0].mxu0
    %v2694 = vadd.f32 0.0, %v2693
    %v2695 = vpop.f32.mrb[0].mxu0
    %v2696 = vpop.f32.mrb[0].mxu0
    %v2697 = vpop.f32.mrb[0].mxu0
    %2698 = vdwg.mxu0
    %v2699 = vadd.f32 %v2513, %v2694
    %s2700 = scalar_lea.vmem %s0, 60
    %v2701 = vld [vmem:[%s2700] sm:$0xf]
    %v2702 = vunpack.c.l.bf16 %v2701
    %2704 = vset.pattern.permute.xlu0 0
    %2705 = vperm.xlu0 %2704, %v2702
    %v2706 = vpop.permute.xlu0 %2705
    %v2708 = vmul.f32 %v2706, %v2699
    %2709 = vset.pattern.permute.xlu0 1
    %2710 = vperm.xlu0 %2709, %v2702
    %v2711 = vpop.permute.xlu0 %2710
    %v2713 = vmul.f32 %v2711, %v2699
    %v2714 = vpack.c.bf16 %v2699, %v2699
    %v2715 = vpack.c.bf16 %v2708, %v2708
    %v2716 = vpack.c.bf16 %v2713, %v2713
    %v2717 = vld [vmem:[#allocation5] sm:$0xf]
    %v2718 = vld [vmem:[#allocation5 + $0x4] sm:$0xf]
    %v2719 = vld [vmem:[#allocation5 + $0x8] sm:$0xf]
    %v2720 = vld [vmem:[#allocation5 + $0xc] sm:$0xf]
    %v2721 = vld [vmem:[#allocation5 + $0x10] sm:$0xf]
    %v2722 = vld [vmem:[#allocation5 + $0x14] sm:$0xf]
    %v2723 = vld [vmem:[#allocation5 + $0x18] sm:$0xf]
    %v2724 = vld [vmem:[#allocation5 + $0x1c] sm:$0xf]
    %v2725 = vld [vmem:[#allocation5 + $0x20] sm:$0xf]
    %v2726 = vld [vmem:[#allocation5 + $0x24] sm:$0xf]
    %v2727 = vld [vmem:[#allocation5 + $0x28] sm:$0xf]
    %v2728 = vld [vmem:[#allocation5 + $0x2c] sm:$0xf]
    %v2729 = vld [vmem:[#allocation5 + $0x30] sm:$0xf]
    %v2730 = vld [vmem:[#allocation5 + $0x34] sm:$0xf]
    %v2731 = vld [vmem:[#allocation5 + $0x38] sm:$0xf]
    %v2732 = vld [vmem:[#allocation5 + $0x3c] sm:$0xf]
    %v2733 = vld [vmem:[#allocation5 + $0x40] sm:$0xf]
    %v2734 = vld [vmem:[#allocation5 + $0x44] sm:$0xf]
    %v2735 = vld [vmem:[#allocation5 + $0x48] sm:$0xf]
    %v2736 = vld [vmem:[#allocation5 + $0x4c] sm:$0xf]
    %v2737 = vld [vmem:[#allocation5 + $0x50] sm:$0xf]
    %v2738 = vld [vmem:[#allocation5 + $0x54] sm:$0xf]
    %v2739 = vld [vmem:[#allocation5 + $0x58] sm:$0xf]
    %v2740 = vld [vmem:[#allocation5 + $0x5c] sm:$0xf]
    %v2741 = vld [vmem:[#allocation5 + $0x60] sm:$0xf]
    %v2742 = vld [vmem:[#allocation5 + $0x64] sm:$0xf]
    %v2743 = vld [vmem:[#allocation5 + $0x68] sm:$0xf]
    %v2744 = vld [vmem:[#allocation5 + $0x6c] sm:$0xf]
    %v2745 = vld [vmem:[#allocation5 + $0x70] sm:$0xf]
    %v2746 = vld [vmem:[#allocation5 + $0x74] sm:$0xf]
    %v2747 = vld [vmem:[#allocation5 + $0x78] sm:$0xf]
    %v2748 = vld [vmem:[#allocation5 + $0x7c] sm:$0xf]
    %v2749 = vld [vmem:[#allocation5 + $0x80] sm:$0xf]
    %v2750 = vld [vmem:[#allocation5 + $0x84] sm:$0xf]
    %v2751 = vld [vmem:[#allocation5 + $0x88] sm:$0xf]
    %v2752 = vld [vmem:[#allocation5 + $0x8c] sm:$0xf]
    %v2753 = vld [vmem:[#allocation5 + $0x90] sm:$0xf]
    %v2754 = vld [vmem:[#allocation5 + $0x94] sm:$0xf]
    %v2755 = vld [vmem:[#allocation5 + $0x98] sm:$0xf]
    %v2756 = vld [vmem:[#allocation5 + $0x9c] sm:$0xf]
    %v2757 = vld [vmem:[#allocation5 + $0xa0] sm:$0xf]
    %v2758 = vld [vmem:[#allocation5 + $0xa4] sm:$0xf]
    %v2759 = vld [vmem:[#allocation5 + $0xa8] sm:$0xf]
    %v2760 = vld [vmem:[#allocation5 + $0xac] sm:$0xf]
    %v2761 = vld [vmem:[#allocation5 + $0xb0] sm:$0xf]
    %v2762 = vld [vmem:[#allocation5 + $0xb4] sm:$0xf]
    %v2763 = vld [vmem:[#allocation5 + $0xb8] sm:$0xf]
    %v2764 = vld [vmem:[#allocation5 + $0xbc] sm:$0xf]
    %v2813 = vunpack.c.l.b16 %v2717
    %v2814 = vunpack.c.l.b16 %v2718
    %v2815 = vunpack.c.l.b16 %v2719
    %v2816 = vunpack.c.l.b16 %v2720
    %v2817 = vunpack.c.l.b16 %v2721
    %v2818 = vunpack.c.l.b16 %v2722
    %v2819 = vunpack.c.l.b16 %v2723
    %v2820 = vunpack.c.l.b16 %v2724
    %v2821 = vunpack.c.l.b16 %v2725
    %v2822 = vunpack.c.l.b16 %v2726
    %v2823 = vunpack.c.l.b16 %v2727
    %v2824 = vunpack.c.l.b16 %v2728
    %v2825 = vunpack.c.l.b16 %v2729
    %v2826 = vunpack.c.l.b16 %v2730
    %v2827 = vunpack.c.l.b16 %v2731
    %v2828 = vunpack.c.l.b16 %v2732
    %v2829 = vunpack.c.l.b16 %v2733
    %v2830 = vunpack.c.l.b16 %v2734
    %v2831 = vunpack.c.l.b16 %v2735
    %v2832 = vunpack.c.l.b16 %v2736
    %v2833 = vunpack.c.l.b16 %v2737
    %v2834 = vunpack.c.l.b16 %v2738
    %v2835 = vunpack.c.l.b16 %v2739
    %v2836 = vunpack.c.l.b16 %v2740
    %v2837 = vunpack.c.l.b16 %v2741
    %v2838 = vunpack.c.l.b16 %v2742
    %v2839 = vunpack.c.l.b16 %v2743
    %v2840 = vunpack.c.l.b16 %v2744
    %v2841 = vunpack.c.l.b16 %v2745
    %v2842 = vunpack.c.l.b16 %v2746
    %v2843 = vunpack.c.l.b16 %v2747
    %v2844 = vunpack.c.l.b16 %v2748
    %v2845 = vunpack.c.l.b16 %v2749
    %v2846 = vunpack.c.l.b16 %v2750
    %v2847 = vunpack.c.l.b16 %v2751
    %v2848 = vunpack.c.l.b16 %v2752
    %v2849 = vunpack.c.l.b16 %v2753
    %v2850 = vunpack.c.l.b16 %v2754
    %v2851 = vunpack.c.l.b16 %v2755
    %v2852 = vunpack.c.l.b16 %v2756
    %v2853 = vunpack.c.l.b16 %v2757
    %v2854 = vunpack.c.l.b16 %v2758
    %v2855 = vunpack.c.l.b16 %v2759
    %v2856 = vunpack.c.l.b16 %v2760
    %v2857 = vunpack.c.l.b16 %v2761
    %v2858 = vunpack.c.l.b16 %v2762
    %v2859 = vunpack.c.l.b16 %v2763
    %v2860 = vunpack.c.l.b16 %v2764
    %v2861 = vpack.c.b16 %v2814, %v2813
    %v2862 = vpack.c.b16 %v2816, %v2815
    %v2863 = vpack.c.b16 %v2818, %v2817
    %v2864 = vpack.c.b16 %v2820, %v2819
    %v2865 = vpack.c.b16 %v2822, %v2821
    %v2866 = vpack.c.b16 %v2824, %v2823
    %v2867 = vpack.c.b16 %v2826, %v2825
    %v2868 = vpack.c.b16 %v2828, %v2827
    %v2869 = vpack.c.b16 %v2830, %v2829
    %v2870 = vpack.c.b16 %v2832, %v2831
    %v2871 = vpack.c.b16 %v2834, %v2833
    %v2872 = vpack.c.b16 %v2836, %v2835
    %v2873 = vpack.c.b16 %v2838, %v2837
    %v2874 = vpack.c.b16 %v2840, %v2839
    %v2875 = vpack.c.b16 %v2842, %v2841
    %v2876 = vpack.c.b16 %v2844, %v2843
    %v2877 = vpack.c.b16 %v2846, %v2845
    %v2878 = vpack.c.b16 %v2848, %v2847
    %v2879 = vpack.c.b16 %v2850, %v2849
    %v2880 = vpack.c.b16 %v2852, %v2851
    %v2881 = vpack.c.b16 %v2854, %v2853
    %v2882 = vpack.c.b16 %v2856, %v2855
    %v2883 = vpack.c.b16 %v2858, %v2857
    %v2884 = vpack.c.b16 %v2860, %v2859
    %2909 = vmatprep.subr.bf16.mxu0 0
    %2910 = vmatpush1.bf16.msra.mxu0 %v2861
    %2911 = vmatprep.subr.bf16.mxu0 0
    %2912 = vmatpush1.bf16.msra.mxu0 %v2862
    %2913 = vmatprep.subr.bf16.mxu0 0
    %2914 = vmatpush1.bf16.msra.mxu0 %v2863
    %2915 = vmatprep.subr.bf16.mxu0 0
    %2916 = vmatpush1.bf16.msra.mxu0 %v2864
    %2917 = vmatprep.subr.bf16.mxu0 0
    %2918 = vmatpush1.bf16.msra.mxu0 %v2865
    %2919 = vmatprep.subr.bf16.mxu0 0
    %2920 = vmatpush1.bf16.msra.mxu0 %v2866
    %2921 = vmatprep.subr.bf16.mxu0 0
    %2922 = vmatpush1.bf16.msra.mxu0 %v2867
    %2923 = vmatprep.subr.bf16.mxu0 0
    %2924 = vmatpush1.bf16.msra.mxu0 %v2868
    %2925 = vmatprep.subr.bf16.mxu0 0
    %2926 = vmatpush1.bf16.msra.mxu0 %v2869
    %2927 = vmatprep.subr.bf16.mxu0 0
    %2928 = vmatpush1.bf16.msra.mxu0 %v2870
    %2929 = vmatprep.subr.bf16.mxu0 0
    %2930 = vmatpush1.bf16.msra.mxu0 %v2871
    %2931 = vmatprep.subr.bf16.mxu0 0
    %2932 = vmatpush1.bf16.msra.mxu0 %v2872
    %2933 = vmatprep.subr.bf16.mxu0 0
    %2934 = vmatpush1.bf16.msra.mxu0 %v2873
    %2935 = vmatprep.subr.bf16.mxu0 0
    %2936 = vmatpush1.bf16.msra.mxu0 %v2874
    %2937 = vmatprep.subr.bf16.mxu0 0
    %2938 = vmatpush1.bf16.msra.mxu0 %v2875
    %2939 = vmatprep.subr.bf16.mxu0 0
    %2940 = vmatpush1.bf16.msra.mxu0 %v2876
    %2941 = vmatprep.mubr.bf16.mxu0 %v2715
    %2942 = vmatmul.mubr.bf16.gmra.mrb[0].mxu0 %v2714
    %v2943 = vpop.f32.mrb[0].mxu0
    %v2944 = vadd.f32 0.0, %v2943
    %v2945 = vpop.f32.mrb[0].mxu0
    %v2946 = vpop.f32.mrb[0].mxu0
    %v2947 = vpop.f32.mrb[0].mxu0
    %2948 = vdwg.mxu0
    %2949 = vmatprep.subr.bf16.mxu0 0
    %2950 = vmatpush1.bf16.msra.mxu0 %v2877
    %2951 = vmatprep.subr.bf16.mxu0 0
    %2952 = vmatpush1.bf16.msra.mxu0 %v2878
    %2953 = vmatprep.subr.bf16.mxu0 0
    %2954 = vmatpush1.bf16.msra.mxu0 %v2879
    %2955 = vmatprep.subr.bf16.mxu0 0
    %2956 = vmatpush1.bf16.msra.mxu0 %v2880
    %2957 = vmatprep.subr.bf16.mxu0 0
    %2958 = vmatpush1.bf16.msra.mxu0 %v2881
    %2959 = vmatprep.subr.bf16.mxu0 0
    %2960 = vmatpush1.bf16.msra.mxu0 %v2882
    %2961 = vmatprep.subr.bf16.mxu0 0
    %2962 = vmatpush1.bf16.msra.mxu0 %v2883
    %2963 = vmatprep.subr.bf16.mxu0 0
    %2964 = vmatpush1.bf16.msra.mxu0 %v2884
    %2965 = vmatprep.subr.bf16.mxu0 0
    %2966 = vmatpush1.bf16.msra.mxu0 0
    %2967 = vmatprep.subr.bf16.mxu0 0
    %2968 = vmatpush1.bf16.msra.mxu0 0
    %2969 = vmatprep.subr.bf16.mxu0 0
    %2970 = vmatpush1.bf16.msra.mxu0 0
    %2971 = vmatprep.subr.bf16.mxu0 0
    %2972 = vmatpush1.bf16.msra.mxu0 0
    %2973 = vmatprep.subr.bf16.mxu0 0
    %2974 = vmatpush1.bf16.msra.mxu0 0
    %2975 = vmatprep.subr.bf16.mxu0 0
    %2976 = vmatpush1.bf16.msra.mxu0 0
    %2977 = vmatprep.subr.bf16.mxu0 0
    %2978 = vmatpush1.bf16.msra.mxu0 0
    %2979 = vmatprep.subr.bf16.mxu0 0
    %2980 = vmatpush1.bf16.msra.mxu0 0
    %2981 = vmatprep.mubr.bf16.mxu0 0
    %2982 = vmatmul.mubr.bf16.gmra.mrb[0].mxu0 %v2716
    %v2983 = vpop.f32.mrb[0].mxu0
    %v2984 = vadd.f32 %v2944, %v2983
    %v2985 = vpop.f32.mrb[0].mxu0
    %v2986 = vpop.f32.mrb[0].mxu0
    %v2987 = vpop.f32.mrb[0].mxu0
    %2988 = vdwg.mxu0
    %2989 = vst [vmem:[#allocation7] sm:$0xff] %v2984
    // Predicated region
    $region26: #{tpu_custom_call.1} parent=1 // pred_check
      _
    $region27: #{tpu_custom_call.1} parent=1 // pred_check_branch
      %2991 = sbr.rel (0) target = $region29
    $region28: #{tpu_custom_call.1} parent=1 // pred_region
      %s2993 = ssub.s32 128, 128
      %2994 = vsyncadd [#allocation4], %s2993
      %s2996 = sshll.u32 [#allocation7], 4
      %s2997 = int_to_ptr.vmem [resolvable:$true] %s2996
      %2999 = dma.vmem_to_hbm [thread:$0]  %s2997, 128, %s4, [#allocation4]
    $region29: #{tpu_custom_call.1} parent=1 // pred_fallthru
      _
    // Predicated region
    $region30: #{tpu_custom_call.1} parent=1 // pred_check
      _
    $region31: #{tpu_custom_call.1} parent=1 // pred_check_branch
      %3001 = sbr.rel (0) target = $region33
    $region32: #{tpu_custom_call.1} parent=1 // pred_region
      %3002 = dma.done [#allocation4], 128
    $region33: #{tpu_custom_call.1} parent=1 // pred_fallthru
      _
    %3003 = vsyncpa [#allocation3], 1
    %3004 = vsyncpa [#allocation6], 1
    %3005 = vsyncpa [#allocation4], 1

</llo_original>
